<compile_context>
chip_gen: v7x
topology: tpu7x:2x2x1
jax: 0.10.0
libtpu: 0.0.40
codegen_flags: <defaults>
</compile_context>

<pallas_src>
import functools

import jax
import jax.numpy as jnp
from jax.experimental import pallas as pl
from jax.experimental.pallas import tpu as pltpu


# ----------------------------------------------------------------------------
# tiling helpers
# ----------------------------------------------------------------------------
def _round_up(n, m):
    return ((n + m - 1) // m) * m


def _pick_chunk(T, cap=16):
    """Timesteps per grid step for the recurrence (fully unrolled in-kernel)."""
    for c in range(min(T, cap), 0, -1):
        if T % c == 0:
            return c
    return 1


def _pick_row_tile(n, cap=512):
    """Largest row tile <= cap that divides n and is a multiple of 8."""
    for t in range(min(n, cap), 0, -1):
        if n % t == 0 and t % 8 == 0:
            return t
    return n  # full extent -> exempt from the (8,128) divisibility rule


# ----------------------------------------------------------------------------
# Kernel 1: fused input projection + bidirectional LSTM recurrence.
#   grid = (2 directions, T // CHUNK); carry (h, c) lives in VMEM scratch.
# ----------------------------------------------------------------------------
def _lstm_rec_kernel(x_ref, wih_ref, b_ref, whh_ref, h_out_ref,
                     pre_sc, h_sc, c_sc, *, chunk, bpad, hidden):
    @pl.when(pl.program_id(1) == 0)
    def _init():
        h_sc[...] = jnp.zeros_like(h_sc)
        c_sc[...] = jnp.zeros_like(c_sc)

    # Fused input projection for the whole chunk: one (chunk*Bp, nIn)@(nIn, 4H)
    # matmul into VMEM scratch -- no HBM round trip for the pre-activations.
    pre_sc[...] = (jnp.dot(x_ref[...], wih_ref[...],
                           preferred_element_type=jnp.float32) + b_ref[...])

    whh = whh_ref[...]  # (H, 4H) -- resident for every step of this chunk

    def run(reverse):
        # Fully unrolled; `row` is a Python int multiple of bpad (>=8), so every
        # load/store below is a static, sublane-aligned, unmasked access.
        for s in range(chunk):
            lidx = (chunk - 1 - s) if reverse else s
            row = lidx * bpad
            gates = pre_sc[pl.ds(row, bpad), :] + jnp.dot(
                h_sc[...], whh, preferred_element_type=jnp.float32)
            i = jax.nn.sigmoid(gates[:, 0 * hidden:1 * hidden])
            f = jax.nn.sigmoid(gates[:, 1 * hidden:2 * hidden])
            g = jnp.tanh(gates[:, 2 * hidden:3 * hidden])
            o = jax.nn.sigmoid(gates[:, 3 * hidden:4 * hidden])
            c_new = f * c_sc[...] + i * g
            h_new = o * jnp.tanh(c_new)
            h_sc[...] = h_new
            c_sc[...] = c_new
            h_out_ref[pl.ds(row, bpad), :] = h_new

    d = pl.program_id(0)

    @pl.when(d == 0)
    def _fwd():
        run(False)

    @pl.when(d == 1)
    def _bwd():
        run(True)


def lstm_rec_pallas(x2d, wih, b, whh, T, Bp, *, chunk_cap=16):
    TBp, nIn = x2d.shape
    H = whh.shape[1]
    G = 4 * H
    assert TBp == T * Bp and Bp % 8 == 0, "batch must be padded to a multiple of 8"
    chunk = _pick_chunk(T, chunk_cap)
    assert T % chunk == 0
    nc = T // chunk

    def x_idx(d, c):
        # forward reads chunk c; backward reads chunk nc-1-c
        return (c + d * (nc - 1 - 2 * c), 0)

    def out_idx(d, c):
        return (d, c + d * (nc - 1 - 2 * c), 0)

    kernel = functools.partial(_lstm_rec_kernel, chunk=chunk, bpad=Bp, hidden=H)

    return pl.pallas_call(
        kernel,
        out_shape=jax.ShapeDtypeStruct((2, T * Bp, H), jnp.float32),
        grid_spec=pltpu.PrefetchScalarGridSpec(
            num_scalar_prefetch=0,
            grid=(2, nc),
            in_specs=[
                pl.BlockSpec((chunk * Bp, nIn), x_idx),                # x chunk
                pl.BlockSpec((None, nIn, G), lambda d, c: (d, 0, 0)),  # W_ih[d]
                pl.BlockSpec((None, 1, G), lambda d, c: (d, 0, 0)),    # b[d]
                pl.BlockSpec((None, H, G), lambda d, c: (d, 0, 0)),    # W_hh[d]
            ],
            out_specs=pl.BlockSpec((None, chunk * Bp, H), out_idx),
            scratch_shapes=[
                pltpu.VMEM((chunk * Bp, G), jnp.float32),  # chunk gate pre-acts
                pltpu.VMEM((Bp, H), jnp.float32),          # h carry
                pltpu.VMEM((Bp, H), jnp.float32),          # c carry
            ],
        ),
        compiler_params=pltpu.CompilerParams(
            dimension_semantics=("parallel", "arbitrary")),
    )(x2d, wih, b, whh)


# ----------------------------------------------------------------------------
# Kernel 2: embedding Linear(2H -> nOut) over the flattened (T*Bp, 2H) tensor,
#   row-tiled; the [h_fwd | h_bwd] concat is two accumulating dots, one store.
# ----------------------------------------------------------------------------
def _embed_kernel(h_ref, w_ref, b_ref, out_ref):
    out_ref[...] = (
        jnp.dot(h_ref[0], w_ref[0], preferred_element_type=jnp.float32)
        + jnp.dot(h_ref[1], w_ref[1], preferred_element_type=jnp.float32)
        + b_ref[...])


def embed_pallas(h, w_emb, b_emb):
    _, M, H = h.shape
    nOut = w_emb.shape[-1]
    tile_m = _pick_row_tile(M, cap=512)
    return pl.pallas_call(
        _embed_kernel,
        out_shape=jax.ShapeDtypeStruct((M, nOut), jnp.float32),
        grid_spec=pltpu.PrefetchScalarGridSpec(
            num_scalar_prefetch=0,
            grid=(M // tile_m,),
            in_specs=[
                pl.BlockSpec((2, tile_m, H), lambda m: (0, m, 0)),
                pl.BlockSpec((2, H, nOut), lambda m: (0, 0, 0)),
                pl.BlockSpec((1, nOut), lambda m: (0, 0)),
            ],
            out_specs=pl.BlockSpec((tile_m, nOut), lambda m: (m, 0)),
        ),
        compiler_params=pltpu.CompilerParams(dimension_semantics=("parallel",)),
    )(h, w_emb, b_emb)


# ----------------------------------------------------------------------------
# Full forward pass
# ----------------------------------------------------------------------------
def bidirectional_lstm_forward(x, params):
    T, B, nIn = x.shape
    nOut = params["b_emb"].shape[-1]
    Bp = _round_up(B, 8)  # sublane-align the batch -> unmasked per-step accesses
    if Bp != B:
        x = jnp.pad(x, ((0, 0), (0, Bp - B), (0, 0)))
    x2d = x.reshape(T * Bp, nIn)
    h = lstm_rec_pallas(x2d, params["wih"], params["b"], params["whh"], T, Bp)
    y2d = embed_pallas(h, params["w_emb"], params["b_emb"])      # (T*Bp, nOut)
    return y2d.reshape(T, Bp, nOut)[:, :B, :]


# ----------------------------------------------------------------------------
# Pure-JAX reference (correctness check).
# ----------------------------------------------------------------------------
def forward_ref(x, p):
    T, B, _ = x.shape
    H = p["whh"].shape[1]

    def run_dir(xs, wih, whh, b):
        pre = jnp.einsum("tbi,ig->tbg", xs, wih) + b  # (T, B, 4H)

        def step(carry, g_x):
            h, c = carry
            g = g_x + h @ whh
            i = jax.nn.sigmoid(g[:, :H])
            f = jax.nn.sigmoid(g[:, H:2 * H])
            gg = jnp.tanh(g[:, 2 * H:3 * H])
            o = jax.nn.sigmoid(g[:, 3 * H:])
            c = f * c + i * gg
            h = o * jnp.tanh(c)
            return (h, c), h

        init = (jnp.zeros((B, H), jnp.float32), jnp.zeros((B, H), jnp.float32))
        _, hs = jax.lax.scan(step, init, pre)
        return hs

    hf = run_dir(x, p["wih"][0], p["whh"][0], p["b"][0])
    hb = jnp.flip(run_dir(jnp.flip(x, 0), p["wih"][1], p["whh"][1], p["b"][1]), 0)
    return hf @ p["w_emb"][0] + hb @ p["w_emb"][1] + p["b_emb"]


# ----------------------------------------------------------------------------
def init_params(key, nIn, H, nOut):
    ks = jax.random.split(key, 5)
    s = 1.0 / jnp.sqrt(H)
    u = lambda k, shape: jax.random.uniform(k, shape, jnp.float32, -s, s)
    return {
        # Packed LSTM weights, PyTorch gate order (i, f, g, o) along the 4H
        # axis; leading axis 0 = forward direction, 1 = reverse direction.
        "wih": u(ks[0], (2, nIn, 4 * H)),   # x @ wih  (W_ih transposed)
        "whh": u(ks[1], (2, H, 4 * H)),     # h @ whh  (W_hh transposed)
        "b":   u(ks[2], (2, 1, 4 * H)),     # b_ih + b_hh combined
        # embedding Linear(2H -> nOut), weight split into fwd / bwd halves
        "w_emb": u(ks[3], (2, H, nOut)),
        "b_emb": u(ks[4], (1, nOut)),
    }


if __name__ == "__main__":
    T, B, nIn, nHidden, nOut = 8, 2, 16, 32, 16
    key = jax.random.PRNGKey(0)
    kx, kp = jax.random.split(key)
    x = jax.random.normal(kx, (T, B, nIn), jnp.float32)
    params = init_params(kp, nIn, nHidden, nOut)

    out = jax.block_until_ready(bidirectional_lstm_forward(x, params))
    assert out.shape == (T, B, nOut)

    ref = jax.block_until_ready(forward_ref(x, params))
    assert jnp.allclose(out, ref, atol=1e-3, rtol=1e-3), float(
        jnp.max(jnp.abs(out - ref)))

    print("KERNEL_OK")
</pallas_src>

<mosaic_0001>
module attributes {stable_mosaic.version = 11 : i64} {
  func.func @_lstm_rec_kernel(%arg0: i32, %arg1: i32, %arg2: memref<64x16xf32, #tpu.memory_space<vmem>>, %arg3: memref<1x16x128xf32, #tpu.memory_space<vmem>>, %arg4: memref<1x1x128xf32, #tpu.memory_space<vmem>>, %arg5: memref<1x32x128xf32, #tpu.memory_space<vmem>>, %arg6: memref<1x64x32xf32, #tpu.memory_space<vmem>>, %arg7: memref<64x128xf32, #tpu.memory_space<vmem>>, %arg8: memref<8x32xf32, #tpu.memory_space<vmem>>, %arg9: memref<8x32xf32, #tpu.memory_space<vmem>>) attributes {dimension_semantics = [#tpu.dimension_semantics<parallel>, #tpu.dimension_semantics<arbitrary>], iteration_bounds = array<i64: 2, 1>, scalar_prefetch = 0 : i64, scratch_operands = 3 : i64, tpu.core_type = #tpu.core_type<tc>, window_params = [{transform_indices = @transform_0, window_bounds = array<i64: 64, 16>}, {transform_indices = @transform_1, window_bounds = array<i64: 1, 16, 128>}, {transform_indices = @transform_2, window_bounds = array<i64: 1, 1, 128>}, {transform_indices = @transform_3, window_bounds = array<i64: 1, 32, 128>}, {transform_indices = @transform_4, window_bounds = array<i64: 1, 64, 32>}]} {
    %c0_i32 = arith.constant 0 : i32
    %0 = arith.cmpi eq, %arg1, %c0_i32 : i32
    %1 = arith.extui %0 : i1 to i32
    %c0_i32_0 = arith.constant 0 : i32
    %2 = arith.cmpi ne, %1, %c0_i32_0 : i32
    scf.if %2 {
      %cst_16 = arith.constant 0.000000e+00 : f32
      %20 = vector.broadcast %cst_16 : f32 to vector<8x32xf32>
      %c0_17 = arith.constant 0 : index
      %c0_18 = arith.constant 0 : index
      %21 = vector.load %arg8[%c0_17, %c0_18] : memref<8x32xf32, #tpu.memory_space<vmem>>, vector<8x32xf32>
      tpu.vector_store %arg8[%c0_17, %c0_18], %20 {strides = array<i32>} : memref<8x32xf32, #tpu.memory_space<vmem>>, vector<8x32xf32>,
      %cst_19 = arith.constant 0.000000e+00 : f32
      %22 = vector.broadcast %cst_19 : f32 to vector<8x32xf32>
      %c0_20 = arith.constant 0 : index
      %c0_21 = arith.constant 0 : index
      %23 = vector.load %arg9[%c0_20, %c0_21] : memref<8x32xf32, #tpu.memory_space<vmem>>, vector<8x32xf32>
      tpu.vector_store %arg9[%c0_20, %c0_21], %22 {strides = array<i32>} : memref<8x32xf32, #tpu.memory_space<vmem>>, vector<8x32xf32>,
    } else {
    }
    %c0 = arith.constant 0 : index
    %c0_1 = arith.constant 0 : index
    %3 = vector.load %arg2[%c0, %c0_1] : memref<64x16xf32, #tpu.memory_space<vmem>>, vector<64x16xf32>
    %c0_2 = arith.constant 0 : index
    %c0_3 = arith.constant 0 : index
    %c0_4 = arith.constant 0 : index
    %4 = vector.load %arg3[%c0_2, %c0_3, %c0_4] : memref<1x16x128xf32, #tpu.memory_space<vmem>>, vector<1x16x128xf32>
    %5 = vector.shape_cast %4 : vector<1x16x128xf32> to vector<16x128xf32>
    %cst = arith.constant dense<0.000000e+00> : vector<64x128xf32>
    %6 = tpu.matmul %3, %5, %cst {dimension_numbers = #tpu.dot_dimension_numbers<[1], [0], [0], [1], [0, 0, 1, 1], [], []>} : vector<64x16xf32>, vector<16x128xf32>, vector<64x128xf32> -> vector<64x128xf32>
    %c0_5 = arith.constant 0 : index
    %c0_6 = arith.constant 0 : index
    %c0_7 = arith.constant 0 : index
    %7 = vector.load %arg4[%c0_5, %c0_6, %c0_7] : memref<1x1x128xf32, #tpu.memory_space<vmem>>, vector<1x1x128xf32>
    %8 = vector.shape_cast %7 : vector<1x1x128xf32> to vector<1x128xf32>
    %9 = vector.broadcast %8 : vector<1x128xf32> to vector<64x128xf32>
    %10 = arith.addf %6, %9 : vector<64x128xf32>
    %c0_8 = arith.constant 0 : index
    %c0_9 = arith.constant 0 : index
    %11 = vector.load %arg7[%c0_8, %c0_9] : memref<64x128xf32, #tpu.memory_space<vmem>>, vector<64x128xf32>
    tpu.vector_store %arg7[%c0_8, %c0_9], %10 {strides = array<i32>} : memref<64x128xf32, #tpu.memory_space<vmem>>, vector<64x128xf32>,
    %c0_10 = arith.constant 0 : index
    %c0_11 = arith.constant 0 : index
    %c0_12 = arith.constant 0 : index
    %12 = vector.load %arg5[%c0_10, %c0_11, %c0_12] : memref<1x32x128xf32, #tpu.memory_space<vmem>>, vector<1x32x128xf32>
    %13 = vector.shape_cast %12 : vector<1x32x128xf32> to vector<32x128xf32>
    %c0_i32_13 = arith.constant 0 : i32
    %14 = arith.cmpi eq, %arg0, %c0_i32_13 : i32
    %15 = arith.extui %14 : i1 to i32
    %c0_i32_14 = arith.constant 0 : i32
    %16 = arith.cmpi ne, %15, %c0_i32_14 : i32
    scf.if %16 {
      %c0_16 = arith.constant 0 : index
      %c0_17 = arith.constant 0 : index
      %20 = vector.load %arg7[%c0_16, %c0_17] : memref<64x128xf32, #tpu.memory_space<vmem>>, vector<8x128xf32>
      %c0_18 = arith.constant 0 : index
      %c0_19 = arith.constant 0 : index
      %21 = vector.load %arg8[%c0_18, %c0_19] : memref<8x32xf32, #tpu.memory_space<vmem>>, vector<8x32xf32>
      %cst_20 = arith.constant dense<0.000000e+00> : vector<8x128xf32>
      %22 = tpu.matmul %21, %13, %cst_20 {dimension_numbers = #tpu.dot_dimension_numbers<[1], [0], [0], [1], [0, 0, 1, 1], [], []>} : vector<8x32xf32>, vector<32x128xf32>, vector<8x128xf32> -> vector<8x128xf32>
      %23 = arith.addf %20, %22 : vector<8x128xf32>
      %24 = vector.extract_strided_slice %23 {offsets = [0, 0], sizes = [8, 32], strides = [1, 1]} : vector<8x128xf32> to vector<8x32xf32>
      %25 = arith.negf %24 : vector<8x32xf32>
      %26 = math.exp %25 : vector<8x32xf32>
      %cst_21 = arith.constant 1.000000e+00 : f32
      %27 = vector.broadcast %cst_21 : f32 to vector<8x32xf32>
      %28 = arith.addf %27, %26 : vector<8x32xf32>
      %29 = arith.divf %27, %28 : vector<8x32xf32>
      %30 = vector.extract_strided_slice %23 {offsets = [0, 32], sizes = [8, 32], strides = [1, 1]} : vector<8x128xf32> to vector<8x32xf32>
      %31 = arith.negf %30 : vector<8x32xf32>
      %32 = math.exp %31 : vector<8x32xf32>
      %cst_22 = arith.constant 1.000000e+00 : f32
      %33 = vector.broadcast %cst_22 : f32 to vector<8x32xf32>
      %34 = arith.addf %33, %32 : vector<8x32xf32>
      %35 = arith.divf %33, %34 : vector<8x32xf32>
      %36 = vector.extract_strided_slice %23 {offsets = [0, 64], sizes = [8, 32], strides = [1, 1]} : vector<8x128xf32> to vector<8x32xf32>
      %37 = math.tanh %36 : vector<8x32xf32>
      %38 = vector.extract_strided_slice %23 {offsets = [0, 96], sizes = [8, 32], strides = [1, 1]} : vector<8x128xf32> to vector<8x32xf32>
      %39 = arith.negf %38 : vector<8x32xf32>
      %40 = math.exp %39 : vector<8x32xf32>
      %cst_23 = arith.constant 1.000000e+00 : f32
      %41 = vector.broadcast %cst_23 : f32 to vector<8x32xf32>
      %42 = arith.addf %41, %40 : vector<8x32xf32>
      %43 = arith.divf %41, %42 : vector<8x32xf32>
      %c0_24 = arith.constant 0 : index
      %c0_25 = arith.constant 0 : index
      %44 = vector.load %arg9[%c0_24, %c0_25] : memref<8x32xf32, #tpu.memory_space<vmem>>, vector<8x32xf32>
      %45 = arith.mulf %35, %44 : vector<8x32xf32>
      %46 = arith.mulf %29, %37 : vector<8x32xf32>
      %47 = arith.addf %45, %46 : vector<8x32xf32>
      %48 = math.tanh %47 : vector<8x32xf32>
      %49 = arith.mulf %43, %48 : vector<8x32xf32>
      %c0_26 = arith.constant 0 : index
      %c0_27 = arith.constant 0 : index
      %50 = vector.load %arg8[%c0_26, %c0_27] : memref<8x32xf32, #tpu.memory_space<vmem>>, vector<8x32xf32>
      tpu.vector_store %arg8[%c0_26, %c0_27], %49 {strides = array<i32>} : memref<8x32xf32, #tpu.memory_space<vmem>>, vector<8x32xf32>,
      %c0_28 = arith.constant 0 : index
      %c0_29 = arith.constant 0 : index
      %51 = vector.load %arg9[%c0_28, %c0_29] : memref<8x32xf32, #tpu.memory_space<vmem>>, vector<8x32xf32>
      tpu.vector_store %arg9[%c0_28, %c0_29], %47 {strides = array<i32>} : memref<8x32xf32, #tpu.memory_space<vmem>>, vector<8x32xf32>,
      %c0_30 = arith.constant 0 : index
      %c0_31 = arith.constant 0 : index
      %c0_32 = arith.constant 0 : index
      %52 = vector.load %arg6[%c0_30, %c0_31, %c0_32] : memref<1x64x32xf32, #tpu.memory_space<vmem>>, vector<1x8x32xf32>
      %53 = vector.shape_cast %52 : vector<1x8x32xf32> to vector<8x32xf32>
      %54 = vector.shape_cast %49 : vector<8x32xf32> to vector<1x8x32xf32>
      tpu.vector_store %arg6[%c0_30, %c0_31, %c0_32], %54 {strides = array<i32>} : memref<1x64x32xf32, #tpu.memory_space<vmem>>, vector<1x8x32xf32>,
      %c8 = arith.constant 8 : index
      %c0_33 = arith.constant 0 : index
      %55 = vector.load %arg7[%c8, %c0_33] : memref<64x128xf32, #tpu.memory_space<vmem>>, vector<8x128xf32>
      %c0_34 = arith.constant 0 : index
      %c0_35 = arith.constant 0 : index
      %56 = vector.load %arg8[%c0_34, %c0_35] : memref<8x32xf32, #tpu.memory_space<vmem>>, vector<8x32xf32>
      %cst_36 = arith.constant dense<0.000000e+00> : vector<8x128xf32>
      %57 = tpu.matmul %56, %13, %cst_36 {dimension_numbers = #tpu.dot_dimension_numbers<[1], [0], [0], [1], [0, 0, 1, 1], [], []>} : vector<8x32xf32>, vector<32x128xf32>, vector<8x128xf32> -> vector<8x128xf32>
      %58 = arith.addf %55, %57 : vector<8x128xf32>
      %59 = vector.extract_strided_slice %58 {offsets = [0, 0], sizes = [8, 32], strides = [1, 1]} : vector<8x128xf32> to vector<8x32xf32>
      %60 = arith.negf %59 : vector<8x32xf32>
      %61 = math.exp %60 : vector<8x32xf32>
      %cst_37 = arith.constant 1.000000e+00 : f32
      %62 = vector.broadcast %cst_37 : f32 to vector<8x32xf32>
      %63 = arith.addf %62, %61 : vector<8x32xf32>
      %64 = arith.divf %62, %63 : vector<8x32xf32>
      %65 = vector.extract_strided_slice %58 {offsets = [0, 32], sizes = [8, 32], strides = [1, 1]} : vector<8x128xf32> to vector<8x32xf32>
      %66 = arith.negf %65 : vector<8x32xf32>
      %67 = math.exp %66 : vector<8x32xf32>
      %cst_38 = arith.constant 1.000000e+00 : f32
      %68 = vector.broadcast %cst_38 : f32 to vector<8x32xf32>
      %69 = arith.addf %68, %67 : vector<8x32xf32>
      %70 = arith.divf %68, %69 : vector<8x32xf32>
      %71 = vector.extract_strided_slice %58 {offsets = [0, 64], sizes = [8, 32], strides = [1, 1]} : vector<8x128xf32> to vector<8x32xf32>
      %72 = math.tanh %71 : vector<8x32xf32>
      %73 = vector.extract_strided_slice %58 {offsets = [0, 96], sizes = [8, 32], strides = [1, 1]} : vector<8x128xf32> to vector<8x32xf32>
      %74 = arith.negf %73 : vector<8x32xf32>
      %75 = math.exp %74 : vector<8x32xf32>
      %cst_39 = arith.constant 1.000000e+00 : f32
      %76 = vector.broadcast %cst_39 : f32 to vector<8x32xf32>
      %77 = arith.addf %76, %75 : vector<8x32xf32>
      %78 = arith.divf %76, %77 : vector<8x32xf32>
      %c0_40 = arith.constant 0 : index
      %c0_41 = arith.constant 0 : index
      %79 = vector.load %arg9[%c0_40, %c0_41] : memref<8x32xf32, #tpu.memory_space<vmem>>, vector<8x32xf32>
      %80 = arith.mulf %70, %79 : vector<8x32xf32>
      %81 = arith.mulf %64, %72 : vector<8x32xf32>
      %82 = arith.addf %80, %81 : vector<8x32xf32>
      %83 = math.tanh %82 : vector<8x32xf32>
      %84 = arith.mulf %78, %83 : vector<8x32xf32>
      %c0_42 = arith.constant 0 : index
      %c0_43 = arith.constant 0 : index
      %85 = vector.load %arg8[%c0_42, %c0_43] : memref<8x32xf32, #tpu.memory_space<vmem>>, vector<8x32xf32>
      tpu.vector_store %arg8[%c0_42, %c0_43], %84 {strides = array<i32>} : memref<8x32xf32, #tpu.memory_space<vmem>>, vector<8x32xf32>,
      %c0_44 = arith.constant 0 : index
      %c0_45 = arith.constant 0 : index
      %86 = vector.load %arg9[%c0_44, %c0_45] : memref<8x32xf32, #tpu.memory_space<vmem>>, vector<8x32xf32>
      tpu.vector_store %arg9[%c0_44, %c0_45], %82 {strides = array<i32>} : memref<8x32xf32, #tpu.memory_space<vmem>>, vector<8x32xf32>,
      %c0_46 = arith.constant 0 : index
      %c8_47 = arith.constant 8 : index
      %c0_48 = arith.constant 0 : index
      %87 = vector.load %arg6[%c0_46, %c8_47, %c0_48] : memref<1x64x32xf32, #tpu.memory_space<vmem>>, vector<1x8x32xf32>
      %88 = vector.shape_cast %87 : vector<1x8x32xf32> to vector<8x32xf32>
      %89 = vector.shape_cast %84 : vector<8x32xf32> to vector<1x8x32xf32>
      tpu.vector_store %arg6[%c0_46, %c8_47, %c0_48], %89 {strides = array<i32>} : memref<1x64x32xf32, #tpu.memory_space<vmem>>, vector<1x8x32xf32>,
      %c16 = arith.constant 16 : index
      %c0_49 = arith.constant 0 : index
      %90 = vector.load %arg7[%c16, %c0_49] : memref<64x128xf32, #tpu.memory_space<vmem>>, vector<8x128xf32>
      %c0_50 = arith.constant 0 : index
      %c0_51 = arith.constant 0 : index
      %91 = vector.load %arg8[%c0_50, %c0_51] : memref<8x32xf32, #tpu.memory_space<vmem>>, vector<8x32xf32>
      %cst_52 = arith.constant dense<0.000000e+00> : vector<8x128xf32>
      %92 = tpu.matmul %91, %13, %cst_52 {dimension_numbers = #tpu.dot_dimension_numbers<[1], [0], [0], [1], [0, 0, 1, 1], [], []>} : vector<8x32xf32>, vector<32x128xf32>, vector<8x128xf32> -> vector<8x128xf32>
      %93 = arith.addf %90, %92 : vector<8x128xf32>
      %94 = vector.extract_strided_slice %93 {offsets = [0, 0], sizes = [8, 32], strides = [1, 1]} : vector<8x128xf32> to vector<8x32xf32>
      %95 = arith.negf %94 : vector<8x32xf32>
      %96 = math.exp %95 : vector<8x32xf32>
      %cst_53 = arith.constant 1.000000e+00 : f32
      %97 = vector.broadcast %cst_53 : f32 to vector<8x32xf32>
      %98 = arith.addf %97, %96 : vector<8x32xf32>
      %99 = arith.divf %97, %98 : vector<8x32xf32>
      %100 = vector.extract_strided_slice %93 {offsets = [0, 32], sizes = [8, 32], strides = [1, 1]} : vector<8x128xf32> to vector<8x32xf32>
      %101 = arith.negf %100 : vector<8x32xf32>
      %102 = math.exp %101 : vector<8x32xf32>
      %cst_54 = arith.constant 1.000000e+00 : f32
      %103 = vector.broadcast %cst_54 : f32 to vector<8x32xf32>
      %104 = arith.addf %103, %102 : vector<8x32xf32>
      %105 = arith.divf %103, %104 : vector<8x32xf32>
      %106 = vector.extract_strided_slice %93 {offsets = [0, 64], sizes = [8, 32], strides = [1, 1]} : vector<8x128xf32> to vector<8x32xf32>
      %107 = math.tanh %106 : vector<8x32xf32>
      %108 = vector.extract_strided_slice %93 {offsets = [0, 96], sizes = [8, 32], strides = [1, 1]} : vector<8x128xf32> to vector<8x32xf32>
      %109 = arith.negf %108 : vector<8x32xf32>
      %110 = math.exp %109 : vector<8x32xf32>
      %cst_55 = arith.constant 1.000000e+00 : f32
      %111 = vector.broadcast %cst_55 : f32 to vector<8x32xf32>
      %112 = arith.addf %111, %110 : vector<8x32xf32>
      %113 = arith.divf %111, %112 : vector<8x32xf32>
      %c0_56 = arith.constant 0 : index
      %c0_57 = arith.constant 0 : index
      %114 = vector.load %arg9[%c0_56, %c0_57] : memref<8x32xf32, #tpu.memory_space<vmem>>, vector<8x32xf32>
      %115 = arith.mulf %105, %114 : vector<8x32xf32>
      %116 = arith.mulf %99, %107 : vector<8x32xf32>
      %117 = arith.addf %115, %116 : vector<8x32xf32>
      %118 = math.tanh %117 : vector<8x32xf32>
      %119 = arith.mulf %113, %118 : vector<8x32xf32>
      %c0_58 = arith.constant 0 : index
      %c0_59 = arith.constant 0 : index
      %120 = vector.load %arg8[%c0_58, %c0_59] : memref<8x32xf32, #tpu.memory_space<vmem>>, vector<8x32xf32>
      tpu.vector_store %arg8[%c0_58, %c0_59], %119 {strides = array<i32>} : memref<8x32xf32, #tpu.memory_space<vmem>>, vector<8x32xf32>,
      %c0_60 = arith.constant 0 : index
      %c0_61 = arith.constant 0 : index
      %121 = vector.load %arg9[%c0_60, %c0_61] : memref<8x32xf32, #tpu.memory_space<vmem>>, vector<8x32xf32>
      tpu.vector_store %arg9[%c0_60, %c0_61], %117 {strides = array<i32>} : memref<8x32xf32, #tpu.memory_space<vmem>>, vector<8x32xf32>,
      %c0_62 = arith.constant 0 : index
      %c16_63 = arith.constant 16 : index
      %c0_64 = arith.constant 0 : index
      %122 = vector.load %arg6[%c0_62, %c16_63, %c0_64] : memref<1x64x32xf32, #tpu.memory_space<vmem>>, vector<1x8x32xf32>
      %123 = vector.shape_cast %122 : vector<1x8x32xf32> to vector<8x32xf32>
      %124 = vector.shape_cast %119 : vector<8x32xf32> to vector<1x8x32xf32>
      tpu.vector_store %arg6[%c0_62, %c16_63, %c0_64], %124 {strides = array<i32>} : memref<1x64x32xf32, #tpu.memory_space<vmem>>, vector<1x8x32xf32>,
      %c24 = arith.constant 24 : index
      %c0_65 = arith.constant 0 : index
      %125 = vector.load %arg7[%c24, %c0_65] : memref<64x128xf32, #tpu.memory_space<vmem>>, vector<8x128xf32>
      %c0_66 = arith.constant 0 : index
      %c0_67 = arith.constant 0 : index
      %126 = vector.load %arg8[%c0_66, %c0_67] : memref<8x32xf32, #tpu.memory_space<vmem>>, vector<8x32xf32>
      %cst_68 = arith.constant dense<0.000000e+00> : vector<8x128xf32>
      %127 = tpu.matmul %126, %13, %cst_68 {dimension_numbers = #tpu.dot_dimension_numbers<[1], [0], [0], [1], [0, 0, 1, 1], [], []>} : vector<8x32xf32>, vector<32x128xf32>, vector<8x128xf32> -> vector<8x128xf32>
      %128 = arith.addf %125, %127 : vector<8x128xf32>
      %129 = vector.extract_strided_slice %128 {offsets = [0, 0], sizes = [8, 32], strides = [1, 1]} : vector<8x128xf32> to vector<8x32xf32>
      %130 = arith.negf %129 : vector<8x32xf32>
      %131 = math.exp %130 : vector<8x32xf32>
      %cst_69 = arith.constant 1.000000e+00 : f32
      %132 = vector.broadcast %cst_69 : f32 to vector<8x32xf32>
      %133 = arith.addf %132, %131 : vector<8x32xf32>
      %134 = arith.divf %132, %133 : vector<8x32xf32>
      %135 = vector.extract_strided_slice %128 {offsets = [0, 32], sizes = [8, 32], strides = [1, 1]} : vector<8x128xf32> to vector<8x32xf32>
      %136 = arith.negf %135 : vector<8x32xf32>
      %137 = math.exp %136 : vector<8x32xf32>
      %cst_70 = arith.constant 1.000000e+00 : f32
      %138 = vector.broadcast %cst_70 : f32 to vector<8x32xf32>
      %139 = arith.addf %138, %137 : vector<8x32xf32>
      %140 = arith.divf %138, %139 : vector<8x32xf32>
      %141 = vector.extract_strided_slice %128 {offsets = [0, 64], sizes = [8, 32], strides = [1, 1]} : vector<8x128xf32> to vector<8x32xf32>
      %142 = math.tanh %141 : vector<8x32xf32>
      %143 = vector.extract_strided_slice %128 {offsets = [0, 96], sizes = [8, 32], strides = [1, 1]} : vector<8x128xf32> to vector<8x32xf32>
      %144 = arith.negf %143 : vector<8x32xf32>
      %145 = math.exp %144 : vector<8x32xf32>
      %cst_71 = arith.constant 1.000000e+00 : f32
      %146 = vector.broadcast %cst_71 : f32 to vector<8x32xf32>
      %147 = arith.addf %146, %145 : vector<8x32xf32>
      %148 = arith.divf %146, %147 : vector<8x32xf32>
      %c0_72 = arith.constant 0 : index
      %c0_73 = arith.constant 0 : index
      %149 = vector.load %arg9[%c0_72, %c0_73] : memref<8x32xf32, #tpu.memory_space<vmem>>, vector<8x32xf32>
      %150 = arith.mulf %140, %149 : vector<8x32xf32>
      %151 = arith.mulf %134, %142 : vector<8x32xf32>
      %152 = arith.addf %150, %151 : vector<8x32xf32>
      %153 = math.tanh %152 : vector<8x32xf32>
      %154 = arith.mulf %148, %153 : vector<8x32xf32>
      %c0_74 = arith.constant 0 : index
      %c0_75 = arith.constant 0 : index
      %155 = vector.load %arg8[%c0_74, %c0_75] : memref<8x32xf32, #tpu.memory_space<vmem>>, vector<8x32xf32>
      tpu.vector_store %arg8[%c0_74, %c0_75], %154 {strides = array<i32>} : memref<8x32xf32, #tpu.memory_space<vmem>>, vector<8x32xf32>,
      %c0_76 = arith.constant 0 : index
      %c0_77 = arith.constant 0 : index
      %156 = vector.load %arg9[%c0_76, %c0_77] : memref<8x32xf32, #tpu.memory_space<vmem>>, vector<8x32xf32>
      tpu.vector_store %arg9[%c0_76, %c0_77], %152 {strides = array<i32>} : memref<8x32xf32, #tpu.memory_space<vmem>>, vector<8x32xf32>,
      %c0_78 = arith.constant 0 : index
      %c24_79 = arith.constant 24 : index
      %c0_80 = arith.constant 0 : index
      %157 = vector.load %arg6[%c0_78, %c24_79, %c0_80] : memref<1x64x32xf32, #tpu.memory_space<vmem>>, vector<1x8x32xf32>
      %158 = vector.shape_cast %157 : vector<1x8x32xf32> to vector<8x32xf32>
      %159 = vector.shape_cast %154 : vector<8x32xf32> to vector<1x8x32xf32>
      tpu.vector_store %arg6[%c0_78, %c24_79, %c0_80], %159 {strides = array<i32>} : memref<1x64x32xf32, #tpu.memory_space<vmem>>, vector<1x8x32xf32>,
      %c32 = arith.constant 32 : index
      %c0_81 = arith.constant 0 : index
      %160 = vector.load %arg7[%c32, %c0_81] : memref<64x128xf32, #tpu.memory_space<vmem>>, vector<8x128xf32>
      %c0_82 = arith.constant 0 : index
      %c0_83 = arith.constant 0 : index
      %161 = vector.load %arg8[%c0_82, %c0_83] : memref<8x32xf32, #tpu.memory_space<vmem>>, vector<8x32xf32>
      %cst_84 = arith.constant dense<0.000000e+00> : vector<8x128xf32>
      %162 = tpu.matmul %161, %13, %cst_84 {dimension_numbers = #tpu.dot_dimension_numbers<[1], [0], [0], [1], [0, 0, 1, 1], [], []>} : vector<8x32xf32>, vector<32x128xf32>, vector<8x128xf32> -> vector<8x128xf32>
      %163 = arith.addf %160, %162 : vector<8x128xf32>
      %164 = vector.extract_strided_slice %163 {offsets = [0, 0], sizes = [8, 32], strides = [1, 1]} : vector<8x128xf32> to vector<8x32xf32>
      %165 = arith.negf %164 : vector<8x32xf32>
      %166 = math.exp %165 : vector<8x32xf32>
      %cst_85 = arith.constant 1.000000e+00 : f32
      %167 = vector.broadcast %cst_85 : f32 to vector<8x32xf32>
      %168 = arith.addf %167, %166 : vector<8x32xf32>
      %169 = arith.divf %167, %168 : vector<8x32xf32>
      %170 = vector.extract_strided_slice %163 {offsets = [0, 32], sizes = [8, 32], strides = [1, 1]} : vector<8x128xf32> to vector<8x32xf32>
      %171 = arith.negf %170 : vector<8x32xf32>
      %172 = math.exp %171 : vector<8x32xf32>
      %cst_86 = arith.constant 1.000000e+00 : f32
      %173 = vector.broadcast %cst_86 : f32 to vector<8x32xf32>
      %174 = arith.addf %173, %172 : vector<8x32xf32>
      %175 = arith.divf %173, %174 : vector<8x32xf32>
      %176 = vector.extract_strided_slice %163 {offsets = [0, 64], sizes = [8, 32], strides = [1, 1]} : vector<8x128xf32> to vector<8x32xf32>
      %177 = math.tanh %176 : vector<8x32xf32>
      %178 = vector.extract_strided_slice %163 {offsets = [0, 96], sizes = [8, 32], strides = [1, 1]} : vector<8x128xf32> to vector<8x32xf32>
      %179 = arith.negf %178 : vector<8x32xf32>
      %180 = math.exp %179 : vector<8x32xf32>
      %cst_87 = arith.constant 1.000000e+00 : f32
      %181 = vector.broadcast %cst_87 : f32 to vector<8x32xf32>
      %182 = arith.addf %181, %180 : vector<8x32xf32>
      %183 = arith.divf %181, %182 : vector<8x32xf32>
      %c0_88 = arith.constant 0 : index
      %c0_89 = arith.constant 0 : index
      %184 = vector.load %arg9[%c0_88, %c0_89] : memref<8x32xf32, #tpu.memory_space<vmem>>, vector<8x32xf32>
      %185 = arith.mulf %175, %184 : vector<8x32xf32>
      %186 = arith.mulf %169, %177 : vector<8x32xf32>
      %187 = arith.addf %185, %186 : vector<8x32xf32>
      %188 = math.tanh %187 : vector<8x32xf32>
      %189 = arith.mulf %183, %188 : vector<8x32xf32>
      %c0_90 = arith.constant 0 : index
      %c0_91 = arith.constant 0 : index
      %190 = vector.load %arg8[%c0_90, %c0_91] : memref<8x32xf32, #tpu.memory_space<vmem>>, vector<8x32xf32>
      tpu.vector_store %arg8[%c0_90, %c0_91], %189 {strides = array<i32>} : memref<8x32xf32, #tpu.memory_space<vmem>>, vector<8x32xf32>,
      %c0_92 = arith.constant 0 : index
      %c0_93 = arith.constant 0 : index
      %191 = vector.load %arg9[%c0_92, %c0_93] : memref<8x32xf32, #tpu.memory_space<vmem>>, vector<8x32xf32>
      tpu.vector_store %arg9[%c0_92, %c0_93], %187 {strides = array<i32>} : memref<8x32xf32, #tpu.memory_space<vmem>>, vector<8x32xf32>,
      %c0_94 = arith.constant 0 : index
      %c32_95 = arith.constant 32 : index
      %c0_96 = arith.constant 0 : index
      %192 = vector.load %arg6[%c0_94, %c32_95, %c0_96] : memref<1x64x32xf32, #tpu.memory_space<vmem>>, vector<1x8x32xf32>
      %193 = vector.shape_cast %192 : vector<1x8x32xf32> to vector<8x32xf32>
      %194 = vector.shape_cast %189 : vector<8x32xf32> to vector<1x8x32xf32>
      tpu.vector_store %arg6[%c0_94, %c32_95, %c0_96], %194 {strides = array<i32>} : memref<1x64x32xf32, #tpu.memory_space<vmem>>, vector<1x8x32xf32>,
      %c40 = arith.constant 40 : index
      %c0_97 = arith.constant 0 : index
      %195 = vector.load %arg7[%c40, %c0_97] : memref<64x128xf32, #tpu.memory_space<vmem>>, vector<8x128xf32>
      %c0_98 = arith.constant 0 : index
      %c0_99 = arith.constant 0 : index
      %196 = vector.load %arg8[%c0_98, %c0_99] : memref<8x32xf32, #tpu.memory_space<vmem>>, vector<8x32xf32>
      %cst_100 = arith.constant dense<0.000000e+00> : vector<8x128xf32>
      %197 = tpu.matmul %196, %13, %cst_100 {dimension_numbers = #tpu.dot_dimension_numbers<[1], [0], [0], [1], [0, 0, 1, 1], [], []>} : vector<8x32xf32>, vector<32x128xf32>, vector<8x128xf32> -> vector<8x128xf32>
      %198 = arith.addf %195, %197 : vector<8x128xf32>
      %199 = vector.extract_strided_slice %198 {offsets = [0, 0], sizes = [8, 32], strides = [1, 1]} : vector<8x128xf32> to vector<8x32xf32>
      %200 = arith.negf %199 : vector<8x32xf32>
      %201 = math.exp %200 : vector<8x32xf32>
      %cst_101 = arith.constant 1.000000e+00 : f32
      %202 = vector.broadcast %cst_101 : f32 to vector<8x32xf32>
      %203 = arith.addf %202, %201 : vector<8x32xf32>
      %204 = arith.divf %202, %203 : vector<8x32xf32>
      %205 = vector.extract_strided_slice %198 {offsets = [0, 32], sizes = [8, 32], strides = [1, 1]} : vector<8x128xf32> to vector<8x32xf32>
      %206 = arith.negf %205 : vector<8x32xf32>
      %207 = math.exp %206 : vector<8x32xf32>
      %cst_102 = arith.constant 1.000000e+00 : f32
      %208 = vector.broadcast %cst_102 : f32 to vector<8x32xf32>
      %209 = arith.addf %208, %207 : vector<8x32xf32>
      %210 = arith.divf %208, %209 : vector<8x32xf32>
      %211 = vector.extract_strided_slice %198 {offsets = [0, 64], sizes = [8, 32], strides = [1, 1]} : vector<8x128xf32> to vector<8x32xf32>
      %212 = math.tanh %211 : vector<8x32xf32>
      %213 = vector.extract_strided_slice %198 {offsets = [0, 96], sizes = [8, 32], strides = [1, 1]} : vector<8x128xf32> to vector<8x32xf32>
      %214 = arith.negf %213 : vector<8x32xf32>
      %215 = math.exp %214 : vector<8x32xf32>
      %cst_103 = arith.constant 1.000000e+00 : f32
      %216 = vector.broadcast %cst_103 : f32 to vector<8x32xf32>
      %217 = arith.addf %216, %215 : vector<8x32xf32>
      %218 = arith.divf %216, %217 : vector<8x32xf32>
      %c0_104 = arith.constant 0 : index
      %c0_105 = arith.constant 0 : index
      %219 = vector.load %arg9[%c0_104, %c0_105] : memref<8x32xf32, #tpu.memory_space<vmem>>, vector<8x32xf32>
      %220 = arith.mulf %210, %219 : vector<8x32xf32>
      %221 = arith.mulf %204, %212 : vector<8x32xf32>
      %222 = arith.addf %220, %221 : vector<8x32xf32>
      %223 = math.tanh %222 : vector<8x32xf32>
      %224 = arith.mulf %218, %223 : vector<8x32xf32>
      %c0_106 = arith.constant 0 : index
      %c0_107 = arith.constant 0 : index
      %225 = vector.load %arg8[%c0_106, %c0_107] : memref<8x32xf32, #tpu.memory_space<vmem>>, vector<8x32xf32>
      tpu.vector_store %arg8[%c0_106, %c0_107], %224 {strides = array<i32>} : memref<8x32xf32, #tpu.memory_space<vmem>>, vector<8x32xf32>,
      %c0_108 = arith.constant 0 : index
      %c0_109 = arith.constant 0 : index
      %226 = vector.load %arg9[%c0_108, %c0_109] : memref<8x32xf32, #tpu.memory_space<vmem>>, vector<8x32xf32>
      tpu.vector_store %arg9[%c0_108, %c0_109], %222 {strides = array<i32>} : memref<8x32xf32, #tpu.memory_space<vmem>>, vector<8x32xf32>,
      %c0_110 = arith.constant 0 : index
      %c40_111 = arith.constant 40 : index
      %c0_112 = arith.constant 0 : index
      %227 = vector.load %arg6[%c0_110, %c40_111, %c0_112] : memref<1x64x32xf32, #tpu.memory_space<vmem>>, vector<1x8x32xf32>
      %228 = vector.shape_cast %227 : vector<1x8x32xf32> to vector<8x32xf32>
      %229 = vector.shape_cast %224 : vector<8x32xf32> to vector<1x8x32xf32>
      tpu.vector_store %arg6[%c0_110, %c40_111, %c0_112], %229 {strides = array<i32>} : memref<1x64x32xf32, #tpu.memory_space<vmem>>, vector<1x8x32xf32>,
      %c48 = arith.constant 48 : index
      %c0_113 = arith.constant 0 : index
      %230 = vector.load %arg7[%c48, %c0_113] : memref<64x128xf32, #tpu.memory_space<vmem>>, vector<8x128xf32>
      %c0_114 = arith.constant 0 : index
      %c0_115 = arith.constant 0 : index
      %231 = vector.load %arg8[%c0_114, %c0_115] : memref<8x32xf32, #tpu.memory_space<vmem>>, vector<8x32xf32>
      %cst_116 = arith.constant dense<0.000000e+00> : vector<8x128xf32>
      %232 = tpu.matmul %231, %13, %cst_116 {dimension_numbers = #tpu.dot_dimension_numbers<[1], [0], [0], [1], [0, 0, 1, 1], [], []>} : vector<8x32xf32>, vector<32x128xf32>, vector<8x128xf32> -> vector<8x128xf32>
      %233 = arith.addf %230, %232 : vector<8x128xf32>
      %234 = vector.extract_strided_slice %233 {offsets = [0, 0], sizes = [8, 32], strides = [1, 1]} : vector<8x128xf32> to vector<8x32xf32>
      %235 = arith.negf %234 : vector<8x32xf32>
      %236 = math.exp %235 : vector<8x32xf32>
      %cst_117 = arith.constant 1.000000e+00 : f32
      %237 = vector.broadcast %cst_117 : f32 to vector<8x32xf32>
      %238 = arith.addf %237, %236 : vector<8x32xf32>
      %239 = arith.divf %237, %238 : vector<8x32xf32>
      %240 = vector.extract_strided_slice %233 {offsets = [0, 32], sizes = [8, 32], strides = [1, 1]} : vector<8x128xf32> to vector<8x32xf32>
      %241 = arith.negf %240 : vector<8x32xf32>
      %242 = math.exp %241 : vector<8x32xf32>
      %cst_118 = arith.constant 1.000000e+00 : f32
      %243 = vector.broadcast %cst_118 : f32 to vector<8x32xf32>
      %244 = arith.addf %243, %242 : vector<8x32xf32>
      %245 = arith.divf %243, %244 : vector<8x32xf32>
      %246 = vector.extract_strided_slice %233 {offsets = [0, 64], sizes = [8, 32], strides = [1, 1]} : vector<8x128xf32> to vector<8x32xf32>
      %247 = math.tanh %246 : vector<8x32xf32>
      %248 = vector.extract_strided_slice %233 {offsets = [0, 96], sizes = [8, 32], strides = [1, 1]} : vector<8x128xf32> to vector<8x32xf32>
      %249 = arith.negf %248 : vector<8x32xf32>
      %250 = math.exp %249 : vector<8x32xf32>
      %cst_119 = arith.constant 1.000000e+00 : f32
      %251 = vector.broadcast %cst_119 : f32 to vector<8x32xf32>
      %252 = arith.addf %251, %250 : vector<8x32xf32>
      %253 = arith.divf %251, %252 : vector<8x32xf32>
      %c0_120 = arith.constant 0 : index
      %c0_121 = arith.constant 0 : index
      %254 = vector.load %arg9[%c0_120, %c0_121] : memref<8x32xf32, #tpu.memory_space<vmem>>, vector<8x32xf32>
      %255 = arith.mulf %245, %254 : vector<8x32xf32>
      %256 = arith.mulf %239, %247 : vector<8x32xf32>
      %257 = arith.addf %255, %256 : vector<8x32xf32>
      %258 = math.tanh %257 : vector<8x32xf32>
      %259 = arith.mulf %253, %258 : vector<8x32xf32>
      %c0_122 = arith.constant 0 : index
      %c0_123 = arith.constant 0 : index
      %260 = vector.load %arg8[%c0_122, %c0_123] : memref<8x32xf32, #tpu.memory_space<vmem>>, vector<8x32xf32>
      tpu.vector_store %arg8[%c0_122, %c0_123], %259 {strides = array<i32>} : memref<8x32xf32, #tpu.memory_space<vmem>>, vector<8x32xf32>,
      %c0_124 = arith.constant 0 : index
      %c0_125 = arith.constant 0 : index
      %261 = vector.load %arg9[%c0_124, %c0_125] : memref<8x32xf32, #tpu.memory_space<vmem>>, vector<8x32xf32>
      tpu.vector_store %arg9[%c0_124, %c0_125], %257 {strides = array<i32>} : memref<8x32xf32, #tpu.memory_space<vmem>>, vector<8x32xf32>,
      %c0_126 = arith.constant 0 : index
      %c48_127 = arith.constant 48 : index
      %c0_128 = arith.constant 0 : index
      %262 = vector.load %arg6[%c0_126, %c48_127, %c0_128] : memref<1x64x32xf32, #tpu.memory_space<vmem>>, vector<1x8x32xf32>
      %263 = vector.shape_cast %262 : vector<1x8x32xf32> to vector<8x32xf32>
      %264 = vector.shape_cast %259 : vector<8x32xf32> to vector<1x8x32xf32>
      tpu.vector_store %arg6[%c0_126, %c48_127, %c0_128], %264 {strides = array<i32>} : memref<1x64x32xf32, #tpu.memory_space<vmem>>, vector<1x8x32xf32>,
      %c56 = arith.constant 56 : index
      %c0_129 = arith.constant 0 : index
      %265 = vector.load %arg7[%c56, %c0_129] : memref<64x128xf32, #tpu.memory_space<vmem>>, vector<8x128xf32>
      %c0_130 = arith.constant 0 : index
      %c0_131 = arith.constant 0 : index
      %266 = vector.load %arg8[%c0_130, %c0_131] : memref<8x32xf32, #tpu.memory_space<vmem>>, vector<8x32xf32>
      %cst_132 = arith.constant dense<0.000000e+00> : vector<8x128xf32>
      %267 = tpu.matmul %266, %13, %cst_132 {dimension_numbers = #tpu.dot_dimension_numbers<[1], [0], [0], [1], [0, 0, 1, 1], [], []>} : vector<8x32xf32>, vector<32x128xf32>, vector<8x128xf32> -> vector<8x128xf32>
      %268 = arith.addf %265, %267 : vector<8x128xf32>
      %269 = vector.extract_strided_slice %268 {offsets = [0, 0], sizes = [8, 32], strides = [1, 1]} : vector<8x128xf32> to vector<8x32xf32>
      %270 = arith.negf %269 : vector<8x32xf32>
      %271 = math.exp %270 : vector<8x32xf32>
      %cst_133 = arith.constant 1.000000e+00 : f32
      %272 = vector.broadcast %cst_133 : f32 to vector<8x32xf32>
      %273 = arith.addf %272, %271 : vector<8x32xf32>
      %274 = arith.divf %272, %273 : vector<8x32xf32>
      %275 = vector.extract_strided_slice %268 {offsets = [0, 32], sizes = [8, 32], strides = [1, 1]} : vector<8x128xf32> to vector<8x32xf32>
      %276 = arith.negf %275 : vector<8x32xf32>
      %277 = math.exp %276 : vector<8x32xf32>
      %cst_134 = arith.constant 1.000000e+00 : f32
      %278 = vector.broadcast %cst_134 : f32 to vector<8x32xf32>
      %279 = arith.addf %278, %277 : vector<8x32xf32>
      %280 = arith.divf %278, %279 : vector<8x32xf32>
      %281 = vector.extract_strided_slice %268 {offsets = [0, 64], sizes = [8, 32], strides = [1, 1]} : vector<8x128xf32> to vector<8x32xf32>
      %282 = math.tanh %281 : vector<8x32xf32>
      %283 = vector.extract_strided_slice %268 {offsets = [0, 96], sizes = [8, 32], strides = [1, 1]} : vector<8x128xf32> to vector<8x32xf32>
      %284 = arith.negf %283 : vector<8x32xf32>
      %285 = math.exp %284 : vector<8x32xf32>
      %cst_135 = arith.constant 1.000000e+00 : f32
      %286 = vector.broadcast %cst_135 : f32 to vector<8x32xf32>
      %287 = arith.addf %286, %285 : vector<8x32xf32>
      %288 = arith.divf %286, %287 : vector<8x32xf32>
      %c0_136 = arith.constant 0 : index
      %c0_137 = arith.constant 0 : index
      %289 = vector.load %arg9[%c0_136, %c0_137] : memref<8x32xf32, #tpu.memory_space<vmem>>, vector<8x32xf32>
      %290 = arith.mulf %280, %289 : vector<8x32xf32>
      %291 = arith.mulf %274, %282 : vector<8x32xf32>
      %292 = arith.addf %290, %291 : vector<8x32xf32>
      %293 = math.tanh %292 : vector<8x32xf32>
      %294 = arith.mulf %288, %293 : vector<8x32xf32>
      %c0_138 = arith.constant 0 : index
      %c0_139 = arith.constant 0 : index
      %295 = vector.load %arg8[%c0_138, %c0_139] : memref<8x32xf32, #tpu.memory_space<vmem>>, vector<8x32xf32>
      tpu.vector_store %arg8[%c0_138, %c0_139], %294 {strides = array<i32>} : memref<8x32xf32, #tpu.memory_space<vmem>>, vector<8x32xf32>,
      %c0_140 = arith.constant 0 : index
      %c0_141 = arith.constant 0 : index
      %296 = vector.load %arg9[%c0_140, %c0_141] : memref<8x32xf32, #tpu.memory_space<vmem>>, vector<8x32xf32>
      tpu.vector_store %arg9[%c0_140, %c0_141], %292 {strides = array<i32>} : memref<8x32xf32, #tpu.memory_space<vmem>>, vector<8x32xf32>,
      %c0_142 = arith.constant 0 : index
      %c56_143 = arith.constant 56 : index
      %c0_144 = arith.constant 0 : index
      %297 = vector.load %arg6[%c0_142, %c56_143, %c0_144] : memref<1x64x32xf32, #tpu.memory_space<vmem>>, vector<1x8x32xf32>
      %298 = vector.shape_cast %297 : vector<1x8x32xf32> to vector<8x32xf32>
      %299 = vector.shape_cast %294 : vector<8x32xf32> to vector<1x8x32xf32>
      tpu.vector_store %arg6[%c0_142, %c56_143, %c0_144], %299 {strides = array<i32>} : memref<1x64x32xf32, #tpu.memory_space<vmem>>, vector<1x8x32xf32>,
    } else {
    }
    %c1_i32 = arith.constant 1 : i32
    %17 = arith.cmpi eq, %arg0, %c1_i32 : i32
    %18 = arith.extui %17 : i1 to i32
    %c0_i32_15 = arith.constant 0 : i32
    %19 = arith.cmpi ne, %18, %c0_i32_15 : i32
    scf.if %19 {
      %c56 = arith.constant 56 : index
      %c0_16 = arith.constant 0 : index
      %20 = vector.load %arg7[%c56, %c0_16] : memref<64x128xf32, #tpu.memory_space<vmem>>, vector<8x128xf32>
      %c0_17 = arith.constant 0 : index
      %c0_18 = arith.constant 0 : index
      %21 = vector.load %arg8[%c0_17, %c0_18] : memref<8x32xf32, #tpu.memory_space<vmem>>, vector<8x32xf32>
      %cst_19 = arith.constant dense<0.000000e+00> : vector<8x128xf32>
      %22 = tpu.matmul %21, %13, %cst_19 {dimension_numbers = #tpu.dot_dimension_numbers<[1], [0], [0], [1], [0, 0, 1, 1], [], []>} : vector<8x32xf32>, vector<32x128xf32>, vector<8x128xf32> -> vector<8x128xf32>
      %23 = arith.addf %20, %22 : vector<8x128xf32>
      %24 = vector.extract_strided_slice %23 {offsets = [0, 0], sizes = [8, 32], strides = [1, 1]} : vector<8x128xf32> to vector<8x32xf32>
      %25 = arith.negf %24 : vector<8x32xf32>
      %26 = math.exp %25 : vector<8x32xf32>
      %cst_20 = arith.constant 1.000000e+00 : f32
      %27 = vector.broadcast %cst_20 : f32 to vector<8x32xf32>
      %28 = arith.addf %27, %26 : vector<8x32xf32>
      %29 = arith.divf %27, %28 : vector<8x32xf32>
      %30 = vector.extract_strided_slice %23 {offsets = [0, 32], sizes = [8, 32], strides = [1, 1]} : vector<8x128xf32> to vector<8x32xf32>
      %31 = arith.negf %30 : vector<8x32xf32>
      %32 = math.exp %31 : vector<8x32xf32>
      %cst_21 = arith.constant 1.000000e+00 : f32
      %33 = vector.broadcast %cst_21 : f32 to vector<8x32xf32>
      %34 = arith.addf %33, %32 : vector<8x32xf32>
      %35 = arith.divf %33, %34 : vector<8x32xf32>
      %36 = vector.extract_strided_slice %23 {offsets = [0, 64], sizes = [8, 32], strides = [1, 1]} : vector<8x128xf32> to vector<8x32xf32>
      %37 = math.tanh %36 : vector<8x32xf32>
      %38 = vector.extract_strided_slice %23 {offsets = [0, 96], sizes = [8, 32], strides = [1, 1]} : vector<8x128xf32> to vector<8x32xf32>
      %39 = arith.negf %38 : vector<8x32xf32>
      %40 = math.exp %39 : vector<8x32xf32>
      %cst_22 = arith.constant 1.000000e+00 : f32
      %41 = vector.broadcast %cst_22 : f32 to vector<8x32xf32>
      %42 = arith.addf %41, %40 : vector<8x32xf32>
      %43 = arith.divf %41, %42 : vector<8x32xf32>
      %c0_23 = arith.constant 0 : index
      %c0_24 = arith.constant 0 : index
      %44 = vector.load %arg9[%c0_23, %c0_24] : memref<8x32xf32, #tpu.memory_space<vmem>>, vector<8x32xf32>
      %45 = arith.mulf %35, %44 : vector<8x32xf32>
      %46 = arith.mulf %29, %37 : vector<8x32xf32>
      %47 = arith.addf %45, %46 : vector<8x32xf32>
      %48 = math.tanh %47 : vector<8x32xf32>
      %49 = arith.mulf %43, %48 : vector<8x32xf32>
      %c0_25 = arith.constant 0 : index
      %c0_26 = arith.constant 0 : index
      %50 = vector.load %arg8[%c0_25, %c0_26] : memref<8x32xf32, #tpu.memory_space<vmem>>, vector<8x32xf32>
      tpu.vector_store %arg8[%c0_25, %c0_26], %49 {strides = array<i32>} : memref<8x32xf32, #tpu.memory_space<vmem>>, vector<8x32xf32>,
      %c0_27 = arith.constant 0 : index
      %c0_28 = arith.constant 0 : index
      %51 = vector.load %arg9[%c0_27, %c0_28] : memref<8x32xf32, #tpu.memory_space<vmem>>, vector<8x32xf32>
      tpu.vector_store %arg9[%c0_27, %c0_28], %47 {strides = array<i32>} : memref<8x32xf32, #tpu.memory_space<vmem>>, vector<8x32xf32>,
      %c0_29 = arith.constant 0 : index
      %c56_30 = arith.constant 56 : index
      %c0_31 = arith.constant 0 : index
      %52 = vector.load %arg6[%c0_29, %c56_30, %c0_31] : memref<1x64x32xf32, #tpu.memory_space<vmem>>, vector<1x8x32xf32>
      %53 = vector.shape_cast %52 : vector<1x8x32xf32> to vector<8x32xf32>
      %54 = vector.shape_cast %49 : vector<8x32xf32> to vector<1x8x32xf32>
      tpu.vector_store %arg6[%c0_29, %c56_30, %c0_31], %54 {strides = array<i32>} : memref<1x64x32xf32, #tpu.memory_space<vmem>>, vector<1x8x32xf32>,
      %c48 = arith.constant 48 : index
      %c0_32 = arith.constant 0 : index
      %55 = vector.load %arg7[%c48, %c0_32] : memref<64x128xf32, #tpu.memory_space<vmem>>, vector<8x128xf32>
      %c0_33 = arith.constant 0 : index
      %c0_34 = arith.constant 0 : index
      %56 = vector.load %arg8[%c0_33, %c0_34] : memref<8x32xf32, #tpu.memory_space<vmem>>, vector<8x32xf32>
      %cst_35 = arith.constant dense<0.000000e+00> : vector<8x128xf32>
      %57 = tpu.matmul %56, %13, %cst_35 {dimension_numbers = #tpu.dot_dimension_numbers<[1], [0], [0], [1], [0, 0, 1, 1], [], []>} : vector<8x32xf32>, vector<32x128xf32>, vector<8x128xf32> -> vector<8x128xf32>
      %58 = arith.addf %55, %57 : vector<8x128xf32>
      %59 = vector.extract_strided_slice %58 {offsets = [0, 0], sizes = [8, 32], strides = [1, 1]} : vector<8x128xf32> to vector<8x32xf32>
      %60 = arith.negf %59 : vector<8x32xf32>
      %61 = math.exp %60 : vector<8x32xf32>
      %cst_36 = arith.constant 1.000000e+00 : f32
      %62 = vector.broadcast %cst_36 : f32 to vector<8x32xf32>
      %63 = arith.addf %62, %61 : vector<8x32xf32>
      %64 = arith.divf %62, %63 : vector<8x32xf32>
      %65 = vector.extract_strided_slice %58 {offsets = [0, 32], sizes = [8, 32], strides = [1, 1]} : vector<8x128xf32> to vector<8x32xf32>
      %66 = arith.negf %65 : vector<8x32xf32>
      %67 = math.exp %66 : vector<8x32xf32>
      %cst_37 = arith.constant 1.000000e+00 : f32
      %68 = vector.broadcast %cst_37 : f32 to vector<8x32xf32>
      %69 = arith.addf %68, %67 : vector<8x32xf32>
      %70 = arith.divf %68, %69 : vector<8x32xf32>
      %71 = vector.extract_strided_slice %58 {offsets = [0, 64], sizes = [8, 32], strides = [1, 1]} : vector<8x128xf32> to vector<8x32xf32>
      %72 = math.tanh %71 : vector<8x32xf32>
      %73 = vector.extract_strided_slice %58 {offsets = [0, 96], sizes = [8, 32], strides = [1, 1]} : vector<8x128xf32> to vector<8x32xf32>
      %74 = arith.negf %73 : vector<8x32xf32>
      %75 = math.exp %74 : vector<8x32xf32>
      %cst_38 = arith.constant 1.000000e+00 : f32
      %76 = vector.broadcast %cst_38 : f32 to vector<8x32xf32>
      %77 = arith.addf %76, %75 : vector<8x32xf32>
      %78 = arith.divf %76, %77 : vector<8x32xf32>
      %c0_39 = arith.constant 0 : index
      %c0_40 = arith.constant 0 : index
      %79 = vector.load %arg9[%c0_39, %c0_40] : memref<8x32xf32, #tpu.memory_space<vmem>>, vector<8x32xf32>
      %80 = arith.mulf %70, %79 : vector<8x32xf32>
      %81 = arith.mulf %64, %72 : vector<8x32xf32>
      %82 = arith.addf %80, %81 : vector<8x32xf32>
      %83 = math.tanh %82 : vector<8x32xf32>
      %84 = arith.mulf %78, %83 : vector<8x32xf32>
      %c0_41 = arith.constant 0 : index
      %c0_42 = arith.constant 0 : index
      %85 = vector.load %arg8[%c0_41, %c0_42] : memref<8x32xf32, #tpu.memory_space<vmem>>, vector<8x32xf32>
      tpu.vector_store %arg8[%c0_41, %c0_42], %84 {strides = array<i32>} : memref<8x32xf32, #tpu.memory_space<vmem>>, vector<8x32xf32>,
      %c0_43 = arith.constant 0 : index
      %c0_44 = arith.constant 0 : index
      %86 = vector.load %arg9[%c0_43, %c0_44] : memref<8x32xf32, #tpu.memory_space<vmem>>, vector<8x32xf32>
      tpu.vector_store %arg9[%c0_43, %c0_44], %82 {strides = array<i32>} : memref<8x32xf32, #tpu.memory_space<vmem>>, vector<8x32xf32>,
      %c0_45 = arith.constant 0 : index
      %c48_46 = arith.constant 48 : index
      %c0_47 = arith.constant 0 : index
      %87 = vector.load %arg6[%c0_45, %c48_46, %c0_47] : memref<1x64x32xf32, #tpu.memory_space<vmem>>, vector<1x8x32xf32>
      %88 = vector.shape_cast %87 : vector<1x8x32xf32> to vector<8x32xf32>
      %89 = vector.shape_cast %84 : vector<8x32xf32> to vector<1x8x32xf32>
      tpu.vector_store %arg6[%c0_45, %c48_46, %c0_47], %89 {strides = array<i32>} : memref<1x64x32xf32, #tpu.memory_space<vmem>>, vector<1x8x32xf32>,
      %c40 = arith.constant 40 : index
      %c0_48 = arith.constant 0 : index
      %90 = vector.load %arg7[%c40, %c0_48] : memref<64x128xf32, #tpu.memory_space<vmem>>, vector<8x128xf32>
      %c0_49 = arith.constant 0 : index
      %c0_50 = arith.constant 0 : index
      %91 = vector.load %arg8[%c0_49, %c0_50] : memref<8x32xf32, #tpu.memory_space<vmem>>, vector<8x32xf32>
      %cst_51 = arith.constant dense<0.000000e+00> : vector<8x128xf32>
      %92 = tpu.matmul %91, %13, %cst_51 {dimension_numbers = #tpu.dot_dimension_numbers<[1], [0], [0], [1], [0, 0, 1, 1], [], []>} : vector<8x32xf32>, vector<32x128xf32>, vector<8x128xf32> -> vector<8x128xf32>
      %93 = arith.addf %90, %92 : vector<8x128xf32>
      %94 = vector.extract_strided_slice %93 {offsets = [0, 0], sizes = [8, 32], strides = [1, 1]} : vector<8x128xf32> to vector<8x32xf32>
      %95 = arith.negf %94 : vector<8x32xf32>
      %96 = math.exp %95 : vector<8x32xf32>
      %cst_52 = arith.constant 1.000000e+00 : f32
      %97 = vector.broadcast %cst_52 : f32 to vector<8x32xf32>
      %98 = arith.addf %97, %96 : vector<8x32xf32>
      %99 = arith.divf %97, %98 : vector<8x32xf32>
      %100 = vector.extract_strided_slice %93 {offsets = [0, 32], sizes = [8, 32], strides = [1, 1]} : vector<8x128xf32> to vector<8x32xf32>
      %101 = arith.negf %100 : vector<8x32xf32>
      %102 = math.exp %101 : vector<8x32xf32>
      %cst_53 = arith.constant 1.000000e+00 : f32
      %103 = vector.broadcast %cst_53 : f32 to vector<8x32xf32>
      %104 = arith.addf %103, %102 : vector<8x32xf32>
      %105 = arith.divf %103, %104 : vector<8x32xf32>
      %106 = vector.extract_strided_slice %93 {offsets = [0, 64], sizes = [8, 32], strides = [1, 1]} : vector<8x128xf32> to vector<8x32xf32>
      %107 = math.tanh %106 : vector<8x32xf32>
      %108 = vector.extract_strided_slice %93 {offsets = [0, 96], sizes = [8, 32], strides = [1, 1]} : vector<8x128xf32> to vector<8x32xf32>
      %109 = arith.negf %108 : vector<8x32xf32>
      %110 = math.exp %109 : vector<8x32xf32>
      %cst_54 = arith.constant 1.000000e+00 : f32
      %111 = vector.broadcast %cst_54 : f32 to vector<8x32xf32>
      %112 = arith.addf %111, %110 : vector<8x32xf32>
      %113 = arith.divf %111, %112 : vector<8x32xf32>
      %c0_55 = arith.constant 0 : index
      %c0_56 = arith.constant 0 : index
      %114 = vector.load %arg9[%c0_55, %c0_56] : memref<8x32xf32, #tpu.memory_space<vmem>>, vector<8x32xf32>
      %115 = arith.mulf %105, %114 : vector<8x32xf32>
      %116 = arith.mulf %99, %107 : vector<8x32xf32>
      %117 = arith.addf %115, %116 : vector<8x32xf32>
      %118 = math.tanh %117 : vector<8x32xf32>
      %119 = arith.mulf %113, %118 : vector<8x32xf32>
      %c0_57 = arith.constant 0 : index
      %c0_58 = arith.constant 0 : index
      %120 = vector.load %arg8[%c0_57, %c0_58] : memref<8x32xf32, #tpu.memory_space<vmem>>, vector<8x32xf32>
      tpu.vector_store %arg8[%c0_57, %c0_58], %119 {strides = array<i32>} : memref<8x32xf32, #tpu.memory_space<vmem>>, vector<8x32xf32>,
      %c0_59 = arith.constant 0 : index
      %c0_60 = arith.constant 0 : index
      %121 = vector.load %arg9[%c0_59, %c0_60] : memref<8x32xf32, #tpu.memory_space<vmem>>, vector<8x32xf32>
      tpu.vector_store %arg9[%c0_59, %c0_60], %117 {strides = array<i32>} : memref<8x32xf32, #tpu.memory_space<vmem>>, vector<8x32xf32>,
      %c0_61 = arith.constant 0 : index
      %c40_62 = arith.constant 40 : index
      %c0_63 = arith.constant 0 : index
      %122 = vector.load %arg6[%c0_61, %c40_62, %c0_63] : memref<1x64x32xf32, #tpu.memory_space<vmem>>, vector<1x8x32xf32>
      %123 = vector.shape_cast %122 : vector<1x8x32xf32> to vector<8x32xf32>
      %124 = vector.shape_cast %119 : vector<8x32xf32> to vector<1x8x32xf32>
      tpu.vector_store %arg6[%c0_61, %c40_62, %c0_63], %124 {strides = array<i32>} : memref<1x64x32xf32, #tpu.memory_space<vmem>>, vector<1x8x32xf32>,
      %c32 = arith.constant 32 : index
      %c0_64 = arith.constant 0 : index
      %125 = vector.load %arg7[%c32, %c0_64] : memref<64x128xf32, #tpu.memory_space<vmem>>, vector<8x128xf32>
      %c0_65 = arith.constant 0 : index
      %c0_66 = arith.constant 0 : index
      %126 = vector.load %arg8[%c0_65, %c0_66] : memref<8x32xf32, #tpu.memory_space<vmem>>, vector<8x32xf32>
      %cst_67 = arith.constant dense<0.000000e+00> : vector<8x128xf32>
      %127 = tpu.matmul %126, %13, %cst_67 {dimension_numbers = #tpu.dot_dimension_numbers<[1], [0], [0], [1], [0, 0, 1, 1], [], []>} : vector<8x32xf32>, vector<32x128xf32>, vector<8x128xf32> -> vector<8x128xf32>
      %128 = arith.addf %125, %127 : vector<8x128xf32>
      %129 = vector.extract_strided_slice %128 {offsets = [0, 0], sizes = [8, 32], strides = [1, 1]} : vector<8x128xf32> to vector<8x32xf32>
      %130 = arith.negf %129 : vector<8x32xf32>
      %131 = math.exp %130 : vector<8x32xf32>
      %cst_68 = arith.constant 1.000000e+00 : f32
      %132 = vector.broadcast %cst_68 : f32 to vector<8x32xf32>
      %133 = arith.addf %132, %131 : vector<8x32xf32>
      %134 = arith.divf %132, %133 : vector<8x32xf32>
      %135 = vector.extract_strided_slice %128 {offsets = [0, 32], sizes = [8, 32], strides = [1, 1]} : vector<8x128xf32> to vector<8x32xf32>
      %136 = arith.negf %135 : vector<8x32xf32>
      %137 = math.exp %136 : vector<8x32xf32>
      %cst_69 = arith.constant 1.000000e+00 : f32
      %138 = vector.broadcast %cst_69 : f32 to vector<8x32xf32>
      %139 = arith.addf %138, %137 : vector<8x32xf32>
      %140 = arith.divf %138, %139 : vector<8x32xf32>
      %141 = vector.extract_strided_slice %128 {offsets = [0, 64], sizes = [8, 32], strides = [1, 1]} : vector<8x128xf32> to vector<8x32xf32>
      %142 = math.tanh %141 : vector<8x32xf32>
      %143 = vector.extract_strided_slice %128 {offsets = [0, 96], sizes = [8, 32], strides = [1, 1]} : vector<8x128xf32> to vector<8x32xf32>
      %144 = arith.negf %143 : vector<8x32xf32>
      %145 = math.exp %144 : vector<8x32xf32>
      %cst_70 = arith.constant 1.000000e+00 : f32
      %146 = vector.broadcast %cst_70 : f32 to vector<8x32xf32>
      %147 = arith.addf %146, %145 : vector<8x32xf32>
      %148 = arith.divf %146, %147 : vector<8x32xf32>
      %c0_71 = arith.constant 0 : index
      %c0_72 = arith.constant 0 : index
      %149 = vector.load %arg9[%c0_71, %c0_72] : memref<8x32xf32, #tpu.memory_space<vmem>>, vector<8x32xf32>
      %150 = arith.mulf %140, %149 : vector<8x32xf32>
      %151 = arith.mulf %134, %142 : vector<8x32xf32>
      %152 = arith.addf %150, %151 : vector<8x32xf32>
      %153 = math.tanh %152 : vector<8x32xf32>
      %154 = arith.mulf %148, %153 : vector<8x32xf32>
      %c0_73 = arith.constant 0 : index
      %c0_74 = arith.constant 0 : index
      %155 = vector.load %arg8[%c0_73, %c0_74] : memref<8x32xf32, #tpu.memory_space<vmem>>, vector<8x32xf32>
      tpu.vector_store %arg8[%c0_73, %c0_74], %154 {strides = array<i32>} : memref<8x32xf32, #tpu.memory_space<vmem>>, vector<8x32xf32>,
      %c0_75 = arith.constant 0 : index
      %c0_76 = arith.constant 0 : index
      %156 = vector.load %arg9[%c0_75, %c0_76] : memref<8x32xf32, #tpu.memory_space<vmem>>, vector<8x32xf32>
      tpu.vector_store %arg9[%c0_75, %c0_76], %152 {strides = array<i32>} : memref<8x32xf32, #tpu.memory_space<vmem>>, vector<8x32xf32>,
      %c0_77 = arith.constant 0 : index
      %c32_78 = arith.constant 32 : index
      %c0_79 = arith.constant 0 : index
      %157 = vector.load %arg6[%c0_77, %c32_78, %c0_79] : memref<1x64x32xf32, #tpu.memory_space<vmem>>, vector<1x8x32xf32>
      %158 = vector.shape_cast %157 : vector<1x8x32xf32> to vector<8x32xf32>
      %159 = vector.shape_cast %154 : vector<8x32xf32> to vector<1x8x32xf32>
      tpu.vector_store %arg6[%c0_77, %c32_78, %c0_79], %159 {strides = array<i32>} : memref<1x64x32xf32, #tpu.memory_space<vmem>>, vector<1x8x32xf32>,
      %c24 = arith.constant 24 : index
      %c0_80 = arith.constant 0 : index
      %160 = vector.load %arg7[%c24, %c0_80] : memref<64x128xf32, #tpu.memory_space<vmem>>, vector<8x128xf32>
      %c0_81 = arith.constant 0 : index
      %c0_82 = arith.constant 0 : index
      %161 = vector.load %arg8[%c0_81, %c0_82] : memref<8x32xf32, #tpu.memory_space<vmem>>, vector<8x32xf32>
      %cst_83 = arith.constant dense<0.000000e+00> : vector<8x128xf32>
      %162 = tpu.matmul %161, %13, %cst_83 {dimension_numbers = #tpu.dot_dimension_numbers<[1], [0], [0], [1], [0, 0, 1, 1], [], []>} : vector<8x32xf32>, vector<32x128xf32>, vector<8x128xf32> -> vector<8x128xf32>
      %163 = arith.addf %160, %162 : vector<8x128xf32>
      %164 = vector.extract_strided_slice %163 {offsets = [0, 0], sizes = [8, 32], strides = [1, 1]} : vector<8x128xf32> to vector<8x32xf32>
      %165 = arith.negf %164 : vector<8x32xf32>
      %166 = math.exp %165 : vector<8x32xf32>
      %cst_84 = arith.constant 1.000000e+00 : f32
      %167 = vector.broadcast %cst_84 : f32 to vector<8x32xf32>
      %168 = arith.addf %167, %166 : vector<8x32xf32>
      %169 = arith.divf %167, %168 : vector<8x32xf32>
      %170 = vector.extract_strided_slice %163 {offsets = [0, 32], sizes = [8, 32], strides = [1, 1]} : vector<8x128xf32> to vector<8x32xf32>
      %171 = arith.negf %170 : vector<8x32xf32>
      %172 = math.exp %171 : vector<8x32xf32>
      %cst_85 = arith.constant 1.000000e+00 : f32
      %173 = vector.broadcast %cst_85 : f32 to vector<8x32xf32>
      %174 = arith.addf %173, %172 : vector<8x32xf32>
      %175 = arith.divf %173, %174 : vector<8x32xf32>
      %176 = vector.extract_strided_slice %163 {offsets = [0, 64], sizes = [8, 32], strides = [1, 1]} : vector<8x128xf32> to vector<8x32xf32>
      %177 = math.tanh %176 : vector<8x32xf32>
      %178 = vector.extract_strided_slice %163 {offsets = [0, 96], sizes = [8, 32], strides = [1, 1]} : vector<8x128xf32> to vector<8x32xf32>
      %179 = arith.negf %178 : vector<8x32xf32>
      %180 = math.exp %179 : vector<8x32xf32>
      %cst_86 = arith.constant 1.000000e+00 : f32
      %181 = vector.broadcast %cst_86 : f32 to vector<8x32xf32>
      %182 = arith.addf %181, %180 : vector<8x32xf32>
      %183 = arith.divf %181, %182 : vector<8x32xf32>
      %c0_87 = arith.constant 0 : index
      %c0_88 = arith.constant 0 : index
      %184 = vector.load %arg9[%c0_87, %c0_88] : memref<8x32xf32, #tpu.memory_space<vmem>>, vector<8x32xf32>
      %185 = arith.mulf %175, %184 : vector<8x32xf32>
      %186 = arith.mulf %169, %177 : vector<8x32xf32>
      %187 = arith.addf %185, %186 : vector<8x32xf32>
      %188 = math.tanh %187 : vector<8x32xf32>
      %189 = arith.mulf %183, %188 : vector<8x32xf32>
      %c0_89 = arith.constant 0 : index
      %c0_90 = arith.constant 0 : index
      %190 = vector.load %arg8[%c0_89, %c0_90] : memref<8x32xf32, #tpu.memory_space<vmem>>, vector<8x32xf32>
      tpu.vector_store %arg8[%c0_89, %c0_90], %189 {strides = array<i32>} : memref<8x32xf32, #tpu.memory_space<vmem>>, vector<8x32xf32>,
      %c0_91 = arith.constant 0 : index
      %c0_92 = arith.constant 0 : index
      %191 = vector.load %arg9[%c0_91, %c0_92] : memref<8x32xf32, #tpu.memory_space<vmem>>, vector<8x32xf32>
      tpu.vector_store %arg9[%c0_91, %c0_92], %187 {strides = array<i32>} : memref<8x32xf32, #tpu.memory_space<vmem>>, vector<8x32xf32>,
      %c0_93 = arith.constant 0 : index
      %c24_94 = arith.constant 24 : index
      %c0_95 = arith.constant 0 : index
      %192 = vector.load %arg6[%c0_93, %c24_94, %c0_95] : memref<1x64x32xf32, #tpu.memory_space<vmem>>, vector<1x8x32xf32>
      %193 = vector.shape_cast %192 : vector<1x8x32xf32> to vector<8x32xf32>
      %194 = vector.shape_cast %189 : vector<8x32xf32> to vector<1x8x32xf32>
      tpu.vector_store %arg6[%c0_93, %c24_94, %c0_95], %194 {strides = array<i32>} : memref<1x64x32xf32, #tpu.memory_space<vmem>>, vector<1x8x32xf32>,
      %c16 = arith.constant 16 : index
      %c0_96 = arith.constant 0 : index
      %195 = vector.load %arg7[%c16, %c0_96] : memref<64x128xf32, #tpu.memory_space<vmem>>, vector<8x128xf32>
      %c0_97 = arith.constant 0 : index
      %c0_98 = arith.constant 0 : index
      %196 = vector.load %arg8[%c0_97, %c0_98] : memref<8x32xf32, #tpu.memory_space<vmem>>, vector<8x32xf32>
      %cst_99 = arith.constant dense<0.000000e+00> : vector<8x128xf32>
      %197 = tpu.matmul %196, %13, %cst_99 {dimension_numbers = #tpu.dot_dimension_numbers<[1], [0], [0], [1], [0, 0, 1, 1], [], []>} : vector<8x32xf32>, vector<32x128xf32>, vector<8x128xf32> -> vector<8x128xf32>
      %198 = arith.addf %195, %197 : vector<8x128xf32>
      %199 = vector.extract_strided_slice %198 {offsets = [0, 0], sizes = [8, 32], strides = [1, 1]} : vector<8x128xf32> to vector<8x32xf32>
      %200 = arith.negf %199 : vector<8x32xf32>
      %201 = math.exp %200 : vector<8x32xf32>
      %cst_100 = arith.constant 1.000000e+00 : f32
      %202 = vector.broadcast %cst_100 : f32 to vector<8x32xf32>
      %203 = arith.addf %202, %201 : vector<8x32xf32>
      %204 = arith.divf %202, %203 : vector<8x32xf32>
      %205 = vector.extract_strided_slice %198 {offsets = [0, 32], sizes = [8, 32], strides = [1, 1]} : vector<8x128xf32> to vector<8x32xf32>
      %206 = arith.negf %205 : vector<8x32xf32>
      %207 = math.exp %206 : vector<8x32xf32>
      %cst_101 = arith.constant 1.000000e+00 : f32
      %208 = vector.broadcast %cst_101 : f32 to vector<8x32xf32>
      %209 = arith.addf %208, %207 : vector<8x32xf32>
      %210 = arith.divf %208, %209 : vector<8x32xf32>
      %211 = vector.extract_strided_slice %198 {offsets = [0, 64], sizes = [8, 32], strides = [1, 1]} : vector<8x128xf32> to vector<8x32xf32>
      %212 = math.tanh %211 : vector<8x32xf32>
      %213 = vector.extract_strided_slice %198 {offsets = [0, 96], sizes = [8, 32], strides = [1, 1]} : vector<8x128xf32> to vector<8x32xf32>
      %214 = arith.negf %213 : vector<8x32xf32>
      %215 = math.exp %214 : vector<8x32xf32>
      %cst_102 = arith.constant 1.000000e+00 : f32
      %216 = vector.broadcast %cst_102 : f32 to vector<8x32xf32>
      %217 = arith.addf %216, %215 : vector<8x32xf32>
      %218 = arith.divf %216, %217 : vector<8x32xf32>
      %c0_103 = arith.constant 0 : index
      %c0_104 = arith.constant 0 : index
      %219 = vector.load %arg9[%c0_103, %c0_104] : memref<8x32xf32, #tpu.memory_space<vmem>>, vector<8x32xf32>
      %220 = arith.mulf %210, %219 : vector<8x32xf32>
      %221 = arith.mulf %204, %212 : vector<8x32xf32>
      %222 = arith.addf %220, %221 : vector<8x32xf32>
      %223 = math.tanh %222 : vector<8x32xf32>
      %224 = arith.mulf %218, %223 : vector<8x32xf32>
      %c0_105 = arith.constant 0 : index
      %c0_106 = arith.constant 0 : index
      %225 = vector.load %arg8[%c0_105, %c0_106] : memref<8x32xf32, #tpu.memory_space<vmem>>, vector<8x32xf32>
      tpu.vector_store %arg8[%c0_105, %c0_106], %224 {strides = array<i32>} : memref<8x32xf32, #tpu.memory_space<vmem>>, vector<8x32xf32>,
      %c0_107 = arith.constant 0 : index
      %c0_108 = arith.constant 0 : index
      %226 = vector.load %arg9[%c0_107, %c0_108] : memref<8x32xf32, #tpu.memory_space<vmem>>, vector<8x32xf32>
      tpu.vector_store %arg9[%c0_107, %c0_108], %222 {strides = array<i32>} : memref<8x32xf32, #tpu.memory_space<vmem>>, vector<8x32xf32>,
      %c0_109 = arith.constant 0 : index
      %c16_110 = arith.constant 16 : index
      %c0_111 = arith.constant 0 : index
      %227 = vector.load %arg6[%c0_109, %c16_110, %c0_111] : memref<1x64x32xf32, #tpu.memory_space<vmem>>, vector<1x8x32xf32>
      %228 = vector.shape_cast %227 : vector<1x8x32xf32> to vector<8x32xf32>
      %229 = vector.shape_cast %224 : vector<8x32xf32> to vector<1x8x32xf32>
      tpu.vector_store %arg6[%c0_109, %c16_110, %c0_111], %229 {strides = array<i32>} : memref<1x64x32xf32, #tpu.memory_space<vmem>>, vector<1x8x32xf32>,
      %c8 = arith.constant 8 : index
      %c0_112 = arith.constant 0 : index
      %230 = vector.load %arg7[%c8, %c0_112] : memref<64x128xf32, #tpu.memory_space<vmem>>, vector<8x128xf32>
      %c0_113 = arith.constant 0 : index
      %c0_114 = arith.constant 0 : index
      %231 = vector.load %arg8[%c0_113, %c0_114] : memref<8x32xf32, #tpu.memory_space<vmem>>, vector<8x32xf32>
      %cst_115 = arith.constant dense<0.000000e+00> : vector<8x128xf32>
      %232 = tpu.matmul %231, %13, %cst_115 {dimension_numbers = #tpu.dot_dimension_numbers<[1], [0], [0], [1], [0, 0, 1, 1], [], []>} : vector<8x32xf32>, vector<32x128xf32>, vector<8x128xf32> -> vector<8x128xf32>
      %233 = arith.addf %230, %232 : vector<8x128xf32>
      %234 = vector.extract_strided_slice %233 {offsets = [0, 0], sizes = [8, 32], strides = [1, 1]} : vector<8x128xf32> to vector<8x32xf32>
      %235 = arith.negf %234 : vector<8x32xf32>
      %236 = math.exp %235 : vector<8x32xf32>
      %cst_116 = arith.constant 1.000000e+00 : f32
      %237 = vector.broadcast %cst_116 : f32 to vector<8x32xf32>
      %238 = arith.addf %237, %236 : vector<8x32xf32>
      %239 = arith.divf %237, %238 : vector<8x32xf32>
      %240 = vector.extract_strided_slice %233 {offsets = [0, 32], sizes = [8, 32], strides = [1, 1]} : vector<8x128xf32> to vector<8x32xf32>
      %241 = arith.negf %240 : vector<8x32xf32>
      %242 = math.exp %241 : vector<8x32xf32>
      %cst_117 = arith.constant 1.000000e+00 : f32
      %243 = vector.broadcast %cst_117 : f32 to vector<8x32xf32>
      %244 = arith.addf %243, %242 : vector<8x32xf32>
      %245 = arith.divf %243, %244 : vector<8x32xf32>
      %246 = vector.extract_strided_slice %233 {offsets = [0, 64], sizes = [8, 32], strides = [1, 1]} : vector<8x128xf32> to vector<8x32xf32>
      %247 = math.tanh %246 : vector<8x32xf32>
      %248 = vector.extract_strided_slice %233 {offsets = [0, 96], sizes = [8, 32], strides = [1, 1]} : vector<8x128xf32> to vector<8x32xf32>
      %249 = arith.negf %248 : vector<8x32xf32>
      %250 = math.exp %249 : vector<8x32xf32>
      %cst_118 = arith.constant 1.000000e+00 : f32
      %251 = vector.broadcast %cst_118 : f32 to vector<8x32xf32>
      %252 = arith.addf %251, %250 : vector<8x32xf32>
      %253 = arith.divf %251, %252 : vector<8x32xf32>
      %c0_119 = arith.constant 0 : index
      %c0_120 = arith.constant 0 : index
      %254 = vector.load %arg9[%c0_119, %c0_120] : memref<8x32xf32, #tpu.memory_space<vmem>>, vector<8x32xf32>
      %255 = arith.mulf %245, %254 : vector<8x32xf32>
      %256 = arith.mulf %239, %247 : vector<8x32xf32>
      %257 = arith.addf %255, %256 : vector<8x32xf32>
      %258 = math.tanh %257 : vector<8x32xf32>
      %259 = arith.mulf %253, %258 : vector<8x32xf32>
      %c0_121 = arith.constant 0 : index
      %c0_122 = arith.constant 0 : index
      %260 = vector.load %arg8[%c0_121, %c0_122] : memref<8x32xf32, #tpu.memory_space<vmem>>, vector<8x32xf32>
      tpu.vector_store %arg8[%c0_121, %c0_122], %259 {strides = array<i32>} : memref<8x32xf32, #tpu.memory_space<vmem>>, vector<8x32xf32>,
      %c0_123 = arith.constant 0 : index
      %c0_124 = arith.constant 0 : index
      %261 = vector.load %arg9[%c0_123, %c0_124] : memref<8x32xf32, #tpu.memory_space<vmem>>, vector<8x32xf32>
      tpu.vector_store %arg9[%c0_123, %c0_124], %257 {strides = array<i32>} : memref<8x32xf32, #tpu.memory_space<vmem>>, vector<8x32xf32>,
      %c0_125 = arith.constant 0 : index
      %c8_126 = arith.constant 8 : index
      %c0_127 = arith.constant 0 : index
      %262 = vector.load %arg6[%c0_125, %c8_126, %c0_127] : memref<1x64x32xf32, #tpu.memory_space<vmem>>, vector<1x8x32xf32>
      %263 = vector.shape_cast %262 : vector<1x8x32xf32> to vector<8x32xf32>
      %264 = vector.shape_cast %259 : vector<8x32xf32> to vector<1x8x32xf32>
      tpu.vector_store %arg6[%c0_125, %c8_126, %c0_127], %264 {strides = array<i32>} : memref<1x64x32xf32, #tpu.memory_space<vmem>>, vector<1x8x32xf32>,
      %c0_128 = arith.constant 0 : index
      %c0_129 = arith.constant 0 : index
      %265 = vector.load %arg7[%c0_128, %c0_129] : memref<64x128xf32, #tpu.memory_space<vmem>>, vector<8x128xf32>
      %c0_130 = arith.constant 0 : index
      %c0_131 = arith.constant 0 : index
      %266 = vector.load %arg8[%c0_130, %c0_131] : memref<8x32xf32, #tpu.memory_space<vmem>>, vector<8x32xf32>
      %cst_132 = arith.constant dense<0.000000e+00> : vector<8x128xf32>
      %267 = tpu.matmul %266, %13, %cst_132 {dimension_numbers = #tpu.dot_dimension_numbers<[1], [0], [0], [1], [0, 0, 1, 1], [], []>} : vector<8x32xf32>, vector<32x128xf32>, vector<8x128xf32> -> vector<8x128xf32>
      %268 = arith.addf %265, %267 : vector<8x128xf32>
      %269 = vector.extract_strided_slice %268 {offsets = [0, 0], sizes = [8, 32], strides = [1, 1]} : vector<8x128xf32> to vector<8x32xf32>
      %270 = arith.negf %269 : vector<8x32xf32>
      %271 = math.exp %270 : vector<8x32xf32>
      %cst_133 = arith.constant 1.000000e+00 : f32
      %272 = vector.broadcast %cst_133 : f32 to vector<8x32xf32>
      %273 = arith.addf %272, %271 : vector<8x32xf32>
      %274 = arith.divf %272, %273 : vector<8x32xf32>
      %275 = vector.extract_strided_slice %268 {offsets = [0, 32], sizes = [8, 32], strides = [1, 1]} : vector<8x128xf32> to vector<8x32xf32>
      %276 = arith.negf %275 : vector<8x32xf32>
      %277 = math.exp %276 : vector<8x32xf32>
      %cst_134 = arith.constant 1.000000e+00 : f32
      %278 = vector.broadcast %cst_134 : f32 to vector<8x32xf32>
      %279 = arith.addf %278, %277 : vector<8x32xf32>
      %280 = arith.divf %278, %279 : vector<8x32xf32>
      %281 = vector.extract_strided_slice %268 {offsets = [0, 64], sizes = [8, 32], strides = [1, 1]} : vector<8x128xf32> to vector<8x32xf32>
      %282 = math.tanh %281 : vector<8x32xf32>
      %283 = vector.extract_strided_slice %268 {offsets = [0, 96], sizes = [8, 32], strides = [1, 1]} : vector<8x128xf32> to vector<8x32xf32>
      %284 = arith.negf %283 : vector<8x32xf32>
      %285 = math.exp %284 : vector<8x32xf32>
      %cst_135 = arith.constant 1.000000e+00 : f32
      %286 = vector.broadcast %cst_135 : f32 to vector<8x32xf32>
      %287 = arith.addf %286, %285 : vector<8x32xf32>
      %288 = arith.divf %286, %287 : vector<8x32xf32>
      %c0_136 = arith.constant 0 : index
      %c0_137 = arith.constant 0 : index
      %289 = vector.load %arg9[%c0_136, %c0_137] : memref<8x32xf32, #tpu.memory_space<vmem>>, vector<8x32xf32>
      %290 = arith.mulf %280, %289 : vector<8x32xf32>
      %291 = arith.mulf %274, %282 : vector<8x32xf32>
      %292 = arith.addf %290, %291 : vector<8x32xf32>
      %293 = math.tanh %292 : vector<8x32xf32>
      %294 = arith.mulf %288, %293 : vector<8x32xf32>
      %c0_138 = arith.constant 0 : index
      %c0_139 = arith.constant 0 : index
      %295 = vector.load %arg8[%c0_138, %c0_139] : memref<8x32xf32, #tpu.memory_space<vmem>>, vector<8x32xf32>
      tpu.vector_store %arg8[%c0_138, %c0_139], %294 {strides = array<i32>} : memref<8x32xf32, #tpu.memory_space<vmem>>, vector<8x32xf32>,
      %c0_140 = arith.constant 0 : index
      %c0_141 = arith.constant 0 : index
      %296 = vector.load %arg9[%c0_140, %c0_141] : memref<8x32xf32, #tpu.memory_space<vmem>>, vector<8x32xf32>
      tpu.vector_store %arg9[%c0_140, %c0_141], %292 {strides = array<i32>} : memref<8x32xf32, #tpu.memory_space<vmem>>, vector<8x32xf32>,
      %c0_142 = arith.constant 0 : index
      %c0_143 = arith.constant 0 : index
      %c0_144 = arith.constant 0 : index
      %297 = vector.load %arg6[%c0_142, %c0_143, %c0_144] : memref<1x64x32xf32, #tpu.memory_space<vmem>>, vector<1x8x32xf32>
      %298 = vector.shape_cast %297 : vector<1x8x32xf32> to vector<8x32xf32>
      %299 = vector.shape_cast %294 : vector<8x32xf32> to vector<1x8x32xf32>
      tpu.vector_store %arg6[%c0_142, %c0_143, %c0_144], %299 {strides = array<i32>} : memref<1x64x32xf32, #tpu.memory_space<vmem>>, vector<1x8x32xf32>,
    } else {
    }
    return
  }
  func.func @transform_0(%arg0: i32, %arg1: i32) -> (i32, i32) {
    %c2_i32 = arith.constant 2 : i32
    %0 = arith.muli %c2_i32, %arg1 : i32
    %c0_i32 = arith.constant 0 : i32
    %1 = arith.subi %c0_i32, %0 : i32
    %2 = arith.muli %arg0, %1 : i32
    %3 = arith.addi %arg1, %2 : i32
    %c0_i32_0 = arith.constant 0 : i32
    %c0_i32_1 = arith.constant 0 : i32
    return %3, %c0_i32_0 : i32, i32
  }
  func.func @transform_1(%arg0: i32, %arg1: i32) -> (i32, i32, i32) {
    %c0_i32 = arith.constant 0 : i32
    %c0_i32_0 = arith.constant 0 : i32
    %c0_i32_1 = arith.constant 0 : i32
    return %arg0, %c0_i32, %c0_i32_0 : i32, i32, i32
  }
  func.func @transform_2(%arg0: i32, %arg1: i32) -> (i32, i32, i32) {
    %c0_i32 = arith.constant 0 : i32
    %c0_i32_0 = arith.constant 0 : i32
    %c0_i32_1 = arith.constant 0 : i32
    return %arg0, %c0_i32, %c0_i32_0 : i32, i32, i32
  }
  func.func @transform_3(%arg0: i32, %arg1: i32) -> (i32, i32, i32) {
    %c0_i32 = arith.constant 0 : i32
    %c0_i32_0 = arith.constant 0 : i32
    %c0_i32_1 = arith.constant 0 : i32
    return %arg0, %c0_i32, %c0_i32_0 : i32, i32, i32
  }
  func.func @transform_4(%arg0: i32, %arg1: i32) -> (i32, i32, i32) {
    %c2_i32 = arith.constant 2 : i32
    %0 = arith.muli %c2_i32, %arg1 : i32
    %c0_i32 = arith.constant 0 : i32
    %1 = arith.subi %c0_i32, %0 : i32
    %2 = arith.muli %arg0, %1 : i32
    %3 = arith.addi %arg1, %2 : i32
    %c0_i32_0 = arith.constant 0 : i32
    %c0_i32_1 = arith.constant 0 : i32
    return %arg0, %3, %c0_i32_0 : i32, i32, i32
  }
}

</mosaic_0001>

<llo_original>
// kernel: tpu_custom_call.1
$region0: #{tpu_custom_call.1}
  #allocation0 [shape = 'u32[]', space=smem, size = 0x4, offset = 0x4, fixed_abs, tag = 'smem constant byte address 0x4 - core index']
  #allocation1 [shape = 'u32[144,128]{1,0:T(1,128)}', space=vmem, size = 0x12000, scoped, tag = 'internal scratch']
  #allocation2 [shape = 'f32[64,128]{1,0:T(8,128)}', space=vmem, size = 0x8000, scoped, tag = 'scratch operand']
  #allocation3 [shape = 'f32[8,32]{1,0:T(8,128)}', space=vmem, size = 0x1000, scoped, tag = 'scratch operand']
  #allocation4 [shape = 'f32[8,32]{1,0:T(8,128)}', space=vmem, size = 0x1000, scoped, tag = 'scratch operand']
  %s0 = inlined_call_operand.vmem [shape: f32[64,16], index: 0, kind: input, shape index: {}]
  %s1 = inlined_call_operand.hbm [shape: f32[2,16,128], index: 1, kind: input, shape index: {}]
  %s2 = inlined_call_operand.vmem [shape: f32[2,1,128], index: 2, kind: input, shape index: {}]
  %s3 = inlined_call_operand.vmem [shape: f32[2,32,128], index: 3, kind: input, shape index: {}]
  %s4 = inlined_call_operand.vmem [shape: f32[2,64,32], index: 4, kind: output, shape index: {}]
  %s5 = sld [smem:[#allocation0]]
  $region65: #{tpu_custom_call.1} parent=0
    _
  %s7 = ssub.s32 1, %s5
  %s8 = scalar_select 0, %s7, %s5
  $region1: #{tpu_custom_call.1} parent=0
    #allocation5 [shape = 'u8[16384]{0}', space=vmem, size = 0x4000, scoped, tag = 'input window, operand 1']
    #allocation6 [shape = 's32[2]{0}', space=sflag, size = 0x8, scoped, tag = 'scoped memory for tpu_custom_call.1']
    %9 = vsyncpa [#allocation6], 0
    %s10 = scalar_lea.sflag [#allocation6], 1
    %11 = vsyncpa %s10, 0
    loop: start=0, step=1, limit=4
    $region2: #{tpu_custom_call.1} parent=1 // loop_pre_header
      _
    $region3: #{tpu_custom_call.1} parent=1 // loop_header
      %s13 = sphi 0, %s17
      %p14 = scmp.ge.s32.totalorder %s13, 4
      %s20 = sphi 0, %s32
      %s21 = sphi 0, %s28
      %s22 = sphi 0, %s20
      %s23 = sphi 0, %s21
      %s24 = sphi 0, %s22
      %s25 = sphi 0, %s23
      %s43 = sphi 0, %s45
      %s46 = sphi 0, %s43
      %s47 = sphi 0, %s46
      %s63 = sphi 0, %s47
      %s69 = sphi 0, %s71
      %s72 = sphi 0, %s69
      %s73 = sphi 0, %s72
      %s89 = sphi 0, %s73
      %s95 = sphi 0, %s97
      %s98 = sphi 0, %s95
      %s99 = sphi 0, %s98
      %s115 = sphi 0, %s99
      %s121 = sphi 0, %s123
      %s124 = sphi 0, %s121
      %s125 = sphi 0, %s124
      %s141 = sphi 0, %s125
      %s157 = sphi 0, %s159
      %s160 = sphi 0, %s157
      %s161 = sphi 0, %s160
      %s177 = sphi 0, %s161
    $region4: #{tpu_custom_call.1} parent=1 // loop_header_branch
      %16 = sbr.rel (%p14) target = $region8
    $region5: #{tpu_custom_call.1} parent=1 // loop_body
      %s18 = ssub.s32 %s13, 1
      %s19 = ssub.s32 %s13, 2
      %s26 = sadd.s32 1, %s21
      %p27 = scmp.ge.s32.totalorder %s26, 1
      %s28 = scalar_select %p27, 0, %s26
      %s29 = sadd.s32 1, %s20
      %s30 = scalar_select %p27, %s29, %s20
      %p31 = scmp.ge.s32.totalorder %s30, 2
      %s32 = scalar_select %p31, 0, %s30
      %s33 = smul.u32 %s21, 2
      %s34 = ssub.s32 0, %s33
      %s35 = smul.u32 %s20, %s34
      %s36 = sadd.s32 %s21, %s35
      %s37 = smul.u32 %s28, 2
      %s38 = ssub.s32 0, %s37
      %s39 = smul.u32 %s32, %s38
      %s40 = sadd.s32 %s28, %s39
      %s41 = ssub.s32 %s36, %s40
      %p42 = scmp.eq.s32.totalorder %s41, 0
      %s44 = sadd.s32 %s43, 1
      %s45 = scalar_select %p42, %s43, %s44
      %p48 = pneg %p42
      %p49 = scmp.eq.s32.totalorder %s13, 1
      %p50 = por %p48, %p49
      %p51 = scmp.ne.s32.totalorder %s43, %s46
      %p52 = scmp.eq.s32.totalorder %s13, 0
      %p53 = por %p51, %p52
      %p54 = scmp.ne.s32.totalorder %s43, %s46
      %p55 = scmp.eq.s32.totalorder %s18, 1
      %p56 = por %p54, %p55
      %p57 = scmp.ne.s32.totalorder %s46, %s47
      %p58 = scmp.eq.s32.totalorder %s18, 0
      %p59 = por %p57, %p58
      %p60 = scmp.ne.s32.totalorder %s46, %s47
      %p61 = scmp.eq.s32.totalorder %s19, 1
      %p62 = por %p60, %p61
      %p64 = scmp.ne.s32.totalorder %s47, %s63
      %p65 = scmp.eq.s32.totalorder %s19, 0
      %p66 = por %p64, %p65
      %s67 = ssub.s32 %s20, %s32
      %p68 = scmp.eq.s32.totalorder %s67, 0
      %s70 = sadd.s32 %s69, 1
      %s71 = scalar_select %p68, %s69, %s70
      %p74 = pneg %p68
      %p75 = scmp.eq.s32.totalorder %s13, 1
      %p76 = por %p74, %p75
      %p77 = scmp.ne.s32.totalorder %s69, %s72
      %p78 = scmp.eq.s32.totalorder %s13, 0
      %p79 = por %p77, %p78
      %p80 = scmp.ne.s32.totalorder %s69, %s72
      %p81 = scmp.eq.s32.totalorder %s18, 1
      %p82 = por %p80, %p81
      %p83 = scmp.ne.s32.totalorder %s72, %s73
      %p84 = scmp.eq.s32.totalorder %s18, 0
      %p85 = por %p83, %p84
      %p86 = scmp.ne.s32.totalorder %s72, %s73
      %p87 = scmp.eq.s32.totalorder %s19, 1
      %p88 = por %p86, %p87
      %p90 = scmp.ne.s32.totalorder %s73, %s89
      %p91 = scmp.eq.s32.totalorder %s19, 0
      %p92 = por %p90, %p91
      %s93 = ssub.s32 %s20, %s32
      %p94 = scmp.eq.s32.totalorder %s93, 0
      %s96 = sadd.s32 %s95, 1
      %s97 = scalar_select %p94, %s95, %s96
      %p100 = pneg %p94
      %p101 = scmp.eq.s32.totalorder %s13, 1
      %p102 = por %p100, %p101
      %p103 = scmp.ne.s32.totalorder %s95, %s98
      %p104 = scmp.eq.s32.totalorder %s13, 0
      %p105 = por %p103, %p104
      %p106 = scmp.ne.s32.totalorder %s95, %s98
      %p107 = scmp.eq.s32.totalorder %s18, 1
      %p108 = por %p106, %p107
      %p109 = scmp.ne.s32.totalorder %s98, %s99
      %p110 = scmp.eq.s32.totalorder %s18, 0
      %p111 = por %p109, %p110
      %p112 = scmp.ne.s32.totalorder %s98, %s99
      %p113 = scmp.eq.s32.totalorder %s19, 1
      %p114 = por %p112, %p113
      %p116 = scmp.ne.s32.totalorder %s99, %s115
      %p117 = scmp.eq.s32.totalorder %s19, 0
      %p118 = por %p116, %p117
      %s119 = ssub.s32 %s20, %s32
      %p120 = scmp.eq.s32.totalorder %s119, 0
      %s122 = sadd.s32 %s121, 1
      %s123 = scalar_select %p120, %s121, %s122
      %p126 = pneg %p120
      %p127 = scmp.eq.s32.totalorder %s13, 1
      %p128 = por %p126, %p127
      %p129 = scmp.ne.s32.totalorder %s121, %s124
      %p130 = scmp.eq.s32.totalorder %s13, 0
      %p131 = por %p129, %p130
      %p132 = scmp.ne.s32.totalorder %s121, %s124
      %p133 = scmp.eq.s32.totalorder %s18, 1
      %p134 = por %p132, %p133
      %p135 = scmp.ne.s32.totalorder %s124, %s125
      %p136 = scmp.eq.s32.totalorder %s18, 0
      %p137 = por %p135, %p136
      %p138 = scmp.ne.s32.totalorder %s124, %s125
      %p139 = scmp.eq.s32.totalorder %s19, 1
      %p140 = por %p138, %p139
      %p142 = scmp.ne.s32.totalorder %s125, %s141
      %p143 = scmp.eq.s32.totalorder %s19, 0
      %p144 = por %p142, %p143
      %s145 = smul.u32 %s21, 2
      %s146 = ssub.s32 0, %s145
      %s147 = smul.u32 %s20, %s146
      %s148 = sadd.s32 %s21, %s147
      %s149 = smul.u32 %s28, 2
      %s150 = ssub.s32 0, %s149
      %s151 = smul.u32 %s32, %s150
      %s152 = sadd.s32 %s28, %s151
      %s153 = ssub.s32 %s20, %s32
      %s154 = ssub.s32 %s148, %s152
      %s155 = sor.u32 %s153, %s154
      %p156 = scmp.eq.s32.totalorder %s155, 0
      %s158 = sadd.s32 %s157, 1
      %s159 = scalar_select %p156, %s157, %s158
      %p162 = pneg %p156
      %p163 = scmp.eq.s32.totalorder %s13, 1
      %p164 = por %p162, %p163
      %p165 = scmp.ne.s32.totalorder %s157, %s160
      %p166 = scmp.eq.s32.totalorder %s13, 0
      %p167 = por %p165, %p166
      %p168 = scmp.ne.s32.totalorder %s157, %s160
      %p169 = scmp.eq.s32.totalorder %s18, 1
      %p170 = por %p168, %p169
      %p171 = scmp.ne.s32.totalorder %s160, %s161
      %p172 = scmp.eq.s32.totalorder %s18, 0
      %p173 = por %p171, %p172
      %p174 = scmp.ne.s32.totalorder %s160, %s161
      %p175 = scmp.eq.s32.totalorder %s19, 1
      %p176 = por %p174, %p175
      %p178 = scmp.ne.s32.totalorder %s161, %s177
      %p179 = scmp.eq.s32.totalorder %s19, 0
      %p180 = por %p178, %p179
      %p181 = scmp.le.s32.totalorder 1, %s13
      %p182 = scmp.lt.s32.totalorder %s13, 3
      %p183 = pnand %p181, %p182
      %p184 = pneg %p183
      // Predicated region
      $region9: #{tpu_custom_call.1} parent=5 // pred_check
        _
      $region10: #{tpu_custom_call.1} parent=5 // pred_check_branch
        %186 = sbr.rel (%p183) target = $region12
      $region11: #{tpu_custom_call.1} parent=5 // pred_region
        %s187 = ssub.s32 %s13, 1
      $region12: #{tpu_custom_call.1} parent=5 // pred_fallthru
        _
      %p188 = scmp.lt.s32.totalorder %s13, 2
      // Predicated region
      $region13: #{tpu_custom_call.1} parent=5 // pred_check
        %p189 = pneg %p188
      $region14: #{tpu_custom_call.1} parent=5 // pred_check_branch
        %191 = sbr.rel (%p189) target = $region16
      $region15: #{tpu_custom_call.1} parent=5 // pred_region
        // Predicated region
        $region17: #{tpu_custom_call.1} parent=15 // pred_check
          %p192 = pneg %p53
        $region18: #{tpu_custom_call.1} parent=15 // pred_check_branch
          %194 = sbr.rel (%p192) target = $region20
        $region19: #{tpu_custom_call.1} parent=15 // pred_region
          %s195 = smul.u32 %s21, 2
          %s196 = ssub.s32 0, %s195
          %s197 = smul.u32 %s20, %s196
          %s198 = sadd.s32 %s21, %s197
          %s199 = smul.u32 8, %s198
          %p200 = scmp.lt.s32.totalorder %s199, 7
          %s201 = scalar_select %p200, %s199, 7
          %s202 = smul.addr %s201, 8
          %s203 = scalar_lea.vmem %s0, %s202
          %s204 = smul.u32 %s21, 2
          %s205 = ssub.s32 0, %s204
          %s206 = smul.u32 %s20, %s205
          %s207 = sadd.s32 %s21, %s206
          %s208 = smul.u32 8, %s207
        $region20: #{tpu_custom_call.1} parent=15 // pred_fallthru
          _
        // Predicated region
        $region21: #{tpu_custom_call.1} parent=15 // pred_check
          %p209 = pneg %p79
        $region22: #{tpu_custom_call.1} parent=15 // pred_check_branch
          %211 = sbr.rel (%p209) target = $region24
        $region23: #{tpu_custom_call.1} parent=15 // pred_region
          %s212 = sand.u32 %s69, 1
          %s213 = scalar_lea.sflag [#allocation6], %s212
          %s214 = sand.u32 %s69, 1
          %s215 = smul.addr %s214, 16
          %s216 = scalar_lea.vmem [#allocation5], %s215
          %s218 = ssub.s32 256, 256
          %219 = vsyncadd %s213, %s218
          %s220 = smul.addr %s20, 2
          %s221 = smul.addr %s220, 128
          %s222 = scalar_lea.hbm %s1, %s221
          %s223 = sshll.u32 %s216, 4
          %s224 = int_to_ptr.vmem [resolvable:$true] %s223
          %229 = dma.hbm_to_vmem [thread:$0]  %s222, 256, %s224, %s213, 128, 128, 8
        $region24: #{tpu_custom_call.1} parent=15 // pred_fallthru
          _
        // Predicated region
        $region25: #{tpu_custom_call.1} parent=15 // pred_check
          %p230 = pneg %p105
        $region26: #{tpu_custom_call.1} parent=15 // pred_check_branch
          %232 = sbr.rel (%p230) target = $region28
        $region27: #{tpu_custom_call.1} parent=15 // pred_region
          %p233 = scmp.lt.s32.totalorder %s20, 1
          %s234 = scalar_select %p233, %s20, 1
          %s235 = scalar_lea.vmem %s2, %s234
        $region28: #{tpu_custom_call.1} parent=15 // pred_fallthru
          _
        // Predicated region
        $region29: #{tpu_custom_call.1} parent=15 // pred_check
          %p236 = pneg %p131
        $region30: #{tpu_custom_call.1} parent=15 // pred_check_branch
          %238 = sbr.rel (%p236) target = $region32
        $region31: #{tpu_custom_call.1} parent=15 // pred_region
          %p239 = scmp.lt.s32.totalorder %s20, 1
          %s240 = scalar_select %p239, %s20, 1
          %s241 = smul.addr %s240, 4
          %s242 = smul.addr %s241, 8
          %s243 = scalar_lea.vmem %s3, %s242
        $region32: #{tpu_custom_call.1} parent=15 // pred_fallthru
          _
      $region16: #{tpu_custom_call.1} parent=5 // pred_fallthru
        _
      %p244 = scmp.le.s32.totalorder 1, %s13
      %p245 = scmp.lt.s32.totalorder %s13, 3
      %p246 = pnand %p244, %p245
      %p247 = pneg %p246
      // Predicated region
      $region33: #{tpu_custom_call.1} parent=5 // pred_check
        _
      $region34: #{tpu_custom_call.1} parent=5 // pred_check_branch
        %249 = sbr.rel (%p246) target = $region36
      $region35: #{tpu_custom_call.1} parent=5 // pred_region
        %s250 = ssub.s32 %s13, 1
        %s251 = sand.u32 %s72, 1
        %s252 = scalar_lea.sflag [#allocation6], %s251
        %s253 = sand.u32 %s72, 1
        %s254 = smul.addr %s253, 16
        %s255 = scalar_lea.vmem [#allocation5], %s254
        // Predicated region
        $region37: #{tpu_custom_call.1} parent=35 // pred_check
          %p256 = pneg %p85
        $region38: #{tpu_custom_call.1} parent=35 // pred_check_branch
          %258 = sbr.rel (%p256) target = $region40
        $region39: #{tpu_custom_call.1} parent=35 // pred_region
          %259 = dma.done %s252, 256
        $region40: #{tpu_custom_call.1} parent=35 // pred_fallthru
          _
        %s260 = smul.u32 %s23, 2
        %s261 = ssub.s32 0, %s260
        %s262 = smul.u32 %s22, %s261
        %s263 = sadd.s32 %s23, %s262
        %s264 = smul.u32 8, %s263
        %p265 = scmp.lt.s32.totalorder %s264, 7
        %s266 = scalar_select %p265, %s264, 7
        %s267 = smul.addr %s266, 8
        %s268 = scalar_lea.vmem %s0, %s267
        %p269 = pneg %p59
        %p270 = pneg %p56
        %s271 = sand.u32 %s72, 1
        %s272 = scalar_lea.sflag [#allocation6], %s271
        %s273 = sand.u32 %s72, 1
        %s274 = smul.addr %s273, 16
        %s275 = scalar_lea.vmem [#allocation5], %s274
        %p276 = pneg %p85
        %p277 = pneg %p82
        %p278 = scmp.lt.s32.totalorder %s22, 1
        %s279 = scalar_select %p278, %s22, 1
        %s280 = scalar_lea.vmem %s2, %s279
        %p281 = pneg %p111
        %p282 = pneg %p108
        %p283 = scmp.lt.s32.totalorder %s22, 1
        %s284 = scalar_select %p283, %s22, 1
        %s285 = smul.addr %s284, 4
        %s286 = smul.addr %s285, 8
        %s287 = scalar_lea.vmem %s3, %s286
        %p288 = pneg %p137
        %p289 = pneg %p134
        %p290 = pneg %p173
        %p291 = pneg %p170
        %s292 = smul.u32 %s23, 2
        %s293 = ssub.s32 0, %s292
        %s294 = smul.u32 %s22, %s293
        %s295 = sadd.s32 %s23, %s294
        %s296 = smul.u32 8, %s295
        %p297 = scmp.lt.s32.totalorder %s22, 1
        %s298 = scalar_select %p297, %s22, 1
        %p299 = scmp.lt.s32.totalorder %s296, 7
        %s300 = scalar_select %p299, %s296, 7
        %s301 = smul.addr %s298, 8
        %s302 = sadd.s32 %s300, %s301
        %s303 = smul.addr %s302, 8
        %s304 = scalar_lea.vmem %s4, %s303
        %s305 = smul.u32 %s23, 2
        %s306 = ssub.s32 0, %s305
        %s307 = smul.u32 %s22, %s306
        %s308 = sadd.s32 %s23, %s307
        %s309 = smul.u32 8, %s308
        %p310 = scmp.lt.s32.totalorder %s309, 7
        %s311 = scalar_select %p310, %s309, 7
        %s312 = smul.addr %s311, 8
        %s313 = scalar_lea.vmem %s0, %s312
        %s314 = smul.u32 %s23, 2
        %s315 = ssub.s32 0, %s314
        %s316 = smul.u32 %s22, %s315
        %s317 = sadd.s32 %s23, %s316
        %s318 = smul.u32 8, %s317
        %p319 = scmp.lt.s32.totalorder %s22, 1
        %s320 = scalar_select %p319, %s22, 1
        %s321 = scalar_lea.vmem %s2, %s320
        %p322 = scmp.lt.s32.totalorder %s22, 1
        %s323 = scalar_select %p322, %s22, 1
        %s324 = smul.addr %s323, 4
        %s325 = smul.addr %s324, 8
        %s326 = scalar_lea.vmem %s3, %s325
        %s327 = smul.u32 %s23, 2
        %s328 = ssub.s32 0, %s327
        %s329 = smul.u32 %s22, %s328
        %s330 = sadd.s32 %s23, %s329
        %s331 = smul.u32 8, %s330
        %p332 = scmp.lt.s32.totalorder %s22, 1
        %s333 = scalar_select %p332, %s22, 1
        %p334 = scmp.lt.s32.totalorder %s331, 7
        %s335 = scalar_select %p334, %s331, 7
        %s336 = smul.addr %s333, 8
        %s337 = sadd.s32 %s335, %s336
        %s338 = smul.addr %s337, 8
        %s339 = scalar_lea.vmem %s4, %s338
        %s340 = smul.u32 %s23, 2
        %s341 = ssub.s32 0, %s340
        %s342 = smul.u32 %s22, %s341
        %s343 = sadd.s32 %s23, %s342
        %s344 = smul.u32 8, %s343
        %p345 = scmp.eq.s32.totalorder %s23, 0
        // Predicated region
        $region41: #{tpu_custom_call.1} parent=35 // pred_check
          %p346 = pneg %p345
        $region42: #{tpu_custom_call.1} parent=35 // pred_check_branch
          %348 = sbr.rel (%p346) target = $region44
        $region43: #{tpu_custom_call.1} parent=35 // pred_region
          %vm349 = vcmask 261120
          %350 = vst.msk [vmem:[#allocation3] sm:$0xff] %vm349, 0.0
          %351 = vst.msk [vmem:[#allocation4] sm:$0xff] %vm349, 0.0
        $region44: #{tpu_custom_call.1} parent=35 // pred_fallthru
          _
        %v352 = vld [vmem:[%s313] sm:$0xff]
        %v353 = vld [vmem:[%s313 + $0x8] sm:$0xff]
        %v354 = vld [vmem:[%s313 + $0x10] sm:$0xff]
        %v355 = vld [vmem:[%s313 + $0x18] sm:$0xff]
        %v356 = vld [vmem:[%s313 + $0x20] sm:$0xff]
        %v357 = vld [vmem:[%s313 + $0x28] sm:$0xff]
        %v358 = vld [vmem:[%s313 + $0x30] sm:$0xff]
        %v359 = vld [vmem:[%s313 + $0x38] sm:$0xff]
        %v360 = vld [vmem:[%s255] sm:$0xff]
        %v361 = vld [vmem:[%s255 + $0x8] sm:$0xff]
        %v362 = vld [vmem:[%s321] sm:$0x1]
        %v364 = vlaneseq
        %v365 = vshrl.u32 %v364, 7
        %v366 = vsub.s32 0, %v365
        %v367 = vrot.slane %v362, %v366
        %vm369 = vcmask 130048
        %v371 = vsel %vm369, %v352, 0
        %v374 = vsel %vm369, %v353, 0
        %v377 = vsel %vm369, %v354, 0
        %v380 = vsel %vm369, %v355, 0
        %v383 = vsel %vm369, %v356, 0
        %v386 = vsel %vm369, %v357, 0
        %v389 = vsel %vm369, %v358, 0
        %v392 = vsel %vm369, %v359, 0
        %394 = vmatprep.subr.mxu0 0.0
        %395 = vmatpush1.msra.mxu0 %v360
        %396 = vmatprep.subr.mxu0 0.0
        %397 = vmatpush1.msra.mxu0 %v361
        %398 = vmatprep.subr.mxu0 0.0
        %399 = vmatpush1.msra.mxu0 0.0
        %400 = vmatprep.subr.mxu0 0.0
        %401 = vmatpush1.msra.mxu0 0.0
        %402 = vmatprep.subr.mxu0 0.0
        %403 = vmatpush1.msra.mxu0 0.0
        %404 = vmatprep.subr.mxu0 0.0
        %405 = vmatpush1.msra.mxu0 0.0
        %406 = vmatprep.subr.mxu0 0.0
        %407 = vmatpush1.msra.mxu0 0.0
        %408 = vmatprep.subr.mxu0 0.0
        %409 = vmatpush1.msra.mxu0 0.0
        %410 = vmatprep.subr.mxu0 0.0
        %411 = vmatpush1.msra.mxu0 0.0
        %412 = vmatprep.subr.mxu0 0.0
        %413 = vmatpush1.msra.mxu0 0.0
        %414 = vmatprep.subr.mxu0 0.0
        %415 = vmatpush1.msra.mxu0 0.0
        %416 = vmatprep.subr.mxu0 0.0
        %417 = vmatpush1.msra.mxu0 0.0
        %418 = vmatprep.subr.mxu0 0.0
        %419 = vmatpush1.msra.mxu0 0.0
        %420 = vmatprep.subr.mxu0 0.0
        %421 = vmatpush1.msra.mxu0 0.0
        %422 = vmatprep.subr.mxu0 0.0
        %423 = vmatpush1.msra.mxu0 0.0
        %424 = vmatprep.subr.mxu0 0.0
        %425 = vmatpush1.msra.mxu0 0.0
        %426 = vmatprep.subr.mxu0 0.0
        %427 = vmatpush1.msra.mxu0 0.0
        %428 = vmatprep.subr.mxu0 0.0
        %429 = vmatpush1.msra.mxu0 0.0
        %430 = vmatprep.subr.mxu0 0.0
        %431 = vmatpush1.msra.mxu0 0.0
        %432 = vmatprep.subr.mxu0 0.0
        %433 = vmatpush1.msra.mxu0 0.0
        %434 = vmatprep.subr.mxu0 0.0
        %435 = vmatpush1.msra.mxu0 0.0
        %436 = vmatprep.subr.mxu0 0.0
        %437 = vmatpush1.msra.mxu0 0.0
        %438 = vmatprep.subr.mxu0 0.0
        %439 = vmatpush1.msra.mxu0 0.0
        %440 = vmatprep.subr.mxu0 0.0
        %441 = vmatpush1.msra.mxu0 0.0
        %442 = vmatprep.subr.mxu0 0.0
        %443 = vmatpush1.msra.mxu0 0.0
        %444 = vmatprep.subr.mxu0 0.0
        %445 = vmatpush1.msra.mxu0 0.0
        %446 = vmatprep.subr.mxu0 0.0
        %447 = vmatpush1.msra.mxu0 0.0
        %448 = vmatprep.subr.mxu0 0.0
        %449 = vmatpush1.msra.mxu0 0.0
        %450 = vmatprep.subr.mxu0 0.0
        %451 = vmatpush1.msra.mxu0 0.0
        %452 = vmatprep.subr.mxu0 0.0
        %453 = vmatpush1.msra.mxu0 0.0
        %454 = vmatprep.subr.mxu0 0.0
        %455 = vmatpush1.msra.mxu0 0.0
        %456 = vmatprep.subr.mxu0 0.0
        %457 = vmatpush1.msra.mxu0 0.0
        %458 = vmatprep.mubr.f32.mxu0 0.0
        %459 = vmatmul.mubr.f32.gmra.mrb[0].mxu0 %v371
        %v460 = vpop.f32.mrb[0].mxu0
        %v461 = vadd.f32 %v367, %v460
        %v462 = vpop.f32.mrb[0].mxu0
        %463 = vmatprep.mubr.f32.mxu0 0.0
        %464 = vmatmul.mubr.f32.gmra.mrb[0].mxu0 %v374
        %v465 = vpop.f32.mrb[0].mxu0
        %v466 = vadd.f32 %v367, %v465
        %v467 = vpop.f32.mrb[0].mxu0
        %468 = vmatprep.mubr.f32.mxu0 0.0
        %469 = vmatmul.mubr.f32.gmra.mrb[0].mxu0 %v377
        %v470 = vpop.f32.mrb[0].mxu0
        %v471 = vadd.f32 %v367, %v470
        %v472 = vpop.f32.mrb[0].mxu0
        %473 = vmatprep.mubr.f32.mxu0 0.0
        %474 = vmatmul.mubr.f32.gmra.mrb[0].mxu0 %v380
        %v475 = vpop.f32.mrb[0].mxu0
        %v476 = vadd.f32 %v367, %v475
        %v477 = vpop.f32.mrb[0].mxu0
        %478 = vmatprep.mubr.f32.mxu0 0.0
        %479 = vmatmul.mubr.f32.gmra.mrb[0].mxu0 %v383
        %v480 = vpop.f32.mrb[0].mxu0
        %v481 = vadd.f32 %v367, %v480
        %v482 = vpop.f32.mrb[0].mxu0
        %483 = vmatprep.mubr.f32.mxu0 0.0
        %484 = vmatmul.mubr.f32.gmra.mrb[0].mxu0 %v386
        %v485 = vpop.f32.mrb[0].mxu0
        %v486 = vadd.f32 %v367, %v485
        %v487 = vpop.f32.mrb[0].mxu0
        %488 = vmatprep.mubr.f32.mxu0 0.0
        %489 = vmatmul.mubr.f32.gmra.mrb[0].mxu0 %v389
        %v490 = vpop.f32.mrb[0].mxu0
        %v491 = vadd.f32 %v367, %v490
        %v492 = vpop.f32.mrb[0].mxu0
        %493 = vmatprep.mubr.f32.mxu0 0.0
        %494 = vmatmul.mubr.f32.gmra.mrb[0].mxu0 %v392
        %v495 = vpop.f32.mrb[0].mxu0
        %v496 = vadd.f32 %v367, %v495
        %v497 = vpop.f32.mrb[0].mxu0
        %498 = vdwg.mxu0
        %499 = vst [vmem:[#allocation2] sm:$0xff] %v461
        %500 = vst [vmem:[#allocation2 + $0x8] sm:$0xff] %v466
        %501 = vst [vmem:[#allocation2 + $0x10] sm:$0xff] %v471
        %502 = vst [vmem:[#allocation2 + $0x18] sm:$0xff] %v476
        %503 = vst [vmem:[#allocation2 + $0x20] sm:$0xff] %v481
        %504 = vst [vmem:[#allocation2 + $0x28] sm:$0xff] %v486
        %505 = vst [vmem:[#allocation2 + $0x30] sm:$0xff] %v491
        %506 = vst [vmem:[#allocation2 + $0x38] sm:$0xff] %v496
        %v507 = vld [vmem:[%s326] sm:$0xff]
        %v508 = vld [vmem:[%s326 + $0x8] sm:$0xff]
        %v509 = vld [vmem:[%s326 + $0x10] sm:$0xff]
        %v510 = vld [vmem:[%s326 + $0x18] sm:$0xff]
        %p511 = scmp.eq.s32.totalorder %s22, 0
        // Predicated region
        $region45: #{tpu_custom_call.1} parent=35 // pred_check
          %p512 = pneg %p511
        $region46: #{tpu_custom_call.1} parent=35 // pred_check_branch
          %514 = sbr.rel (%p512) target = $region48
        $region47: #{tpu_custom_call.1} parent=35 // pred_region
          %v515 = vld [vmem:[#allocation2] sm:$0xff]
          %v516 = vld [vmem:[#allocation3] sm:$0xff]
          %vm517 = vcmask 261120
          %v519 = vsel %vm517, %v516, 0
          %521 = vmatprep.subr.mxu0 0.0
          %522 = vmatpush1.msra.mxu0 %v507
          %523 = vmatprep.subr.mxu0 0.0
          %524 = vmatpush1.msra.mxu0 %v508
          %525 = vmatprep.subr.mxu0 0.0
          %526 = vmatpush1.msra.mxu0 %v509
          %527 = vmatprep.subr.mxu0 0.0
          %528 = vmatpush1.msra.mxu0 %v510
          %529 = vmatprep.subr.mxu0 0.0
          %530 = vmatpush1.msra.mxu0 0.0
          %531 = vmatprep.subr.mxu0 0.0
          %532 = vmatpush1.msra.mxu0 0.0
          %533 = vmatprep.subr.mxu0 0.0
          %534 = vmatpush1.msra.mxu0 0.0
          %535 = vmatprep.subr.mxu0 0.0
          %536 = vmatpush1.msra.mxu0 0.0
          %537 = vmatprep.subr.mxu0 0.0
          %538 = vmatpush1.msra.mxu0 0.0
          %539 = vmatprep.subr.mxu0 0.0
          %540 = vmatpush1.msra.mxu0 0.0
          %541 = vmatprep.subr.mxu0 0.0
          %542 = vmatpush1.msra.mxu0 0.0
          %543 = vmatprep.subr.mxu0 0.0
          %544 = vmatpush1.msra.mxu0 0.0
          %545 = vmatprep.subr.mxu0 0.0
          %546 = vmatpush1.msra.mxu0 0.0
          %547 = vmatprep.subr.mxu0 0.0
          %548 = vmatpush1.msra.mxu0 0.0
          %549 = vmatprep.subr.mxu0 0.0
          %550 = vmatpush1.msra.mxu0 0.0
          %551 = vmatprep.subr.mxu0 0.0
          %552 = vmatpush1.msra.mxu0 0.0
          %553 = vmatprep.subr.mxu0 0.0
          %554 = vmatpush1.msra.mxu0 0.0
          %555 = vmatprep.subr.mxu0 0.0
          %556 = vmatpush1.msra.mxu0 0.0
          %557 = vmatprep.subr.mxu0 0.0
          %558 = vmatpush1.msra.mxu0 0.0
          %559 = vmatprep.subr.mxu0 0.0
          %560 = vmatpush1.msra.mxu0 0.0
          %561 = vmatprep.subr.mxu0 0.0
          %562 = vmatpush1.msra.mxu0 0.0
          %563 = vmatprep.subr.mxu0 0.0
          %564 = vmatpush1.msra.mxu0 0.0
          %565 = vmatprep.subr.mxu0 0.0
          %566 = vmatpush1.msra.mxu0 0.0
          %567 = vmatprep.subr.mxu0 0.0
          %568 = vmatpush1.msra.mxu0 0.0
          %569 = vmatprep.subr.mxu0 0.0
          %570 = vmatpush1.msra.mxu0 0.0
          %571 = vmatprep.subr.mxu0 0.0
          %572 = vmatpush1.msra.mxu0 0.0
          %573 = vmatprep.subr.mxu0 0.0
          %574 = vmatpush1.msra.mxu0 0.0
          %575 = vmatprep.subr.mxu0 0.0
          %576 = vmatpush1.msra.mxu0 0.0
          %577 = vmatprep.subr.mxu0 0.0
          %578 = vmatpush1.msra.mxu0 0.0
          %579 = vmatprep.subr.mxu0 0.0
          %580 = vmatpush1.msra.mxu0 0.0
          %581 = vmatprep.subr.mxu0 0.0
          %582 = vmatpush1.msra.mxu0 0.0
          %583 = vmatprep.subr.mxu0 0.0
          %584 = vmatpush1.msra.mxu0 0.0
          %585 = vmatprep.mubr.f32.mxu0 0.0
          %586 = vmatmul.mubr.f32.gmra.mrb[0].mxu0 %v519
          %v587 = vpop.f32.mrb[0].mxu0
          %v588 = vadd.f32 0.0, %v587
          %v589 = vpop.f32.mrb[0].mxu0
          %590 = vdwg.mxu0
          %v591 = vadd.f32 %v515, %v588
          %v592 = vxor.u32 %v591, 2147483648
          %v593 = vmul.f32 %v592, 1.442695
          %v594 = vpow.pop %v593
          %v595 = vadd.f32 %v594, 1.0
          %v596 = vrcp.pop %v595
          %v597 = vmul.f32 1.0, %v596
          %v598 = vtanh.pop %v591
          %v599 = vld [vmem:[#allocation4] sm:$0xff]
          %601 = vrot.lane.b32.xlu0 %v599, 32
          %v602 = vpop.permute.xlu0 %601
          %v604 = vmul.f32 %v597, %v602
          %606 = vrot.lane.b32.xlu0 %v598, 64
          %v607 = vpop.permute.xlu0 %606
          %v609 = vmul.f32 %v597, %v607
          %611 = vrot.lane.b32.xlu0 %v609, 32
          %v612 = vpop.permute.xlu0 %611
          %v614 = vadd.f32 %v604, %v612
          %v615 = vtanh.pop %v614
          %617 = vrot.lane.b32.xlu0 %v615, 64
          %v618 = vpop.permute.xlu0 %617
          %v620 = vmul.f32 %v597, %v618
          %622 = vrot.lane.b32.xlu0 %v620, 32
          %v623 = vpop.permute.xlu0 %622
          %625 = vst.msk [vmem:[#allocation3] sm:$0xff] %vm517, %v623
          %627 = vrot.lane.b32.xlu0 %v614, 96
          %v628 = vpop.permute.xlu0 %627
          %630 = vst.msk [vmem:[#allocation4] sm:$0xff] %vm517, %v628
          %631 = vst.msk [vmem:[%s339] sm:$0xff] %vm517, %v623
          %v632 = vld [vmem:[#allocation2 + $0x8] sm:$0xff]
          %v633 = vld [vmem:[#allocation3] sm:$0xff]
          %v635 = vsel %vm517, %v633, 0
          %637 = vmatprep.subr.mxu0 0.0
          %638 = vmatpush1.msra.mxu0 %v507
          %639 = vmatprep.subr.mxu0 0.0
          %640 = vmatpush1.msra.mxu0 %v508
          %641 = vmatprep.subr.mxu0 0.0
          %642 = vmatpush1.msra.mxu0 %v509
          %643 = vmatprep.subr.mxu0 0.0
          %644 = vmatpush1.msra.mxu0 %v510
          %645 = vmatprep.subr.mxu0 0.0
          %646 = vmatpush1.msra.mxu0 0.0
          %647 = vmatprep.subr.mxu0 0.0
          %648 = vmatpush1.msra.mxu0 0.0
          %649 = vmatprep.subr.mxu0 0.0
          %650 = vmatpush1.msra.mxu0 0.0
          %651 = vmatprep.subr.mxu0 0.0
          %652 = vmatpush1.msra.mxu0 0.0
          %653 = vmatprep.subr.mxu0 0.0
          %654 = vmatpush1.msra.mxu0 0.0
          %655 = vmatprep.subr.mxu0 0.0
          %656 = vmatpush1.msra.mxu0 0.0
          %657 = vmatprep.subr.mxu0 0.0
          %658 = vmatpush1.msra.mxu0 0.0
          %659 = vmatprep.subr.mxu0 0.0
          %660 = vmatpush1.msra.mxu0 0.0
          %661 = vmatprep.subr.mxu0 0.0
          %662 = vmatpush1.msra.mxu0 0.0
          %663 = vmatprep.subr.mxu0 0.0
          %664 = vmatpush1.msra.mxu0 0.0
          %665 = vmatprep.subr.mxu0 0.0
          %666 = vmatpush1.msra.mxu0 0.0
          %667 = vmatprep.subr.mxu0 0.0
          %668 = vmatpush1.msra.mxu0 0.0
          %669 = vmatprep.subr.mxu0 0.0
          %670 = vmatpush1.msra.mxu0 0.0
          %671 = vmatprep.subr.mxu0 0.0
          %672 = vmatpush1.msra.mxu0 0.0
          %673 = vmatprep.subr.mxu0 0.0
          %674 = vmatpush1.msra.mxu0 0.0
          %675 = vmatprep.subr.mxu0 0.0
          %676 = vmatpush1.msra.mxu0 0.0
          %677 = vmatprep.subr.mxu0 0.0
          %678 = vmatpush1.msra.mxu0 0.0
          %679 = vmatprep.subr.mxu0 0.0
          %680 = vmatpush1.msra.mxu0 0.0
          %681 = vmatprep.subr.mxu0 0.0
          %682 = vmatpush1.msra.mxu0 0.0
          %683 = vmatprep.subr.mxu0 0.0
          %684 = vmatpush1.msra.mxu0 0.0
          %685 = vmatprep.subr.mxu0 0.0
          %686 = vmatpush1.msra.mxu0 0.0
          %687 = vmatprep.subr.mxu0 0.0
          %688 = vmatpush1.msra.mxu0 0.0
          %689 = vmatprep.subr.mxu0 0.0
          %690 = vmatpush1.msra.mxu0 0.0
          %691 = vmatprep.subr.mxu0 0.0
          %692 = vmatpush1.msra.mxu0 0.0
          %693 = vmatprep.subr.mxu0 0.0
          %694 = vmatpush1.msra.mxu0 0.0
          %695 = vmatprep.subr.mxu0 0.0
          %696 = vmatpush1.msra.mxu0 0.0
          %697 = vmatprep.subr.mxu0 0.0
          %698 = vmatpush1.msra.mxu0 0.0
          %699 = vmatprep.subr.mxu0 0.0
          %700 = vmatpush1.msra.mxu0 0.0
          %701 = vmatprep.mubr.f32.mxu0 0.0
          %702 = vmatmul.mubr.f32.gmra.mrb[0].mxu0 %v635
          %v703 = vpop.f32.mrb[0].mxu0
          %v704 = vadd.f32 0.0, %v703
          %v705 = vpop.f32.mrb[0].mxu0
          %706 = vdwg.mxu0
          %v707 = vadd.f32 %v632, %v704
          %v708 = vxor.u32 %v707, 2147483648
          %v709 = vmul.f32 %v708, 1.442695
          %v710 = vpow.pop %v709
          %v711 = vadd.f32 %v710, 1.0
          %v712 = vrcp.pop %v711
          %v713 = vmul.f32 1.0, %v712
          %v714 = vtanh.pop %v707
          %v715 = vld [vmem:[#allocation4] sm:$0xff]
          %717 = vrot.lane.b32.xlu0 %v715, 32
          %v718 = vpop.permute.xlu0 %717
          %v720 = vmul.f32 %v713, %v718
          %722 = vrot.lane.b32.xlu0 %v714, 64
          %v723 = vpop.permute.xlu0 %722
          %v725 = vmul.f32 %v713, %v723
          %727 = vrot.lane.b32.xlu0 %v725, 32
          %v728 = vpop.permute.xlu0 %727
          %v730 = vadd.f32 %v720, %v728
          %v731 = vtanh.pop %v730
          %733 = vrot.lane.b32.xlu0 %v731, 64
          %v734 = vpop.permute.xlu0 %733
          %v736 = vmul.f32 %v713, %v734
          %738 = vrot.lane.b32.xlu0 %v736, 32
          %v739 = vpop.permute.xlu0 %738
          %741 = vst.msk [vmem:[#allocation3] sm:$0xff] %vm517, %v739
          %743 = vrot.lane.b32.xlu0 %v730, 96
          %v744 = vpop.permute.xlu0 %743
          %746 = vst.msk [vmem:[#allocation4] sm:$0xff] %vm517, %v744
          %747 = vst.msk [vmem:[%s339 + $0x8] sm:$0xff] %vm517, %v739
          %v748 = vld [vmem:[#allocation2 + $0x10] sm:$0xff]
          %v749 = vld [vmem:[#allocation3] sm:$0xff]
          %v751 = vsel %vm517, %v749, 0
          %753 = vmatprep.subr.mxu0 0.0
          %754 = vmatpush1.msra.mxu0 %v507
          %755 = vmatprep.subr.mxu0 0.0
          %756 = vmatpush1.msra.mxu0 %v508
          %757 = vmatprep.subr.mxu0 0.0
          %758 = vmatpush1.msra.mxu0 %v509
          %759 = vmatprep.subr.mxu0 0.0
          %760 = vmatpush1.msra.mxu0 %v510
          %761 = vmatprep.subr.mxu0 0.0
          %762 = vmatpush1.msra.mxu0 0.0
          %763 = vmatprep.subr.mxu0 0.0
          %764 = vmatpush1.msra.mxu0 0.0
          %765 = vmatprep.subr.mxu0 0.0
          %766 = vmatpush1.msra.mxu0 0.0
          %767 = vmatprep.subr.mxu0 0.0
          %768 = vmatpush1.msra.mxu0 0.0
          %769 = vmatprep.subr.mxu0 0.0
          %770 = vmatpush1.msra.mxu0 0.0
          %771 = vmatprep.subr.mxu0 0.0
          %772 = vmatpush1.msra.mxu0 0.0
          %773 = vmatprep.subr.mxu0 0.0
          %774 = vmatpush1.msra.mxu0 0.0
          %775 = vmatprep.subr.mxu0 0.0
          %776 = vmatpush1.msra.mxu0 0.0
          %777 = vmatprep.subr.mxu0 0.0
          %778 = vmatpush1.msra.mxu0 0.0
          %779 = vmatprep.subr.mxu0 0.0
          %780 = vmatpush1.msra.mxu0 0.0
          %781 = vmatprep.subr.mxu0 0.0
          %782 = vmatpush1.msra.mxu0 0.0
          %783 = vmatprep.subr.mxu0 0.0
          %784 = vmatpush1.msra.mxu0 0.0
          %785 = vmatprep.subr.mxu0 0.0
          %786 = vmatpush1.msra.mxu0 0.0
          %787 = vmatprep.subr.mxu0 0.0
          %788 = vmatpush1.msra.mxu0 0.0
          %789 = vmatprep.subr.mxu0 0.0
          %790 = vmatpush1.msra.mxu0 0.0
          %791 = vmatprep.subr.mxu0 0.0
          %792 = vmatpush1.msra.mxu0 0.0
          %793 = vmatprep.subr.mxu0 0.0
          %794 = vmatpush1.msra.mxu0 0.0
          %795 = vmatprep.subr.mxu0 0.0
          %796 = vmatpush1.msra.mxu0 0.0
          %797 = vmatprep.subr.mxu0 0.0
          %798 = vmatpush1.msra.mxu0 0.0
          %799 = vmatprep.subr.mxu0 0.0
          %800 = vmatpush1.msra.mxu0 0.0
          %801 = vmatprep.subr.mxu0 0.0
          %802 = vmatpush1.msra.mxu0 0.0
          %803 = vmatprep.subr.mxu0 0.0
          %804 = vmatpush1.msra.mxu0 0.0
          %805 = vmatprep.subr.mxu0 0.0
          %806 = vmatpush1.msra.mxu0 0.0
          %807 = vmatprep.subr.mxu0 0.0
          %808 = vmatpush1.msra.mxu0 0.0
          %809 = vmatprep.subr.mxu0 0.0
          %810 = vmatpush1.msra.mxu0 0.0
          %811 = vmatprep.subr.mxu0 0.0
          %812 = vmatpush1.msra.mxu0 0.0
          %813 = vmatprep.subr.mxu0 0.0
          %814 = vmatpush1.msra.mxu0 0.0
          %815 = vmatprep.subr.mxu0 0.0
          %816 = vmatpush1.msra.mxu0 0.0
          %817 = vmatprep.mubr.f32.mxu0 0.0
          %818 = vmatmul.mubr.f32.gmra.mrb[0].mxu0 %v751
          %v819 = vpop.f32.mrb[0].mxu0
          %v820 = vadd.f32 0.0, %v819
          %v821 = vpop.f32.mrb[0].mxu0
          %822 = vdwg.mxu0
          %v823 = vadd.f32 %v748, %v820
          %v824 = vxor.u32 %v823, 2147483648
          %v825 = vmul.f32 %v824, 1.442695
          %v826 = vpow.pop %v825
          %v827 = vadd.f32 %v826, 1.0
          %v828 = vrcp.pop %v827
          %v829 = vmul.f32 1.0, %v828
          %v830 = vtanh.pop %v823
          %v831 = vld [vmem:[#allocation4] sm:$0xff]
          %833 = vrot.lane.b32.xlu0 %v831, 32
          %v834 = vpop.permute.xlu0 %833
          %v836 = vmul.f32 %v829, %v834
          %838 = vrot.lane.b32.xlu0 %v830, 64
          %v839 = vpop.permute.xlu0 %838
          %v841 = vmul.f32 %v829, %v839
          %843 = vrot.lane.b32.xlu0 %v841, 32
          %v844 = vpop.permute.xlu0 %843
          %v846 = vadd.f32 %v836, %v844
          %v847 = vtanh.pop %v846
          %849 = vrot.lane.b32.xlu0 %v847, 64
          %v850 = vpop.permute.xlu0 %849
          %v852 = vmul.f32 %v829, %v850
          %854 = vrot.lane.b32.xlu0 %v852, 32
          %v855 = vpop.permute.xlu0 %854
          %857 = vst.msk [vmem:[#allocation3] sm:$0xff] %vm517, %v855
          %859 = vrot.lane.b32.xlu0 %v846, 96
          %v860 = vpop.permute.xlu0 %859
          %862 = vst.msk [vmem:[#allocation4] sm:$0xff] %vm517, %v860
          %863 = vst.msk [vmem:[%s339 + $0x10] sm:$0xff] %vm517, %v855
          %v864 = vld [vmem:[#allocation2 + $0x18] sm:$0xff]
          %v865 = vld [vmem:[#allocation3] sm:$0xff]
          %v867 = vsel %vm517, %v865, 0
          %869 = vmatprep.subr.mxu0 0.0
          %870 = vmatpush1.msra.mxu0 %v507
          %871 = vmatprep.subr.mxu0 0.0
          %872 = vmatpush1.msra.mxu0 %v508
          %873 = vmatprep.subr.mxu0 0.0
          %874 = vmatpush1.msra.mxu0 %v509
          %875 = vmatprep.subr.mxu0 0.0
          %876 = vmatpush1.msra.mxu0 %v510
          %877 = vmatprep.subr.mxu0 0.0
          %878 = vmatpush1.msra.mxu0 0.0
          %879 = vmatprep.subr.mxu0 0.0
          %880 = vmatpush1.msra.mxu0 0.0
          %881 = vmatprep.subr.mxu0 0.0
          %882 = vmatpush1.msra.mxu0 0.0
          %883 = vmatprep.subr.mxu0 0.0
          %884 = vmatpush1.msra.mxu0 0.0
          %885 = vmatprep.subr.mxu0 0.0
          %886 = vmatpush1.msra.mxu0 0.0
          %887 = vmatprep.subr.mxu0 0.0
          %888 = vmatpush1.msra.mxu0 0.0
          %889 = vmatprep.subr.mxu0 0.0
          %890 = vmatpush1.msra.mxu0 0.0
          %891 = vmatprep.subr.mxu0 0.0
          %892 = vmatpush1.msra.mxu0 0.0
          %893 = vmatprep.subr.mxu0 0.0
          %894 = vmatpush1.msra.mxu0 0.0
          %895 = vmatprep.subr.mxu0 0.0
          %896 = vmatpush1.msra.mxu0 0.0
          %897 = vmatprep.subr.mxu0 0.0
          %898 = vmatpush1.msra.mxu0 0.0
          %899 = vmatprep.subr.mxu0 0.0
          %900 = vmatpush1.msra.mxu0 0.0
          %901 = vmatprep.subr.mxu0 0.0
          %902 = vmatpush1.msra.mxu0 0.0
          %903 = vmatprep.subr.mxu0 0.0
          %904 = vmatpush1.msra.mxu0 0.0
          %905 = vmatprep.subr.mxu0 0.0
          %906 = vmatpush1.msra.mxu0 0.0
          %907 = vmatprep.subr.mxu0 0.0
          %908 = vmatpush1.msra.mxu0 0.0
          %909 = vmatprep.subr.mxu0 0.0
          %910 = vmatpush1.msra.mxu0 0.0
          %911 = vmatprep.subr.mxu0 0.0
          %912 = vmatpush1.msra.mxu0 0.0
          %913 = vmatprep.subr.mxu0 0.0
          %914 = vmatpush1.msra.mxu0 0.0
          %915 = vmatprep.subr.mxu0 0.0
          %916 = vmatpush1.msra.mxu0 0.0
          %917 = vmatprep.subr.mxu0 0.0
          %918 = vmatpush1.msra.mxu0 0.0
          %919 = vmatprep.subr.mxu0 0.0
          %920 = vmatpush1.msra.mxu0 0.0
          %921 = vmatprep.subr.mxu0 0.0
          %922 = vmatpush1.msra.mxu0 0.0
          %923 = vmatprep.subr.mxu0 0.0
          %924 = vmatpush1.msra.mxu0 0.0
          %925 = vmatprep.subr.mxu0 0.0
          %926 = vmatpush1.msra.mxu0 0.0
          %927 = vmatprep.subr.mxu0 0.0
          %928 = vmatpush1.msra.mxu0 0.0
          %929 = vmatprep.subr.mxu0 0.0
          %930 = vmatpush1.msra.mxu0 0.0
          %931 = vmatprep.subr.mxu0 0.0
          %932 = vmatpush1.msra.mxu0 0.0
          %933 = vmatprep.mubr.f32.mxu0 0.0
          %934 = vmatmul.mubr.f32.gmra.mrb[0].mxu0 %v867
          %v935 = vpop.f32.mrb[0].mxu0
          %v936 = vadd.f32 0.0, %v935
          %v937 = vpop.f32.mrb[0].mxu0
          %938 = vdwg.mxu0
          %v939 = vadd.f32 %v864, %v936
          %v940 = vxor.u32 %v939, 2147483648
          %v941 = vmul.f32 %v940, 1.442695
          %v942 = vpow.pop %v941
          %v943 = vadd.f32 %v942, 1.0
          %v944 = vrcp.pop %v943
          %v945 = vmul.f32 1.0, %v944
          %v946 = vtanh.pop %v939
          %v947 = vld [vmem:[#allocation4] sm:$0xff]
          %949 = vrot.lane.b32.xlu0 %v947, 32
          %v950 = vpop.permute.xlu0 %949
          %v952 = vmul.f32 %v945, %v950
          %954 = vrot.lane.b32.xlu0 %v946, 64
          %v955 = vpop.permute.xlu0 %954
          %v957 = vmul.f32 %v945, %v955
          %959 = vrot.lane.b32.xlu0 %v957, 32
          %v960 = vpop.permute.xlu0 %959
          %v962 = vadd.f32 %v952, %v960
          %v963 = vtanh.pop %v962
          %965 = vrot.lane.b32.xlu0 %v963, 64
          %v966 = vpop.permute.xlu0 %965
          %v968 = vmul.f32 %v945, %v966
          %970 = vrot.lane.b32.xlu0 %v968, 32
          %v971 = vpop.permute.xlu0 %970
          %973 = vst.msk [vmem:[#allocation3] sm:$0xff] %vm517, %v971
          %975 = vrot.lane.b32.xlu0 %v962, 96
          %v976 = vpop.permute.xlu0 %975
          %978 = vst.msk [vmem:[#allocation4] sm:$0xff] %vm517, %v976
          %979 = vst.msk [vmem:[%s339 + $0x18] sm:$0xff] %vm517, %v971
          %v980 = vld [vmem:[#allocation2 + $0x20] sm:$0xff]
          %v981 = vld [vmem:[#allocation3] sm:$0xff]
          %v983 = vsel %vm517, %v981, 0
          %985 = vmatprep.subr.mxu0 0.0
          %986 = vmatpush1.msra.mxu0 %v507
          %987 = vmatprep.subr.mxu0 0.0
          %988 = vmatpush1.msra.mxu0 %v508
          %989 = vmatprep.subr.mxu0 0.0
          %990 = vmatpush1.msra.mxu0 %v509
          %991 = vmatprep.subr.mxu0 0.0
          %992 = vmatpush1.msra.mxu0 %v510
          %993 = vmatprep.subr.mxu0 0.0
          %994 = vmatpush1.msra.mxu0 0.0
          %995 = vmatprep.subr.mxu0 0.0
          %996 = vmatpush1.msra.mxu0 0.0
          %997 = vmatprep.subr.mxu0 0.0
          %998 = vmatpush1.msra.mxu0 0.0
          %999 = vmatprep.subr.mxu0 0.0
          %1000 = vmatpush1.msra.mxu0 0.0
          %1001 = vmatprep.subr.mxu0 0.0
          %1002 = vmatpush1.msra.mxu0 0.0
          %1003 = vmatprep.subr.mxu0 0.0
          %1004 = vmatpush1.msra.mxu0 0.0
          %1005 = vmatprep.subr.mxu0 0.0
          %1006 = vmatpush1.msra.mxu0 0.0
          %1007 = vmatprep.subr.mxu0 0.0
          %1008 = vmatpush1.msra.mxu0 0.0
          %1009 = vmatprep.subr.mxu0 0.0
          %1010 = vmatpush1.msra.mxu0 0.0
          %1011 = vmatprep.subr.mxu0 0.0
          %1012 = vmatpush1.msra.mxu0 0.0
          %1013 = vmatprep.subr.mxu0 0.0
          %1014 = vmatpush1.msra.mxu0 0.0
          %1015 = vmatprep.subr.mxu0 0.0
          %1016 = vmatpush1.msra.mxu0 0.0
          %1017 = vmatprep.subr.mxu0 0.0
          %1018 = vmatpush1.msra.mxu0 0.0
          %1019 = vmatprep.subr.mxu0 0.0
          %1020 = vmatpush1.msra.mxu0 0.0
          %1021 = vmatprep.subr.mxu0 0.0
          %1022 = vmatpush1.msra.mxu0 0.0
          %1023 = vmatprep.subr.mxu0 0.0
          %1024 = vmatpush1.msra.mxu0 0.0
          %1025 = vmatprep.subr.mxu0 0.0
          %1026 = vmatpush1.msra.mxu0 0.0
          %1027 = vmatprep.subr.mxu0 0.0
          %1028 = vmatpush1.msra.mxu0 0.0
          %1029 = vmatprep.subr.mxu0 0.0
          %1030 = vmatpush1.msra.mxu0 0.0
          %1031 = vmatprep.subr.mxu0 0.0
          %1032 = vmatpush1.msra.mxu0 0.0
          %1033 = vmatprep.subr.mxu0 0.0
          %1034 = vmatpush1.msra.mxu0 0.0
          %1035 = vmatprep.subr.mxu0 0.0
          %1036 = vmatpush1.msra.mxu0 0.0
          %1037 = vmatprep.subr.mxu0 0.0
          %1038 = vmatpush1.msra.mxu0 0.0
          %1039 = vmatprep.subr.mxu0 0.0
          %1040 = vmatpush1.msra.mxu0 0.0
          %1041 = vmatprep.subr.mxu0 0.0
          %1042 = vmatpush1.msra.mxu0 0.0
          %1043 = vmatprep.subr.mxu0 0.0
          %1044 = vmatpush1.msra.mxu0 0.0
          %1045 = vmatprep.subr.mxu0 0.0
          %1046 = vmatpush1.msra.mxu0 0.0
          %1047 = vmatprep.subr.mxu0 0.0
          %1048 = vmatpush1.msra.mxu0 0.0
          %1049 = vmatprep.mubr.f32.mxu0 0.0
          %1050 = vmatmul.mubr.f32.gmra.mrb[0].mxu0 %v983
          %v1051 = vpop.f32.mrb[0].mxu0
          %v1052 = vadd.f32 0.0, %v1051
          %v1053 = vpop.f32.mrb[0].mxu0
          %1054 = vdwg.mxu0
          %v1055 = vadd.f32 %v980, %v1052
          %v1056 = vxor.u32 %v1055, 2147483648
          %v1057 = vmul.f32 %v1056, 1.442695
          %v1058 = vpow.pop %v1057
          %v1059 = vadd.f32 %v1058, 1.0
          %v1060 = vrcp.pop %v1059
          %v1061 = vmul.f32 1.0, %v1060
          %v1062 = vtanh.pop %v1055
          %v1063 = vld [vmem:[#allocation4] sm:$0xff]
          %1065 = vrot.lane.b32.xlu0 %v1063, 32
          %v1066 = vpop.permute.xlu0 %1065
          %v1068 = vmul.f32 %v1061, %v1066
          %1070 = vrot.lane.b32.xlu0 %v1062, 64
          %v1071 = vpop.permute.xlu0 %1070
          %v1073 = vmul.f32 %v1061, %v1071
          %1075 = vrot.lane.b32.xlu0 %v1073, 32
          %v1076 = vpop.permute.xlu0 %1075
          %v1078 = vadd.f32 %v1068, %v1076
          %v1079 = vtanh.pop %v1078
          %1081 = vrot.lane.b32.xlu0 %v1079, 64
          %v1082 = vpop.permute.xlu0 %1081
          %v1084 = vmul.f32 %v1061, %v1082
          %1086 = vrot.lane.b32.xlu0 %v1084, 32
          %v1087 = vpop.permute.xlu0 %1086
          %1089 = vst.msk [vmem:[#allocation3] sm:$0xff] %vm517, %v1087
          %1091 = vrot.lane.b32.xlu0 %v1078, 96
          %v1092 = vpop.permute.xlu0 %1091
          %1094 = vst.msk [vmem:[#allocation4] sm:$0xff] %vm517, %v1092
          %1095 = vst.msk [vmem:[%s339 + $0x20] sm:$0xff] %vm517, %v1087
          %v1096 = vld [vmem:[#allocation2 + $0x28] sm:$0xff]
          %v1097 = vld [vmem:[#allocation3] sm:$0xff]
          %v1099 = vsel %vm517, %v1097, 0
          %1101 = vmatprep.subr.mxu0 0.0
          %1102 = vmatpush1.msra.mxu0 %v507
          %1103 = vmatprep.subr.mxu0 0.0
          %1104 = vmatpush1.msra.mxu0 %v508
          %1105 = vmatprep.subr.mxu0 0.0
          %1106 = vmatpush1.msra.mxu0 %v509
          %1107 = vmatprep.subr.mxu0 0.0
          %1108 = vmatpush1.msra.mxu0 %v510
          %1109 = vmatprep.subr.mxu0 0.0
          %1110 = vmatpush1.msra.mxu0 0.0
          %1111 = vmatprep.subr.mxu0 0.0
          %1112 = vmatpush1.msra.mxu0 0.0
          %1113 = vmatprep.subr.mxu0 0.0
          %1114 = vmatpush1.msra.mxu0 0.0
          %1115 = vmatprep.subr.mxu0 0.0
          %1116 = vmatpush1.msra.mxu0 0.0
          %1117 = vmatprep.subr.mxu0 0.0
          %1118 = vmatpush1.msra.mxu0 0.0
          %1119 = vmatprep.subr.mxu0 0.0
          %1120 = vmatpush1.msra.mxu0 0.0
          %1121 = vmatprep.subr.mxu0 0.0
          %1122 = vmatpush1.msra.mxu0 0.0
          %1123 = vmatprep.subr.mxu0 0.0
          %1124 = vmatpush1.msra.mxu0 0.0
          %1125 = vmatprep.subr.mxu0 0.0
          %1126 = vmatpush1.msra.mxu0 0.0
          %1127 = vmatprep.subr.mxu0 0.0
          %1128 = vmatpush1.msra.mxu0 0.0
          %1129 = vmatprep.subr.mxu0 0.0
          %1130 = vmatpush1.msra.mxu0 0.0
          %1131 = vmatprep.subr.mxu0 0.0
          %1132 = vmatpush1.msra.mxu0 0.0
          %1133 = vmatprep.subr.mxu0 0.0
          %1134 = vmatpush1.msra.mxu0 0.0
          %1135 = vmatprep.subr.mxu0 0.0
          %1136 = vmatpush1.msra.mxu0 0.0
          %1137 = vmatprep.subr.mxu0 0.0
          %1138 = vmatpush1.msra.mxu0 0.0
          %1139 = vmatprep.subr.mxu0 0.0
          %1140 = vmatpush1.msra.mxu0 0.0
          %1141 = vmatprep.subr.mxu0 0.0
          %1142 = vmatpush1.msra.mxu0 0.0
          %1143 = vmatprep.subr.mxu0 0.0
          %1144 = vmatpush1.msra.mxu0 0.0
          %1145 = vmatprep.subr.mxu0 0.0
          %1146 = vmatpush1.msra.mxu0 0.0
          %1147 = vmatprep.subr.mxu0 0.0
          %1148 = vmatpush1.msra.mxu0 0.0
          %1149 = vmatprep.subr.mxu0 0.0
          %1150 = vmatpush1.msra.mxu0 0.0
          %1151 = vmatprep.subr.mxu0 0.0
          %1152 = vmatpush1.msra.mxu0 0.0
          %1153 = vmatprep.subr.mxu0 0.0
          %1154 = vmatpush1.msra.mxu0 0.0
          %1155 = vmatprep.subr.mxu0 0.0
          %1156 = vmatpush1.msra.mxu0 0.0
          %1157 = vmatprep.subr.mxu0 0.0
          %1158 = vmatpush1.msra.mxu0 0.0
          %1159 = vmatprep.subr.mxu0 0.0
          %1160 = vmatpush1.msra.mxu0 0.0
          %1161 = vmatprep.subr.mxu0 0.0
          %1162 = vmatpush1.msra.mxu0 0.0
          %1163 = vmatprep.subr.mxu0 0.0
          %1164 = vmatpush1.msra.mxu0 0.0
          %1165 = vmatprep.mubr.f32.mxu0 0.0
          %1166 = vmatmul.mubr.f32.gmra.mrb[0].mxu0 %v1099
          %v1167 = vpop.f32.mrb[0].mxu0
          %v1168 = vadd.f32 0.0, %v1167
          %v1169 = vpop.f32.mrb[0].mxu0
          %1170 = vdwg.mxu0
          %v1171 = vadd.f32 %v1096, %v1168
          %v1172 = vxor.u32 %v1171, 2147483648
          %v1173 = vmul.f32 %v1172, 1.442695
          %v1174 = vpow.pop %v1173
          %v1175 = vadd.f32 %v1174, 1.0
          %v1176 = vrcp.pop %v1175
          %v1177 = vmul.f32 1.0, %v1176
          %v1178 = vtanh.pop %v1171
          %v1179 = vld [vmem:[#allocation4] sm:$0xff]
          %1181 = vrot.lane.b32.xlu0 %v1179, 32
          %v1182 = vpop.permute.xlu0 %1181
          %v1184 = vmul.f32 %v1177, %v1182
          %1186 = vrot.lane.b32.xlu0 %v1178, 64
          %v1187 = vpop.permute.xlu0 %1186
          %v1189 = vmul.f32 %v1177, %v1187
          %1191 = vrot.lane.b32.xlu0 %v1189, 32
          %v1192 = vpop.permute.xlu0 %1191
          %v1194 = vadd.f32 %v1184, %v1192
          %v1195 = vtanh.pop %v1194
          %1197 = vrot.lane.b32.xlu0 %v1195, 64
          %v1198 = vpop.permute.xlu0 %1197
          %v1200 = vmul.f32 %v1177, %v1198
          %1202 = vrot.lane.b32.xlu0 %v1200, 32
          %v1203 = vpop.permute.xlu0 %1202
          %1205 = vst.msk [vmem:[#allocation3] sm:$0xff] %vm517, %v1203
          %1207 = vrot.lane.b32.xlu0 %v1194, 96
          %v1208 = vpop.permute.xlu0 %1207
          %1210 = vst.msk [vmem:[#allocation4] sm:$0xff] %vm517, %v1208
          %1211 = vst.msk [vmem:[%s339 + $0x28] sm:$0xff] %vm517, %v1203
          %v1212 = vld [vmem:[#allocation2 + $0x30] sm:$0xff]
          %v1213 = vld [vmem:[#allocation3] sm:$0xff]
          %v1215 = vsel %vm517, %v1213, 0
          %1217 = vmatprep.subr.mxu0 0.0
          %1218 = vmatpush1.msra.mxu0 %v507
          %1219 = vmatprep.subr.mxu0 0.0
          %1220 = vmatpush1.msra.mxu0 %v508
          %1221 = vmatprep.subr.mxu0 0.0
          %1222 = vmatpush1.msra.mxu0 %v509
          %1223 = vmatprep.subr.mxu0 0.0
          %1224 = vmatpush1.msra.mxu0 %v510
          %1225 = vmatprep.subr.mxu0 0.0
          %1226 = vmatpush1.msra.mxu0 0.0
          %1227 = vmatprep.subr.mxu0 0.0
          %1228 = vmatpush1.msra.mxu0 0.0
          %1229 = vmatprep.subr.mxu0 0.0
          %1230 = vmatpush1.msra.mxu0 0.0
          %1231 = vmatprep.subr.mxu0 0.0
          %1232 = vmatpush1.msra.mxu0 0.0
          %1233 = vmatprep.subr.mxu0 0.0
          %1234 = vmatpush1.msra.mxu0 0.0
          %1235 = vmatprep.subr.mxu0 0.0
          %1236 = vmatpush1.msra.mxu0 0.0
          %1237 = vmatprep.subr.mxu0 0.0
          %1238 = vmatpush1.msra.mxu0 0.0
          %1239 = vmatprep.subr.mxu0 0.0
          %1240 = vmatpush1.msra.mxu0 0.0
          %1241 = vmatprep.subr.mxu0 0.0
          %1242 = vmatpush1.msra.mxu0 0.0
          %1243 = vmatprep.subr.mxu0 0.0
          %1244 = vmatpush1.msra.mxu0 0.0
          %1245 = vmatprep.subr.mxu0 0.0
          %1246 = vmatpush1.msra.mxu0 0.0
          %1247 = vmatprep.subr.mxu0 0.0
          %1248 = vmatpush1.msra.mxu0 0.0
          %1249 = vmatprep.subr.mxu0 0.0
          %1250 = vmatpush1.msra.mxu0 0.0
          %1251 = vmatprep.subr.mxu0 0.0
          %1252 = vmatpush1.msra.mxu0 0.0
          %1253 = vmatprep.subr.mxu0 0.0
          %1254 = vmatpush1.msra.mxu0 0.0
          %1255 = vmatprep.subr.mxu0 0.0
          %1256 = vmatpush1.msra.mxu0 0.0
          %1257 = vmatprep.subr.mxu0 0.0
          %1258 = vmatpush1.msra.mxu0 0.0
          %1259 = vmatprep.subr.mxu0 0.0
          %1260 = vmatpush1.msra.mxu0 0.0
          %1261 = vmatprep.subr.mxu0 0.0
          %1262 = vmatpush1.msra.mxu0 0.0
          %1263 = vmatprep.subr.mxu0 0.0
          %1264 = vmatpush1.msra.mxu0 0.0
          %1265 = vmatprep.subr.mxu0 0.0
          %1266 = vmatpush1.msra.mxu0 0.0
          %1267 = vmatprep.subr.mxu0 0.0
          %1268 = vmatpush1.msra.mxu0 0.0
          %1269 = vmatprep.subr.mxu0 0.0
          %1270 = vmatpush1.msra.mxu0 0.0
          %1271 = vmatprep.subr.mxu0 0.0
          %1272 = vmatpush1.msra.mxu0 0.0
          %1273 = vmatprep.subr.mxu0 0.0
          %1274 = vmatpush1.msra.mxu0 0.0
          %1275 = vmatprep.subr.mxu0 0.0
          %1276 = vmatpush1.msra.mxu0 0.0
          %1277 = vmatprep.subr.mxu0 0.0
          %1278 = vmatpush1.msra.mxu0 0.0
          %1279 = vmatprep.subr.mxu0 0.0
          %1280 = vmatpush1.msra.mxu0 0.0
          %1281 = vmatprep.mubr.f32.mxu0 0.0
          %1282 = vmatmul.mubr.f32.gmra.mrb[0].mxu0 %v1215
          %v1283 = vpop.f32.mrb[0].mxu0
          %v1284 = vadd.f32 0.0, %v1283
          %v1285 = vpop.f32.mrb[0].mxu0
          %1286 = vdwg.mxu0
          %v1287 = vadd.f32 %v1212, %v1284
          %v1288 = vxor.u32 %v1287, 2147483648
          %v1289 = vmul.f32 %v1288, 1.442695
          %v1290 = vpow.pop %v1289
          %v1291 = vadd.f32 %v1290, 1.0
          %v1292 = vrcp.pop %v1291
          %v1293 = vmul.f32 1.0, %v1292
          %v1294 = vtanh.pop %v1287
          %v1295 = vld [vmem:[#allocation4] sm:$0xff]
          %1297 = vrot.lane.b32.xlu0 %v1295, 32
          %v1298 = vpop.permute.xlu0 %1297
          %v1300 = vmul.f32 %v1293, %v1298
          %1302 = vrot.lane.b32.xlu0 %v1294, 64
          %v1303 = vpop.permute.xlu0 %1302
          %v1305 = vmul.f32 %v1293, %v1303
          %1307 = vrot.lane.b32.xlu0 %v1305, 32
          %v1308 = vpop.permute.xlu0 %1307
          %v1310 = vadd.f32 %v1300, %v1308
          %v1311 = vtanh.pop %v1310
          %1313 = vrot.lane.b32.xlu0 %v1311, 64
          %v1314 = vpop.permute.xlu0 %1313
          %v1316 = vmul.f32 %v1293, %v1314
          %1318 = vrot.lane.b32.xlu0 %v1316, 32
          %v1319 = vpop.permute.xlu0 %1318
          %1321 = vst.msk [vmem:[#allocation3] sm:$0xff] %vm517, %v1319
          %1323 = vrot.lane.b32.xlu0 %v1310, 96
          %v1324 = vpop.permute.xlu0 %1323
          %1326 = vst.msk [vmem:[#allocation4] sm:$0xff] %vm517, %v1324
          %1327 = vst.msk [vmem:[%s339 + $0x30] sm:$0xff] %vm517, %v1319
          %v1328 = vld [vmem:[#allocation2 + $0x38] sm:$0xff]
          %v1329 = vld [vmem:[#allocation3] sm:$0xff]
          %v1331 = vsel %vm517, %v1329, 0
          %1333 = vmatprep.subr.mxu0 0.0
          %1334 = vmatpush1.msra.mxu0 %v507
          %1335 = vmatprep.subr.mxu0 0.0
          %1336 = vmatpush1.msra.mxu0 %v508
          %1337 = vmatprep.subr.mxu0 0.0
          %1338 = vmatpush1.msra.mxu0 %v509
          %1339 = vmatprep.subr.mxu0 0.0
          %1340 = vmatpush1.msra.mxu0 %v510
          %1341 = vmatprep.subr.mxu0 0.0
          %1342 = vmatpush1.msra.mxu0 0.0
          %1343 = vmatprep.subr.mxu0 0.0
          %1344 = vmatpush1.msra.mxu0 0.0
          %1345 = vmatprep.subr.mxu0 0.0
          %1346 = vmatpush1.msra.mxu0 0.0
          %1347 = vmatprep.subr.mxu0 0.0
          %1348 = vmatpush1.msra.mxu0 0.0
          %1349 = vmatprep.subr.mxu0 0.0
          %1350 = vmatpush1.msra.mxu0 0.0
          %1351 = vmatprep.subr.mxu0 0.0
          %1352 = vmatpush1.msra.mxu0 0.0
          %1353 = vmatprep.subr.mxu0 0.0
          %1354 = vmatpush1.msra.mxu0 0.0
          %1355 = vmatprep.subr.mxu0 0.0
          %1356 = vmatpush1.msra.mxu0 0.0
          %1357 = vmatprep.subr.mxu0 0.0
          %1358 = vmatpush1.msra.mxu0 0.0
          %1359 = vmatprep.subr.mxu0 0.0
          %1360 = vmatpush1.msra.mxu0 0.0
          %1361 = vmatprep.subr.mxu0 0.0
          %1362 = vmatpush1.msra.mxu0 0.0
          %1363 = vmatprep.subr.mxu0 0.0
          %1364 = vmatpush1.msra.mxu0 0.0
          %1365 = vmatprep.subr.mxu0 0.0
          %1366 = vmatpush1.msra.mxu0 0.0
          %1367 = vmatprep.subr.mxu0 0.0
          %1368 = vmatpush1.msra.mxu0 0.0
          %1369 = vmatprep.subr.mxu0 0.0
          %1370 = vmatpush1.msra.mxu0 0.0
          %1371 = vmatprep.subr.mxu0 0.0
          %1372 = vmatpush1.msra.mxu0 0.0
          %1373 = vmatprep.subr.mxu0 0.0
          %1374 = vmatpush1.msra.mxu0 0.0
          %1375 = vmatprep.subr.mxu0 0.0
          %1376 = vmatpush1.msra.mxu0 0.0
          %1377 = vmatprep.subr.mxu0 0.0
          %1378 = vmatpush1.msra.mxu0 0.0
          %1379 = vmatprep.subr.mxu0 0.0
          %1380 = vmatpush1.msra.mxu0 0.0
          %1381 = vmatprep.subr.mxu0 0.0
          %1382 = vmatpush1.msra.mxu0 0.0
          %1383 = vmatprep.subr.mxu0 0.0
          %1384 = vmatpush1.msra.mxu0 0.0
          %1385 = vmatprep.subr.mxu0 0.0
          %1386 = vmatpush1.msra.mxu0 0.0
          %1387 = vmatprep.subr.mxu0 0.0
          %1388 = vmatpush1.msra.mxu0 0.0
          %1389 = vmatprep.subr.mxu0 0.0
          %1390 = vmatpush1.msra.mxu0 0.0
          %1391 = vmatprep.subr.mxu0 0.0
          %1392 = vmatpush1.msra.mxu0 0.0
          %1393 = vmatprep.subr.mxu0 0.0
          %1394 = vmatpush1.msra.mxu0 0.0
          %1395 = vmatprep.subr.mxu0 0.0
          %1396 = vmatpush1.msra.mxu0 0.0
          %1397 = vmatprep.mubr.f32.mxu0 0.0
          %1398 = vmatmul.mubr.f32.gmra.mrb[0].mxu0 %v1331
          %v1399 = vpop.f32.mrb[0].mxu0
          %v1400 = vadd.f32 0.0, %v1399
          %v1401 = vpop.f32.mrb[0].mxu0
          %1402 = vdwg.mxu0
          %v1403 = vadd.f32 %v1328, %v1400
          %v1404 = vxor.u32 %v1403, 2147483648
          %v1405 = vmul.f32 %v1404, 1.442695
          %v1406 = vpow.pop %v1405
          %v1407 = vadd.f32 %v1406, 1.0
          %v1408 = vrcp.pop %v1407
          %v1409 = vmul.f32 1.0, %v1408
          %v1410 = vtanh.pop %v1403
          %v1411 = vld [vmem:[#allocation4] sm:$0xff]
          %1413 = vrot.lane.b32.xlu0 %v1411, 32
          %v1414 = vpop.permute.xlu0 %1413
          %v1416 = vmul.f32 %v1409, %v1414
          %1418 = vrot.lane.b32.xlu0 %v1410, 64
          %v1419 = vpop.permute.xlu0 %1418
          %v1421 = vmul.f32 %v1409, %v1419
          %1423 = vrot.lane.b32.xlu0 %v1421, 32
          %v1424 = vpop.permute.xlu0 %1423
          %v1426 = vadd.f32 %v1416, %v1424
          %v1427 = vtanh.pop %v1426
          %1429 = vrot.lane.b32.xlu0 %v1427, 64
          %v1430 = vpop.permute.xlu0 %1429
          %v1432 = vmul.f32 %v1409, %v1430
          %1434 = vrot.lane.b32.xlu0 %v1432, 32
          %v1435 = vpop.permute.xlu0 %1434
          %1437 = vst.msk [vmem:[#allocation3] sm:$0xff] %vm517, %v1435
          %1439 = vrot.lane.b32.xlu0 %v1426, 96
          %v1440 = vpop.permute.xlu0 %1439
          %1442 = vst.msk [vmem:[#allocation4] sm:$0xff] %vm517, %v1440
          %1443 = vst.msk [vmem:[%s339 + $0x38] sm:$0xff] %vm517, %v1435
        $region48: #{tpu_custom_call.1} parent=35 // pred_fallthru
          _
        %p1444 = scmp.eq.s32.totalorder %s22, 1
        // Predicated region
        $region49: #{tpu_custom_call.1} parent=35 // pred_check
          %p1445 = pneg %p1444
        $region50: #{tpu_custom_call.1} parent=35 // pred_check_branch
          %1447 = sbr.rel (%p1445) target = $region52
        $region51: #{tpu_custom_call.1} parent=35 // pred_region
          %v1448 = vld [vmem:[#allocation2 + $0x38] sm:$0xff]
          %v1449 = vld [vmem:[#allocation3] sm:$0xff]
          %vm1450 = vcmask 261120
          %v1452 = vsel %vm1450, %v1449, 0
          %1454 = vmatprep.subr.mxu0 0.0
          %1455 = vmatpush1.msra.mxu0 %v507
          %1456 = vmatprep.subr.mxu0 0.0
          %1457 = vmatpush1.msra.mxu0 %v508
          %1458 = vmatprep.subr.mxu0 0.0
          %1459 = vmatpush1.msra.mxu0 %v509
          %1460 = vmatprep.subr.mxu0 0.0
          %1461 = vmatpush1.msra.mxu0 %v510
          %1462 = vmatprep.subr.mxu0 0.0
          %1463 = vmatpush1.msra.mxu0 0.0
          %1464 = vmatprep.subr.mxu0 0.0
          %1465 = vmatpush1.msra.mxu0 0.0
          %1466 = vmatprep.subr.mxu0 0.0
          %1467 = vmatpush1.msra.mxu0 0.0
          %1468 = vmatprep.subr.mxu0 0.0
          %1469 = vmatpush1.msra.mxu0 0.0
          %1470 = vmatprep.subr.mxu0 0.0
          %1471 = vmatpush1.msra.mxu0 0.0
          %1472 = vmatprep.subr.mxu0 0.0
          %1473 = vmatpush1.msra.mxu0 0.0
          %1474 = vmatprep.subr.mxu0 0.0
          %1475 = vmatpush1.msra.mxu0 0.0
          %1476 = vmatprep.subr.mxu0 0.0
          %1477 = vmatpush1.msra.mxu0 0.0
          %1478 = vmatprep.subr.mxu0 0.0
          %1479 = vmatpush1.msra.mxu0 0.0
          %1480 = vmatprep.subr.mxu0 0.0
          %1481 = vmatpush1.msra.mxu0 0.0
          %1482 = vmatprep.subr.mxu0 0.0
          %1483 = vmatpush1.msra.mxu0 0.0
          %1484 = vmatprep.subr.mxu0 0.0
          %1485 = vmatpush1.msra.mxu0 0.0
          %1486 = vmatprep.subr.mxu0 0.0
          %1487 = vmatpush1.msra.mxu0 0.0
          %1488 = vmatprep.subr.mxu0 0.0
          %1489 = vmatpush1.msra.mxu0 0.0
          %1490 = vmatprep.subr.mxu0 0.0
          %1491 = vmatpush1.msra.mxu0 0.0
          %1492 = vmatprep.subr.mxu0 0.0
          %1493 = vmatpush1.msra.mxu0 0.0
          %1494 = vmatprep.subr.mxu0 0.0
          %1495 = vmatpush1.msra.mxu0 0.0
          %1496 = vmatprep.subr.mxu0 0.0
          %1497 = vmatpush1.msra.mxu0 0.0
          %1498 = vmatprep.subr.mxu0 0.0
          %1499 = vmatpush1.msra.mxu0 0.0
          %1500 = vmatprep.subr.mxu0 0.0
          %1501 = vmatpush1.msra.mxu0 0.0
          %1502 = vmatprep.subr.mxu0 0.0
          %1503 = vmatpush1.msra.mxu0 0.0
          %1504 = vmatprep.subr.mxu0 0.0
          %1505 = vmatpush1.msra.mxu0 0.0
          %1506 = vmatprep.subr.mxu0 0.0
          %1507 = vmatpush1.msra.mxu0 0.0
          %1508 = vmatprep.subr.mxu0 0.0
          %1509 = vmatpush1.msra.mxu0 0.0
          %1510 = vmatprep.subr.mxu0 0.0
          %1511 = vmatpush1.msra.mxu0 0.0
          %1512 = vmatprep.subr.mxu0 0.0
          %1513 = vmatpush1.msra.mxu0 0.0
          %1514 = vmatprep.subr.mxu0 0.0
          %1515 = vmatpush1.msra.mxu0 0.0
          %1516 = vmatprep.subr.mxu0 0.0
          %1517 = vmatpush1.msra.mxu0 0.0
          %1518 = vmatprep.mubr.f32.mxu0 0.0
          %1519 = vmatmul.mubr.f32.gmra.mrb[0].mxu0 %v1452
          %v1520 = vpop.f32.mrb[0].mxu0
          %v1521 = vadd.f32 0.0, %v1520
          %v1522 = vpop.f32.mrb[0].mxu0
          %1523 = vdwg.mxu0
          %v1524 = vadd.f32 %v1448, %v1521
          %v1525 = vxor.u32 %v1524, 2147483648
          %v1526 = vmul.f32 %v1525, 1.442695
          %v1527 = vpow.pop %v1526
          %v1528 = vadd.f32 %v1527, 1.0
          %v1529 = vrcp.pop %v1528
          %v1530 = vmul.f32 1.0, %v1529
          %v1531 = vtanh.pop %v1524
          %v1532 = vld [vmem:[#allocation4] sm:$0xff]
          %1534 = vrot.lane.b32.xlu0 %v1532, 32
          %v1535 = vpop.permute.xlu0 %1534
          %v1537 = vmul.f32 %v1530, %v1535
          %1539 = vrot.lane.b32.xlu0 %v1531, 64
          %v1540 = vpop.permute.xlu0 %1539
          %v1542 = vmul.f32 %v1530, %v1540
          %1544 = vrot.lane.b32.xlu0 %v1542, 32
          %v1545 = vpop.permute.xlu0 %1544
          %v1547 = vadd.f32 %v1537, %v1545
          %v1548 = vtanh.pop %v1547
          %1550 = vrot.lane.b32.xlu0 %v1548, 64
          %v1551 = vpop.permute.xlu0 %1550
          %v1553 = vmul.f32 %v1530, %v1551
          %1555 = vrot.lane.b32.xlu0 %v1553, 32
          %v1556 = vpop.permute.xlu0 %1555
          %1558 = vst.msk [vmem:[#allocation3] sm:$0xff] %vm1450, %v1556
          %1560 = vrot.lane.b32.xlu0 %v1547, 96
          %v1561 = vpop.permute.xlu0 %1560
          %1563 = vst.msk [vmem:[#allocation4] sm:$0xff] %vm1450, %v1561
          %1564 = vst.msk [vmem:[%s339 + $0x38] sm:$0xff] %vm1450, %v1556
          %v1565 = vld [vmem:[#allocation2 + $0x30] sm:$0xff]
          %v1566 = vld [vmem:[#allocation3] sm:$0xff]
          %v1568 = vsel %vm1450, %v1566, 0
          %1570 = vmatprep.subr.mxu0 0.0
          %1571 = vmatpush1.msra.mxu0 %v507
          %1572 = vmatprep.subr.mxu0 0.0
          %1573 = vmatpush1.msra.mxu0 %v508
          %1574 = vmatprep.subr.mxu0 0.0
          %1575 = vmatpush1.msra.mxu0 %v509
          %1576 = vmatprep.subr.mxu0 0.0
          %1577 = vmatpush1.msra.mxu0 %v510
          %1578 = vmatprep.subr.mxu0 0.0
          %1579 = vmatpush1.msra.mxu0 0.0
          %1580 = vmatprep.subr.mxu0 0.0
          %1581 = vmatpush1.msra.mxu0 0.0
          %1582 = vmatprep.subr.mxu0 0.0
          %1583 = vmatpush1.msra.mxu0 0.0
          %1584 = vmatprep.subr.mxu0 0.0
          %1585 = vmatpush1.msra.mxu0 0.0
          %1586 = vmatprep.subr.mxu0 0.0
          %1587 = vmatpush1.msra.mxu0 0.0
          %1588 = vmatprep.subr.mxu0 0.0
          %1589 = vmatpush1.msra.mxu0 0.0
          %1590 = vmatprep.subr.mxu0 0.0
          %1591 = vmatpush1.msra.mxu0 0.0
          %1592 = vmatprep.subr.mxu0 0.0
          %1593 = vmatpush1.msra.mxu0 0.0
          %1594 = vmatprep.subr.mxu0 0.0
          %1595 = vmatpush1.msra.mxu0 0.0
          %1596 = vmatprep.subr.mxu0 0.0
          %1597 = vmatpush1.msra.mxu0 0.0
          %1598 = vmatprep.subr.mxu0 0.0
          %1599 = vmatpush1.msra.mxu0 0.0
          %1600 = vmatprep.subr.mxu0 0.0
          %1601 = vmatpush1.msra.mxu0 0.0
          %1602 = vmatprep.subr.mxu0 0.0
          %1603 = vmatpush1.msra.mxu0 0.0
          %1604 = vmatprep.subr.mxu0 0.0
          %1605 = vmatpush1.msra.mxu0 0.0
          %1606 = vmatprep.subr.mxu0 0.0
          %1607 = vmatpush1.msra.mxu0 0.0
          %1608 = vmatprep.subr.mxu0 0.0
          %1609 = vmatpush1.msra.mxu0 0.0
          %1610 = vmatprep.subr.mxu0 0.0
          %1611 = vmatpush1.msra.mxu0 0.0
          %1612 = vmatprep.subr.mxu0 0.0
          %1613 = vmatpush1.msra.mxu0 0.0
          %1614 = vmatprep.subr.mxu0 0.0
          %1615 = vmatpush1.msra.mxu0 0.0
          %1616 = vmatprep.subr.mxu0 0.0
          %1617 = vmatpush1.msra.mxu0 0.0
          %1618 = vmatprep.subr.mxu0 0.0
          %1619 = vmatpush1.msra.mxu0 0.0
          %1620 = vmatprep.subr.mxu0 0.0
          %1621 = vmatpush1.msra.mxu0 0.0
          %1622 = vmatprep.subr.mxu0 0.0
          %1623 = vmatpush1.msra.mxu0 0.0
          %1624 = vmatprep.subr.mxu0 0.0
          %1625 = vmatpush1.msra.mxu0 0.0
          %1626 = vmatprep.subr.mxu0 0.0
          %1627 = vmatpush1.msra.mxu0 0.0
          %1628 = vmatprep.subr.mxu0 0.0
          %1629 = vmatpush1.msra.mxu0 0.0
          %1630 = vmatprep.subr.mxu0 0.0
          %1631 = vmatpush1.msra.mxu0 0.0
          %1632 = vmatprep.subr.mxu0 0.0
          %1633 = vmatpush1.msra.mxu0 0.0
          %1634 = vmatprep.mubr.f32.mxu0 0.0
          %1635 = vmatmul.mubr.f32.gmra.mrb[0].mxu0 %v1568
          %v1636 = vpop.f32.mrb[0].mxu0
          %v1637 = vadd.f32 0.0, %v1636
          %v1638 = vpop.f32.mrb[0].mxu0
          %1639 = vdwg.mxu0
          %v1640 = vadd.f32 %v1565, %v1637
          %v1641 = vxor.u32 %v1640, 2147483648
          %v1642 = vmul.f32 %v1641, 1.442695
          %v1643 = vpow.pop %v1642
          %v1644 = vadd.f32 %v1643, 1.0
          %v1645 = vrcp.pop %v1644
          %v1646 = vmul.f32 1.0, %v1645
          %v1647 = vtanh.pop %v1640
          %v1648 = vld [vmem:[#allocation4] sm:$0xff]
          %1650 = vrot.lane.b32.xlu0 %v1648, 32
          %v1651 = vpop.permute.xlu0 %1650
          %v1653 = vmul.f32 %v1646, %v1651
          %1655 = vrot.lane.b32.xlu0 %v1647, 64
          %v1656 = vpop.permute.xlu0 %1655
          %v1658 = vmul.f32 %v1646, %v1656
          %1660 = vrot.lane.b32.xlu0 %v1658, 32
          %v1661 = vpop.permute.xlu0 %1660
          %v1663 = vadd.f32 %v1653, %v1661
          %v1664 = vtanh.pop %v1663
          %1666 = vrot.lane.b32.xlu0 %v1664, 64
          %v1667 = vpop.permute.xlu0 %1666
          %v1669 = vmul.f32 %v1646, %v1667
          %1671 = vrot.lane.b32.xlu0 %v1669, 32
          %v1672 = vpop.permute.xlu0 %1671
          %1674 = vst.msk [vmem:[#allocation3] sm:$0xff] %vm1450, %v1672
          %1676 = vrot.lane.b32.xlu0 %v1663, 96
          %v1677 = vpop.permute.xlu0 %1676
          %1679 = vst.msk [vmem:[#allocation4] sm:$0xff] %vm1450, %v1677
          %1680 = vst.msk [vmem:[%s339 + $0x30] sm:$0xff] %vm1450, %v1672
          %v1681 = vld [vmem:[#allocation2 + $0x28] sm:$0xff]
          %v1682 = vld [vmem:[#allocation3] sm:$0xff]
          %v1684 = vsel %vm1450, %v1682, 0
          %1686 = vmatprep.subr.mxu0 0.0
          %1687 = vmatpush1.msra.mxu0 %v507
          %1688 = vmatprep.subr.mxu0 0.0
          %1689 = vmatpush1.msra.mxu0 %v508
          %1690 = vmatprep.subr.mxu0 0.0
          %1691 = vmatpush1.msra.mxu0 %v509
          %1692 = vmatprep.subr.mxu0 0.0
          %1693 = vmatpush1.msra.mxu0 %v510
          %1694 = vmatprep.subr.mxu0 0.0
          %1695 = vmatpush1.msra.mxu0 0.0
          %1696 = vmatprep.subr.mxu0 0.0
          %1697 = vmatpush1.msra.mxu0 0.0
          %1698 = vmatprep.subr.mxu0 0.0
          %1699 = vmatpush1.msra.mxu0 0.0
          %1700 = vmatprep.subr.mxu0 0.0
          %1701 = vmatpush1.msra.mxu0 0.0
          %1702 = vmatprep.subr.mxu0 0.0
          %1703 = vmatpush1.msra.mxu0 0.0
          %1704 = vmatprep.subr.mxu0 0.0
          %1705 = vmatpush1.msra.mxu0 0.0
          %1706 = vmatprep.subr.mxu0 0.0
          %1707 = vmatpush1.msra.mxu0 0.0
          %1708 = vmatprep.subr.mxu0 0.0
          %1709 = vmatpush1.msra.mxu0 0.0
          %1710 = vmatprep.subr.mxu0 0.0
          %1711 = vmatpush1.msra.mxu0 0.0
          %1712 = vmatprep.subr.mxu0 0.0
          %1713 = vmatpush1.msra.mxu0 0.0
          %1714 = vmatprep.subr.mxu0 0.0
          %1715 = vmatpush1.msra.mxu0 0.0
          %1716 = vmatprep.subr.mxu0 0.0
          %1717 = vmatpush1.msra.mxu0 0.0
          %1718 = vmatprep.subr.mxu0 0.0
          %1719 = vmatpush1.msra.mxu0 0.0
          %1720 = vmatprep.subr.mxu0 0.0
          %1721 = vmatpush1.msra.mxu0 0.0
          %1722 = vmatprep.subr.mxu0 0.0
          %1723 = vmatpush1.msra.mxu0 0.0
          %1724 = vmatprep.subr.mxu0 0.0
          %1725 = vmatpush1.msra.mxu0 0.0
          %1726 = vmatprep.subr.mxu0 0.0
          %1727 = vmatpush1.msra.mxu0 0.0
          %1728 = vmatprep.subr.mxu0 0.0
          %1729 = vmatpush1.msra.mxu0 0.0
          %1730 = vmatprep.subr.mxu0 0.0
          %1731 = vmatpush1.msra.mxu0 0.0
          %1732 = vmatprep.subr.mxu0 0.0
          %1733 = vmatpush1.msra.mxu0 0.0
          %1734 = vmatprep.subr.mxu0 0.0
          %1735 = vmatpush1.msra.mxu0 0.0
          %1736 = vmatprep.subr.mxu0 0.0
          %1737 = vmatpush1.msra.mxu0 0.0
          %1738 = vmatprep.subr.mxu0 0.0
          %1739 = vmatpush1.msra.mxu0 0.0
          %1740 = vmatprep.subr.mxu0 0.0
          %1741 = vmatpush1.msra.mxu0 0.0
          %1742 = vmatprep.subr.mxu0 0.0
          %1743 = vmatpush1.msra.mxu0 0.0
          %1744 = vmatprep.subr.mxu0 0.0
          %1745 = vmatpush1.msra.mxu0 0.0
          %1746 = vmatprep.subr.mxu0 0.0
          %1747 = vmatpush1.msra.mxu0 0.0
          %1748 = vmatprep.subr.mxu0 0.0
          %1749 = vmatpush1.msra.mxu0 0.0
          %1750 = vmatprep.mubr.f32.mxu0 0.0
          %1751 = vmatmul.mubr.f32.gmra.mrb[0].mxu0 %v1684
          %v1752 = vpop.f32.mrb[0].mxu0
          %v1753 = vadd.f32 0.0, %v1752
          %v1754 = vpop.f32.mrb[0].mxu0
          %1755 = vdwg.mxu0
          %v1756 = vadd.f32 %v1681, %v1753
          %v1757 = vxor.u32 %v1756, 2147483648
          %v1758 = vmul.f32 %v1757, 1.442695
          %v1759 = vpow.pop %v1758
          %v1760 = vadd.f32 %v1759, 1.0
          %v1761 = vrcp.pop %v1760
          %v1762 = vmul.f32 1.0, %v1761
          %v1763 = vtanh.pop %v1756
          %v1764 = vld [vmem:[#allocation4] sm:$0xff]
          %1766 = vrot.lane.b32.xlu0 %v1764, 32
          %v1767 = vpop.permute.xlu0 %1766
          %v1769 = vmul.f32 %v1762, %v1767
          %1771 = vrot.lane.b32.xlu0 %v1763, 64
          %v1772 = vpop.permute.xlu0 %1771
          %v1774 = vmul.f32 %v1762, %v1772
          %1776 = vrot.lane.b32.xlu0 %v1774, 32
          %v1777 = vpop.permute.xlu0 %1776
          %v1779 = vadd.f32 %v1769, %v1777
          %v1780 = vtanh.pop %v1779
          %1782 = vrot.lane.b32.xlu0 %v1780, 64
          %v1783 = vpop.permute.xlu0 %1782
          %v1785 = vmul.f32 %v1762, %v1783
          %1787 = vrot.lane.b32.xlu0 %v1785, 32
          %v1788 = vpop.permute.xlu0 %1787
          %1790 = vst.msk [vmem:[#allocation3] sm:$0xff] %vm1450, %v1788
          %1792 = vrot.lane.b32.xlu0 %v1779, 96
          %v1793 = vpop.permute.xlu0 %1792
          %1795 = vst.msk [vmem:[#allocation4] sm:$0xff] %vm1450, %v1793
          %1796 = vst.msk [vmem:[%s339 + $0x28] sm:$0xff] %vm1450, %v1788
          %v1797 = vld [vmem:[#allocation2 + $0x20] sm:$0xff]
          %v1798 = vld [vmem:[#allocation3] sm:$0xff]
          %v1800 = vsel %vm1450, %v1798, 0
          %1802 = vmatprep.subr.mxu0 0.0
          %1803 = vmatpush1.msra.mxu0 %v507
          %1804 = vmatprep.subr.mxu0 0.0
          %1805 = vmatpush1.msra.mxu0 %v508
          %1806 = vmatprep.subr.mxu0 0.0
          %1807 = vmatpush1.msra.mxu0 %v509
          %1808 = vmatprep.subr.mxu0 0.0
          %1809 = vmatpush1.msra.mxu0 %v510
          %1810 = vmatprep.subr.mxu0 0.0
          %1811 = vmatpush1.msra.mxu0 0.0
          %1812 = vmatprep.subr.mxu0 0.0
          %1813 = vmatpush1.msra.mxu0 0.0
          %1814 = vmatprep.subr.mxu0 0.0
          %1815 = vmatpush1.msra.mxu0 0.0
          %1816 = vmatprep.subr.mxu0 0.0
          %1817 = vmatpush1.msra.mxu0 0.0
          %1818 = vmatprep.subr.mxu0 0.0
          %1819 = vmatpush1.msra.mxu0 0.0
          %1820 = vmatprep.subr.mxu0 0.0
          %1821 = vmatpush1.msra.mxu0 0.0
          %1822 = vmatprep.subr.mxu0 0.0
          %1823 = vmatpush1.msra.mxu0 0.0
          %1824 = vmatprep.subr.mxu0 0.0
          %1825 = vmatpush1.msra.mxu0 0.0
          %1826 = vmatprep.subr.mxu0 0.0
          %1827 = vmatpush1.msra.mxu0 0.0
          %1828 = vmatprep.subr.mxu0 0.0
          %1829 = vmatpush1.msra.mxu0 0.0
          %1830 = vmatprep.subr.mxu0 0.0
          %1831 = vmatpush1.msra.mxu0 0.0
          %1832 = vmatprep.subr.mxu0 0.0
          %1833 = vmatpush1.msra.mxu0 0.0
          %1834 = vmatprep.subr.mxu0 0.0
          %1835 = vmatpush1.msra.mxu0 0.0
          %1836 = vmatprep.subr.mxu0 0.0
          %1837 = vmatpush1.msra.mxu0 0.0
          %1838 = vmatprep.subr.mxu0 0.0
          %1839 = vmatpush1.msra.mxu0 0.0
          %1840 = vmatprep.subr.mxu0 0.0
          %1841 = vmatpush1.msra.mxu0 0.0
          %1842 = vmatprep.subr.mxu0 0.0
          %1843 = vmatpush1.msra.mxu0 0.0
          %1844 = vmatprep.subr.mxu0 0.0
          %1845 = vmatpush1.msra.mxu0 0.0
          %1846 = vmatprep.subr.mxu0 0.0
          %1847 = vmatpush1.msra.mxu0 0.0
          %1848 = vmatprep.subr.mxu0 0.0
          %1849 = vmatpush1.msra.mxu0 0.0
          %1850 = vmatprep.subr.mxu0 0.0
          %1851 = vmatpush1.msra.mxu0 0.0
          %1852 = vmatprep.subr.mxu0 0.0
          %1853 = vmatpush1.msra.mxu0 0.0
          %1854 = vmatprep.subr.mxu0 0.0
          %1855 = vmatpush1.msra.mxu0 0.0
          %1856 = vmatprep.subr.mxu0 0.0
          %1857 = vmatpush1.msra.mxu0 0.0
          %1858 = vmatprep.subr.mxu0 0.0
          %1859 = vmatpush1.msra.mxu0 0.0
          %1860 = vmatprep.subr.mxu0 0.0
          %1861 = vmatpush1.msra.mxu0 0.0
          %1862 = vmatprep.subr.mxu0 0.0
          %1863 = vmatpush1.msra.mxu0 0.0
          %1864 = vmatprep.subr.mxu0 0.0
          %1865 = vmatpush1.msra.mxu0 0.0
          %1866 = vmatprep.mubr.f32.mxu0 0.0
          %1867 = vmatmul.mubr.f32.gmra.mrb[0].mxu0 %v1800
          %v1868 = vpop.f32.mrb[0].mxu0
          %v1869 = vadd.f32 0.0, %v1868
          %v1870 = vpop.f32.mrb[0].mxu0
          %1871 = vdwg.mxu0
          %v1872 = vadd.f32 %v1797, %v1869
          %v1873 = vxor.u32 %v1872, 2147483648
          %v1874 = vmul.f32 %v1873, 1.442695
          %v1875 = vpow.pop %v1874
          %v1876 = vadd.f32 %v1875, 1.0
          %v1877 = vrcp.pop %v1876
          %v1878 = vmul.f32 1.0, %v1877
          %v1879 = vtanh.pop %v1872
          %v1880 = vld [vmem:[#allocation4] sm:$0xff]
          %1882 = vrot.lane.b32.xlu0 %v1880, 32
          %v1883 = vpop.permute.xlu0 %1882
          %v1885 = vmul.f32 %v1878, %v1883
          %1887 = vrot.lane.b32.xlu0 %v1879, 64
          %v1888 = vpop.permute.xlu0 %1887
          %v1890 = vmul.f32 %v1878, %v1888
          %1892 = vrot.lane.b32.xlu0 %v1890, 32
          %v1893 = vpop.permute.xlu0 %1892
          %v1895 = vadd.f32 %v1885, %v1893
          %v1896 = vtanh.pop %v1895
          %1898 = vrot.lane.b32.xlu0 %v1896, 64
          %v1899 = vpop.permute.xlu0 %1898
          %v1901 = vmul.f32 %v1878, %v1899
          %1903 = vrot.lane.b32.xlu0 %v1901, 32
          %v1904 = vpop.permute.xlu0 %1903
          %1906 = vst.msk [vmem:[#allocation3] sm:$0xff] %vm1450, %v1904
          %1908 = vrot.lane.b32.xlu0 %v1895, 96
          %v1909 = vpop.permute.xlu0 %1908
          %1911 = vst.msk [vmem:[#allocation4] sm:$0xff] %vm1450, %v1909
          %1912 = vst.msk [vmem:[%s339 + $0x20] sm:$0xff] %vm1450, %v1904
          %v1913 = vld [vmem:[#allocation2 + $0x18] sm:$0xff]
          %v1914 = vld [vmem:[#allocation3] sm:$0xff]
          %v1916 = vsel %vm1450, %v1914, 0
          %1918 = vmatprep.subr.mxu0 0.0
          %1919 = vmatpush1.msra.mxu0 %v507
          %1920 = vmatprep.subr.mxu0 0.0
          %1921 = vmatpush1.msra.mxu0 %v508
          %1922 = vmatprep.subr.mxu0 0.0
          %1923 = vmatpush1.msra.mxu0 %v509
          %1924 = vmatprep.subr.mxu0 0.0
          %1925 = vmatpush1.msra.mxu0 %v510
          %1926 = vmatprep.subr.mxu0 0.0
          %1927 = vmatpush1.msra.mxu0 0.0
          %1928 = vmatprep.subr.mxu0 0.0
          %1929 = vmatpush1.msra.mxu0 0.0
          %1930 = vmatprep.subr.mxu0 0.0
          %1931 = vmatpush1.msra.mxu0 0.0
          %1932 = vmatprep.subr.mxu0 0.0
          %1933 = vmatpush1.msra.mxu0 0.0
          %1934 = vmatprep.subr.mxu0 0.0
          %1935 = vmatpush1.msra.mxu0 0.0
          %1936 = vmatprep.subr.mxu0 0.0
          %1937 = vmatpush1.msra.mxu0 0.0
          %1938 = vmatprep.subr.mxu0 0.0
          %1939 = vmatpush1.msra.mxu0 0.0
          %1940 = vmatprep.subr.mxu0 0.0
          %1941 = vmatpush1.msra.mxu0 0.0
          %1942 = vmatprep.subr.mxu0 0.0
          %1943 = vmatpush1.msra.mxu0 0.0
          %1944 = vmatprep.subr.mxu0 0.0
          %1945 = vmatpush1.msra.mxu0 0.0
          %1946 = vmatprep.subr.mxu0 0.0
          %1947 = vmatpush1.msra.mxu0 0.0
          %1948 = vmatprep.subr.mxu0 0.0
          %1949 = vmatpush1.msra.mxu0 0.0
          %1950 = vmatprep.subr.mxu0 0.0
          %1951 = vmatpush1.msra.mxu0 0.0
          %1952 = vmatprep.subr.mxu0 0.0
          %1953 = vmatpush1.msra.mxu0 0.0
          %1954 = vmatprep.subr.mxu0 0.0
          %1955 = vmatpush1.msra.mxu0 0.0
          %1956 = vmatprep.subr.mxu0 0.0
          %1957 = vmatpush1.msra.mxu0 0.0
          %1958 = vmatprep.subr.mxu0 0.0
          %1959 = vmatpush1.msra.mxu0 0.0
          %1960 = vmatprep.subr.mxu0 0.0
          %1961 = vmatpush1.msra.mxu0 0.0
          %1962 = vmatprep.subr.mxu0 0.0
          %1963 = vmatpush1.msra.mxu0 0.0
          %1964 = vmatprep.subr.mxu0 0.0
          %1965 = vmatpush1.msra.mxu0 0.0
          %1966 = vmatprep.subr.mxu0 0.0
          %1967 = vmatpush1.msra.mxu0 0.0
          %1968 = vmatprep.subr.mxu0 0.0
          %1969 = vmatpush1.msra.mxu0 0.0
          %1970 = vmatprep.subr.mxu0 0.0
          %1971 = vmatpush1.msra.mxu0 0.0
          %1972 = vmatprep.subr.mxu0 0.0
          %1973 = vmatpush1.msra.mxu0 0.0
          %1974 = vmatprep.subr.mxu0 0.0
          %1975 = vmatpush1.msra.mxu0 0.0
          %1976 = vmatprep.subr.mxu0 0.0
          %1977 = vmatpush1.msra.mxu0 0.0
          %1978 = vmatprep.subr.mxu0 0.0
          %1979 = vmatpush1.msra.mxu0 0.0
          %1980 = vmatprep.subr.mxu0 0.0
          %1981 = vmatpush1.msra.mxu0 0.0
          %1982 = vmatprep.mubr.f32.mxu0 0.0
          %1983 = vmatmul.mubr.f32.gmra.mrb[0].mxu0 %v1916
          %v1984 = vpop.f32.mrb[0].mxu0
          %v1985 = vadd.f32 0.0, %v1984
          %v1986 = vpop.f32.mrb[0].mxu0
          %1987 = vdwg.mxu0
          %v1988 = vadd.f32 %v1913, %v1985
          %v1989 = vxor.u32 %v1988, 2147483648
          %v1990 = vmul.f32 %v1989, 1.442695
          %v1991 = vpow.pop %v1990
          %v1992 = vadd.f32 %v1991, 1.0
          %v1993 = vrcp.pop %v1992
          %v1994 = vmul.f32 1.0, %v1993
          %v1995 = vtanh.pop %v1988
          %v1996 = vld [vmem:[#allocation4] sm:$0xff]
          %1998 = vrot.lane.b32.xlu0 %v1996, 32
          %v1999 = vpop.permute.xlu0 %1998
          %v2001 = vmul.f32 %v1994, %v1999
          %2003 = vrot.lane.b32.xlu0 %v1995, 64
          %v2004 = vpop.permute.xlu0 %2003
          %v2006 = vmul.f32 %v1994, %v2004
          %2008 = vrot.lane.b32.xlu0 %v2006, 32
          %v2009 = vpop.permute.xlu0 %2008
          %v2011 = vadd.f32 %v2001, %v2009
          %v2012 = vtanh.pop %v2011
          %2014 = vrot.lane.b32.xlu0 %v2012, 64
          %v2015 = vpop.permute.xlu0 %2014
          %v2017 = vmul.f32 %v1994, %v2015
          %2019 = vrot.lane.b32.xlu0 %v2017, 32
          %v2020 = vpop.permute.xlu0 %2019
          %2022 = vst.msk [vmem:[#allocation3] sm:$0xff] %vm1450, %v2020
          %2024 = vrot.lane.b32.xlu0 %v2011, 96
          %v2025 = vpop.permute.xlu0 %2024
          %2027 = vst.msk [vmem:[#allocation4] sm:$0xff] %vm1450, %v2025
          %2028 = vst.msk [vmem:[%s339 + $0x18] sm:$0xff] %vm1450, %v2020
          %v2029 = vld [vmem:[#allocation2 + $0x10] sm:$0xff]
          %v2030 = vld [vmem:[#allocation3] sm:$0xff]
          %v2032 = vsel %vm1450, %v2030, 0
          %2034 = vmatprep.subr.mxu0 0.0
          %2035 = vmatpush1.msra.mxu0 %v507
          %2036 = vmatprep.subr.mxu0 0.0
          %2037 = vmatpush1.msra.mxu0 %v508
          %2038 = vmatprep.subr.mxu0 0.0
          %2039 = vmatpush1.msra.mxu0 %v509
          %2040 = vmatprep.subr.mxu0 0.0
          %2041 = vmatpush1.msra.mxu0 %v510
          %2042 = vmatprep.subr.mxu0 0.0
          %2043 = vmatpush1.msra.mxu0 0.0
          %2044 = vmatprep.subr.mxu0 0.0
          %2045 = vmatpush1.msra.mxu0 0.0
          %2046 = vmatprep.subr.mxu0 0.0
          %2047 = vmatpush1.msra.mxu0 0.0
          %2048 = vmatprep.subr.mxu0 0.0
          %2049 = vmatpush1.msra.mxu0 0.0
          %2050 = vmatprep.subr.mxu0 0.0
          %2051 = vmatpush1.msra.mxu0 0.0
          %2052 = vmatprep.subr.mxu0 0.0
          %2053 = vmatpush1.msra.mxu0 0.0
          %2054 = vmatprep.subr.mxu0 0.0
          %2055 = vmatpush1.msra.mxu0 0.0
          %2056 = vmatprep.subr.mxu0 0.0
          %2057 = vmatpush1.msra.mxu0 0.0
          %2058 = vmatprep.subr.mxu0 0.0
          %2059 = vmatpush1.msra.mxu0 0.0
          %2060 = vmatprep.subr.mxu0 0.0
          %2061 = vmatpush1.msra.mxu0 0.0
          %2062 = vmatprep.subr.mxu0 0.0
          %2063 = vmatpush1.msra.mxu0 0.0
          %2064 = vmatprep.subr.mxu0 0.0
          %2065 = vmatpush1.msra.mxu0 0.0
          %2066 = vmatprep.subr.mxu0 0.0
          %2067 = vmatpush1.msra.mxu0 0.0
          %2068 = vmatprep.subr.mxu0 0.0
          %2069 = vmatpush1.msra.mxu0 0.0
          %2070 = vmatprep.subr.mxu0 0.0
          %2071 = vmatpush1.msra.mxu0 0.0
          %2072 = vmatprep.subr.mxu0 0.0
          %2073 = vmatpush1.msra.mxu0 0.0
          %2074 = vmatprep.subr.mxu0 0.0
          %2075 = vmatpush1.msra.mxu0 0.0
          %2076 = vmatprep.subr.mxu0 0.0
          %2077 = vmatpush1.msra.mxu0 0.0
          %2078 = vmatprep.subr.mxu0 0.0
          %2079 = vmatpush1.msra.mxu0 0.0
          %2080 = vmatprep.subr.mxu0 0.0
          %2081 = vmatpush1.msra.mxu0 0.0
          %2082 = vmatprep.subr.mxu0 0.0
          %2083 = vmatpush1.msra.mxu0 0.0
          %2084 = vmatprep.subr.mxu0 0.0
          %2085 = vmatpush1.msra.mxu0 0.0
          %2086 = vmatprep.subr.mxu0 0.0
          %2087 = vmatpush1.msra.mxu0 0.0
          %2088 = vmatprep.subr.mxu0 0.0
          %2089 = vmatpush1.msra.mxu0 0.0
          %2090 = vmatprep.subr.mxu0 0.0
          %2091 = vmatpush1.msra.mxu0 0.0
          %2092 = vmatprep.subr.mxu0 0.0
          %2093 = vmatpush1.msra.mxu0 0.0
          %2094 = vmatprep.subr.mxu0 0.0
          %2095 = vmatpush1.msra.mxu0 0.0
          %2096 = vmatprep.subr.mxu0 0.0
          %2097 = vmatpush1.msra.mxu0 0.0
          %2098 = vmatprep.mubr.f32.mxu0 0.0
          %2099 = vmatmul.mubr.f32.gmra.mrb[0].mxu0 %v2032
          %v2100 = vpop.f32.mrb[0].mxu0
          %v2101 = vadd.f32 0.0, %v2100
          %v2102 = vpop.f32.mrb[0].mxu0
          %2103 = vdwg.mxu0
          %v2104 = vadd.f32 %v2029, %v2101
          %v2105 = vxor.u32 %v2104, 2147483648
          %v2106 = vmul.f32 %v2105, 1.442695
          %v2107 = vpow.pop %v2106
          %v2108 = vadd.f32 %v2107, 1.0
          %v2109 = vrcp.pop %v2108
          %v2110 = vmul.f32 1.0, %v2109
          %v2111 = vtanh.pop %v2104
          %v2112 = vld [vmem:[#allocation4] sm:$0xff]
          %2114 = vrot.lane.b32.xlu0 %v2112, 32
          %v2115 = vpop.permute.xlu0 %2114
          %v2117 = vmul.f32 %v2110, %v2115
          %2119 = vrot.lane.b32.xlu0 %v2111, 64
          %v2120 = vpop.permute.xlu0 %2119
          %v2122 = vmul.f32 %v2110, %v2120
          %2124 = vrot.lane.b32.xlu0 %v2122, 32
          %v2125 = vpop.permute.xlu0 %2124
          %v2127 = vadd.f32 %v2117, %v2125
          %v2128 = vtanh.pop %v2127
          %2130 = vrot.lane.b32.xlu0 %v2128, 64
          %v2131 = vpop.permute.xlu0 %2130
          %v2133 = vmul.f32 %v2110, %v2131
          %2135 = vrot.lane.b32.xlu0 %v2133, 32
          %v2136 = vpop.permute.xlu0 %2135
          %2138 = vst.msk [vmem:[#allocation3] sm:$0xff] %vm1450, %v2136
          %2140 = vrot.lane.b32.xlu0 %v2127, 96
          %v2141 = vpop.permute.xlu0 %2140
          %2143 = vst.msk [vmem:[#allocation4] sm:$0xff] %vm1450, %v2141
          %2144 = vst.msk [vmem:[%s339 + $0x10] sm:$0xff] %vm1450, %v2136
          %v2145 = vld [vmem:[#allocation2 + $0x8] sm:$0xff]
          %v2146 = vld [vmem:[#allocation3] sm:$0xff]
          %v2148 = vsel %vm1450, %v2146, 0
          %2150 = vmatprep.subr.mxu0 0.0
          %2151 = vmatpush1.msra.mxu0 %v507
          %2152 = vmatprep.subr.mxu0 0.0
          %2153 = vmatpush1.msra.mxu0 %v508
          %2154 = vmatprep.subr.mxu0 0.0
          %2155 = vmatpush1.msra.mxu0 %v509
          %2156 = vmatprep.subr.mxu0 0.0
          %2157 = vmatpush1.msra.mxu0 %v510
          %2158 = vmatprep.subr.mxu0 0.0
          %2159 = vmatpush1.msra.mxu0 0.0
          %2160 = vmatprep.subr.mxu0 0.0
          %2161 = vmatpush1.msra.mxu0 0.0
          %2162 = vmatprep.subr.mxu0 0.0
          %2163 = vmatpush1.msra.mxu0 0.0
          %2164 = vmatprep.subr.mxu0 0.0
          %2165 = vmatpush1.msra.mxu0 0.0
          %2166 = vmatprep.subr.mxu0 0.0
          %2167 = vmatpush1.msra.mxu0 0.0
          %2168 = vmatprep.subr.mxu0 0.0
          %2169 = vmatpush1.msra.mxu0 0.0
          %2170 = vmatprep.subr.mxu0 0.0
          %2171 = vmatpush1.msra.mxu0 0.0
          %2172 = vmatprep.subr.mxu0 0.0
          %2173 = vmatpush1.msra.mxu0 0.0
          %2174 = vmatprep.subr.mxu0 0.0
          %2175 = vmatpush1.msra.mxu0 0.0
          %2176 = vmatprep.subr.mxu0 0.0
          %2177 = vmatpush1.msra.mxu0 0.0
          %2178 = vmatprep.subr.mxu0 0.0
          %2179 = vmatpush1.msra.mxu0 0.0
          %2180 = vmatprep.subr.mxu0 0.0
          %2181 = vmatpush1.msra.mxu0 0.0
          %2182 = vmatprep.subr.mxu0 0.0
          %2183 = vmatpush1.msra.mxu0 0.0
          %2184 = vmatprep.subr.mxu0 0.0
          %2185 = vmatpush1.msra.mxu0 0.0
          %2186 = vmatprep.subr.mxu0 0.0
          %2187 = vmatpush1.msra.mxu0 0.0
          %2188 = vmatprep.subr.mxu0 0.0
          %2189 = vmatpush1.msra.mxu0 0.0
          %2190 = vmatprep.subr.mxu0 0.0
          %2191 = vmatpush1.msra.mxu0 0.0
          %2192 = vmatprep.subr.mxu0 0.0
          %2193 = vmatpush1.msra.mxu0 0.0
          %2194 = vmatprep.subr.mxu0 0.0
          %2195 = vmatpush1.msra.mxu0 0.0
          %2196 = vmatprep.subr.mxu0 0.0
          %2197 = vmatpush1.msra.mxu0 0.0
          %2198 = vmatprep.subr.mxu0 0.0
          %2199 = vmatpush1.msra.mxu0 0.0
          %2200 = vmatprep.subr.mxu0 0.0
          %2201 = vmatpush1.msra.mxu0 0.0
          %2202 = vmatprep.subr.mxu0 0.0
          %2203 = vmatpush1.msra.mxu0 0.0
          %2204 = vmatprep.subr.mxu0 0.0
          %2205 = vmatpush1.msra.mxu0 0.0
          %2206 = vmatprep.subr.mxu0 0.0
          %2207 = vmatpush1.msra.mxu0 0.0
          %2208 = vmatprep.subr.mxu0 0.0
          %2209 = vmatpush1.msra.mxu0 0.0
          %2210 = vmatprep.subr.mxu0 0.0
          %2211 = vmatpush1.msra.mxu0 0.0
          %2212 = vmatprep.subr.mxu0 0.0
          %2213 = vmatpush1.msra.mxu0 0.0
          %2214 = vmatprep.mubr.f32.mxu0 0.0
          %2215 = vmatmul.mubr.f32.gmra.mrb[0].mxu0 %v2148
          %v2216 = vpop.f32.mrb[0].mxu0
          %v2217 = vadd.f32 0.0, %v2216
          %v2218 = vpop.f32.mrb[0].mxu0
          %2219 = vdwg.mxu0
          %v2220 = vadd.f32 %v2145, %v2217
          %v2221 = vxor.u32 %v2220, 2147483648
          %v2222 = vmul.f32 %v2221, 1.442695
          %v2223 = vpow.pop %v2222
          %v2224 = vadd.f32 %v2223, 1.0
          %v2225 = vrcp.pop %v2224
          %v2226 = vmul.f32 1.0, %v2225
          %v2227 = vtanh.pop %v2220
          %v2228 = vld [vmem:[#allocation4] sm:$0xff]
          %2230 = vrot.lane.b32.xlu0 %v2228, 32
          %v2231 = vpop.permute.xlu0 %2230
          %v2233 = vmul.f32 %v2226, %v2231
          %2235 = vrot.lane.b32.xlu0 %v2227, 64
          %v2236 = vpop.permute.xlu0 %2235
          %v2238 = vmul.f32 %v2226, %v2236
          %2240 = vrot.lane.b32.xlu0 %v2238, 32
          %v2241 = vpop.permute.xlu0 %2240
          %v2243 = vadd.f32 %v2233, %v2241
          %v2244 = vtanh.pop %v2243
          %2246 = vrot.lane.b32.xlu0 %v2244, 64
          %v2247 = vpop.permute.xlu0 %2246
          %v2249 = vmul.f32 %v2226, %v2247
          %2251 = vrot.lane.b32.xlu0 %v2249, 32
          %v2252 = vpop.permute.xlu0 %2251
          %2254 = vst.msk [vmem:[#allocation3] sm:$0xff] %vm1450, %v2252
          %2256 = vrot.lane.b32.xlu0 %v2243, 96
          %v2257 = vpop.permute.xlu0 %2256
          %2259 = vst.msk [vmem:[#allocation4] sm:$0xff] %vm1450, %v2257
          %2260 = vst.msk [vmem:[%s339 + $0x8] sm:$0xff] %vm1450, %v2252
          %v2261 = vld [vmem:[#allocation2] sm:$0xff]
          %v2262 = vld [vmem:[#allocation3] sm:$0xff]
          %v2264 = vsel %vm1450, %v2262, 0
          %2266 = vmatprep.subr.mxu0 0.0
          %2267 = vmatpush1.msra.mxu0 %v507
          %2268 = vmatprep.subr.mxu0 0.0
          %2269 = vmatpush1.msra.mxu0 %v508
          %2270 = vmatprep.subr.mxu0 0.0
          %2271 = vmatpush1.msra.mxu0 %v509
          %2272 = vmatprep.subr.mxu0 0.0
          %2273 = vmatpush1.msra.mxu0 %v510
          %2274 = vmatprep.subr.mxu0 0.0
          %2275 = vmatpush1.msra.mxu0 0.0
          %2276 = vmatprep.subr.mxu0 0.0
          %2277 = vmatpush1.msra.mxu0 0.0
          %2278 = vmatprep.subr.mxu0 0.0
          %2279 = vmatpush1.msra.mxu0 0.0
          %2280 = vmatprep.subr.mxu0 0.0
          %2281 = vmatpush1.msra.mxu0 0.0
          %2282 = vmatprep.subr.mxu0 0.0
          %2283 = vmatpush1.msra.mxu0 0.0
          %2284 = vmatprep.subr.mxu0 0.0
          %2285 = vmatpush1.msra.mxu0 0.0
          %2286 = vmatprep.subr.mxu0 0.0
          %2287 = vmatpush1.msra.mxu0 0.0
          %2288 = vmatprep.subr.mxu0 0.0
          %2289 = vmatpush1.msra.mxu0 0.0
          %2290 = vmatprep.subr.mxu0 0.0
          %2291 = vmatpush1.msra.mxu0 0.0
          %2292 = vmatprep.subr.mxu0 0.0
          %2293 = vmatpush1.msra.mxu0 0.0
          %2294 = vmatprep.subr.mxu0 0.0
          %2295 = vmatpush1.msra.mxu0 0.0
          %2296 = vmatprep.subr.mxu0 0.0
          %2297 = vmatpush1.msra.mxu0 0.0
          %2298 = vmatprep.subr.mxu0 0.0
          %2299 = vmatpush1.msra.mxu0 0.0
          %2300 = vmatprep.subr.mxu0 0.0
          %2301 = vmatpush1.msra.mxu0 0.0
          %2302 = vmatprep.subr.mxu0 0.0
          %2303 = vmatpush1.msra.mxu0 0.0
          %2304 = vmatprep.subr.mxu0 0.0
          %2305 = vmatpush1.msra.mxu0 0.0
          %2306 = vmatprep.subr.mxu0 0.0
          %2307 = vmatpush1.msra.mxu0 0.0
          %2308 = vmatprep.subr.mxu0 0.0
          %2309 = vmatpush1.msra.mxu0 0.0
          %2310 = vmatprep.subr.mxu0 0.0
          %2311 = vmatpush1.msra.mxu0 0.0
          %2312 = vmatprep.subr.mxu0 0.0
          %2313 = vmatpush1.msra.mxu0 0.0
          %2314 = vmatprep.subr.mxu0 0.0
          %2315 = vmatpush1.msra.mxu0 0.0
          %2316 = vmatprep.subr.mxu0 0.0
          %2317 = vmatpush1.msra.mxu0 0.0
          %2318 = vmatprep.subr.mxu0 0.0
          %2319 = vmatpush1.msra.mxu0 0.0
          %2320 = vmatprep.subr.mxu0 0.0
          %2321 = vmatpush1.msra.mxu0 0.0
          %2322 = vmatprep.subr.mxu0 0.0
          %2323 = vmatpush1.msra.mxu0 0.0
          %2324 = vmatprep.subr.mxu0 0.0
          %2325 = vmatpush1.msra.mxu0 0.0
          %2326 = vmatprep.subr.mxu0 0.0
          %2327 = vmatpush1.msra.mxu0 0.0
          %2328 = vmatprep.subr.mxu0 0.0
          %2329 = vmatpush1.msra.mxu0 0.0
          %2330 = vmatprep.mubr.f32.mxu0 0.0
          %2331 = vmatmul.mubr.f32.gmra.mrb[0].mxu0 %v2264
          %v2332 = vpop.f32.mrb[0].mxu0
          %v2333 = vadd.f32 0.0, %v2332
          %v2334 = vpop.f32.mrb[0].mxu0
          %2335 = vdwg.mxu0
          %v2336 = vadd.f32 %v2261, %v2333
          %v2337 = vxor.u32 %v2336, 2147483648
          %v2338 = vmul.f32 %v2337, 1.442695
          %v2339 = vpow.pop %v2338
          %v2340 = vadd.f32 %v2339, 1.0
          %v2341 = vrcp.pop %v2340
          %v2342 = vmul.f32 1.0, %v2341
          %v2343 = vtanh.pop %v2336
          %v2344 = vld [vmem:[#allocation4] sm:$0xff]
          %2346 = vrot.lane.b32.xlu0 %v2344, 32
          %v2347 = vpop.permute.xlu0 %2346
          %v2349 = vmul.f32 %v2342, %v2347
          %2351 = vrot.lane.b32.xlu0 %v2343, 64
          %v2352 = vpop.permute.xlu0 %2351
          %v2354 = vmul.f32 %v2342, %v2352
          %2356 = vrot.lane.b32.xlu0 %v2354, 32
          %v2357 = vpop.permute.xlu0 %2356
          %v2359 = vadd.f32 %v2349, %v2357
          %v2360 = vtanh.pop %v2359
          %2362 = vrot.lane.b32.xlu0 %v2360, 64
          %v2363 = vpop.permute.xlu0 %2362
          %v2365 = vmul.f32 %v2342, %v2363
          %2367 = vrot.lane.b32.xlu0 %v2365, 32
          %v2368 = vpop.permute.xlu0 %2367
          %2370 = vst.msk [vmem:[#allocation3] sm:$0xff] %vm1450, %v2368
          %2372 = vrot.lane.b32.xlu0 %v2359, 96
          %v2373 = vpop.permute.xlu0 %2372
          %2375 = vst.msk [vmem:[#allocation4] sm:$0xff] %vm1450, %v2373
          %2376 = vst.msk [vmem:[%s339] sm:$0xff] %vm1450, %v2368
        $region52: #{tpu_custom_call.1} parent=35 // pred_fallthru
          _
        %s2377 = smul.u32 %s23, 2
        %s2378 = ssub.s32 0, %s2377
        %s2379 = smul.u32 %s22, %s2378
        %s2380 = sadd.s32 %s23, %s2379
        %s2381 = smul.u32 8, %s2380
        %p2382 = scmp.lt.s32.totalorder %s22, 1
        %s2383 = scalar_select %p2382, %s22, 1
        %p2384 = scmp.lt.s32.totalorder %s2381, 7
        %s2385 = scalar_select %p2384, %s2381, 7
        %s2386 = smul.addr %s2383, 8
        %s2387 = sadd.s32 %s2385, %s2386
        %s2388 = smul.addr %s2387, 8
        %s2389 = scalar_lea.vmem %s4, %s2388
        // Predicated region
        $region53: #{tpu_custom_call.1} parent=35 // pred_check
          %p2390 = pneg %p170
        $region54: #{tpu_custom_call.1} parent=35 // pred_check_branch
          %2392 = sbr.rel (%p2390) target = $region56
        $region55: #{tpu_custom_call.1} parent=35 // pred_region
          %s2393 = smul.u32 %s23, 2
          %s2394 = ssub.s32 0, %s2393
          %s2395 = smul.u32 %s22, %s2394
          %s2396 = sadd.s32 %s23, %s2395
          %s2397 = smul.u32 8, %s2396
        $region56: #{tpu_custom_call.1} parent=35 // pred_fallthru
          _
      $region36: #{tpu_custom_call.1} parent=5 // pred_fallthru
        _
      %p2398 = scmp.le.s32.totalorder 2, %s13
      // Predicated region
      $region57: #{tpu_custom_call.1} parent=5 // pred_check
        %p2399 = pneg %p2398
      $region58: #{tpu_custom_call.1} parent=5 // pred_check_branch
        %2401 = sbr.rel (%p2399) target = $region60
      $region59: #{tpu_custom_call.1} parent=5 // pred_region
        %s2402 = ssub.s32 %s13, 2
        // Predicated region
        $region61: #{tpu_custom_call.1} parent=59 // pred_check
          %p2403 = pneg %p176
        $region62: #{tpu_custom_call.1} parent=59 // pred_check_branch
          %2405 = sbr.rel (%p2403) target = $region64
        $region63: #{tpu_custom_call.1} parent=59 // pred_region
          %s2406 = smul.u32 %s25, 2
          %s2407 = ssub.s32 0, %s2406
          %s2408 = smul.u32 %s24, %s2407
          %s2409 = sadd.s32 %s25, %s2408
          %s2410 = smul.u32 8, %s2409
          %p2411 = scmp.lt.s32.totalorder %s24, 1
          %s2412 = scalar_select %p2411, %s24, 1
          %p2413 = scmp.lt.s32.totalorder %s2410, 7
          %s2414 = scalar_select %p2413, %s2410, 7
          %s2415 = smul.addr %s2412, 8
          %s2416 = sadd.s32 %s2414, %s2415
          %s2417 = smul.addr %s2416, 8
          %s2418 = scalar_lea.vmem %s4, %s2417
        $region64: #{tpu_custom_call.1} parent=59 // pred_fallthru
          _
      $region60: #{tpu_custom_call.1} parent=5 // pred_fallthru
        _
    $region6: #{tpu_custom_call.1} parent=1 // loop_footer
      %s17 = sadd.s32 1, %s13
    $region7: #{tpu_custom_call.1} parent=1 // loop_footer_branch
      %12 = sbr.rel target = $region3
    $region8: #{tpu_custom_call.1} parent=1 // loop_exit
      _
    %2419 = vsyncpa [#allocation6], 1
    %s2420 = scalar_lea.sflag [#allocation6], 1
    %2421 = vsyncpa %s2420, 1

</llo_original>
